<compile_context>
chip_gen: v6e
topology: v6e:2x2x1
jax: 0.10.0
libtpu: 0.0.40
codegen_flags: <defaults>
</compile_context>

<pallas_src>
import functools

import jax
import jax.numpy as jnp
from jax import lax
from jax.experimental import pallas as pl
from jax.experimental.pallas import tpu as pltpu

BN_EPS = 1e-5


# ---------------------------------------------------------------------------
# Capability probe: stride-4 slice of a *value* along the lane axis.
# (The review recommends strided value slicing for the pool down-select; this
# probe guarantees we never ship a kernel that fails to lower.)
# ---------------------------------------------------------------------------
@functools.lru_cache(maxsize=None)
def _strided_value_slice_ok():
    def probe_kernel(x_ref, o_ref):
        o_ref[...] = lax.slice(x_ref[...], (0, 0), (8, 125), (1, 4))

    try:
        x = jnp.arange(8 * 128, dtype=jnp.float32).reshape(8, 128)
        out = pl.pallas_call(
            probe_kernel,
            out_shape=jax.ShapeDtypeStruct((8, 32), jnp.float32))(x)
        return bool(jnp.array_equal(out, x[:, ::4]))
    except Exception:
        return False


def _downsel_lanes(m, step, out_len, strided_ok):
    """out[:, j] = m[:, step*j] for j < out_len (step / out_len static)."""
    c = m.shape[0]
    k = step * (out_len - 1) + 1
    if strided_ok:
        return lax.slice(m, (0, 0), (c, k), (1, step))
    # Fallback: 0/1 selection matmul generated in-register from iota — no HBM
    # traffic, no extra inputs (only used when strided value slices don't
    # lower; the wrapper then also forces b_blk=1 to bound its size).
    rows = lax.broadcasted_iota(jnp.int32, (k, out_len), 0)
    cols = lax.broadcasted_iota(jnp.int32, (k, out_len), 1)
    sel = (rows == step * cols).astype(jnp.float32)
    return jnp.dot(m[:, :k], sel, preferred_element_type=jnp.float32)


# ---------------------------------------------------------------------------
# Fused kernel: full M5 forward for B_blk batch elements (laid along lanes).
# ---------------------------------------------------------------------------
def _m5_fused_kernel(*refs, meta, head, b_blk, strided_ok):
    """refs = (xf, blk_pack * n_blocks, fc_pack, out).

    xf       : (stride*C_in, B_blk*S1)  stride-folded, lane-batched input
    blk_pack : (C_out, n_taps*rows + 1) [scaled im2col weight | BN+bias shift]
    fc_pack  : (n_out, C_last + 1)      [fc weight | fc bias]
    out      : (n_out, B_blk)           per-step log-probs (transposed in host)
    meta     : static (n_taps, rows, seg_in, seg_out) per block
    head     : static (valid_len, seg_last) for the adaptive average pool
    """
    n_blocks = len(meta)
    x_ref = refs[0]
    blk_refs = refs[1:1 + n_blocks]
    fc_ref = refs[1 + n_blocks]
    o_ref = refs[2 + n_blocks]

    h = x_ref[...].astype(jnp.float32)                 # (rows0, B*S1)
    for (n_taps, rows, seg_in, seg_out), w_ref in zip(meta, blk_refs):
        lanes = b_blk * seg_in
        wall = w_ref[...].astype(jnp.float32)          # (C_out, n_taps*rows+1)

        # Zero-pad the lane tail so every tap slice spans exactly `lanes`
        # columns (only the last element's garbage region reads the pad).
        if n_taps > 1:
            pad = jnp.zeros((h.shape[0], n_taps - 1), jnp.float32)
            h = jnp.concatenate([h, pad], axis=1)

        # Conv1d: n_taps accumulating (C_out, rows) @ (rows, lanes) matmuls —
        # lane-dense MXU work, no im2col concat (low vreg pressure).
        y = None
        for d in range(n_taps):
            wd = wall[:, d * rows:(d + 1) * rows]
            t = jnp.dot(wd, h[:, d:d + lanes],
                        preferred_element_type=jnp.float32)
            y = t if y is None else y + t

        # Folded conv-bias + BatchNorm(eval) shift, then ReLU (full-lane VPU).
        y = jnp.maximum(y + wall[:, n_taps * rows:n_taps * rows + 1], 0.0)

        # MaxPool1d(4,4): 3 shifted elementwise maxima + stride-4 lane select.
        m = jnp.maximum(jnp.maximum(y[:, 0:lanes - 3], y[:, 1:lanes - 2]),
                        jnp.maximum(y[:, 2:lanes - 1], y[:, 3:lanes]))
        h = _downsel_lanes(m, 4, b_blk * seg_out, strided_ok)

    # Head: adaptive_avg_pool1d(1) -> Linear -> log_softmax (fused).
    v_last, seg_last = head
    lanes = b_blk * seg_last
    acc = h[:, 0:lanes - v_last + 1]
    for t in range(1, v_last):
        acc = acc + h[:, t:t + lanes - v_last + 1]
    meanv = _downsel_lanes(acc, seg_last, b_blk, strided_ok) * (1.0 / v_last)
    fcp = fc_ref[...].astype(jnp.float32)              # (n_out, C_last + 1)
    logits = jnp.dot(fcp[:, :-1], meanv,
                     preferred_element_type=jnp.float32) + fcp[:, -1:]
    z = logits - jnp.max(logits, axis=0, keepdims=True)
    lse = jnp.log(jnp.sum(jnp.exp(z), axis=0, keepdims=True))
    o_ref[...] = (z - lse).astype(o_ref.dtype)         # (n_out, B_blk)


# ---------------------------------------------------------------------------
# Wrapper
# ---------------------------------------------------------------------------
def _pick_b_blk(n):
    """Largest divisor of n that is <= 8 and keeps the grid >= 2 steps."""
    target = min(8, max(1, n // 2))
    for b in range(target, 0, -1):
        if n % b == 0:
            return b
    return 1


def m5_forward_pallas(x_ncw, params, stride):
    """x_ncw: (N, C_in, L) like PyTorch. Returns (N, 1, n_output) log-probs."""
    N, c_in0, L = x_ncw.shape
    assert L % stride == 0, "input length must be divisible by the conv stride"
    n_blocks = len(params["blocks"])

    strided_ok = _strided_value_slice_ok()
    b_blk = _pick_b_blk(N) if strided_ok else 1
    n_grp = N // b_blk

    # Per-element segment length (in lanes) for the block-1 input: a multiple
    # of 4**n_blocks so the lane count stays divisible by 4 through every
    # pool and the per-element segment structure survives (review #8).
    v1 = L // stride
    align = 4 ** n_blocks
    seg1 = -(-v1 // align) * align

    # Stride-fold the input (stride -> sublanes) and lay the sub-batch along
    # lanes: xf[g, m*C_in + c, b*seg1 + j] = x[g*b_blk + b, c, j*stride + m].
    xf = x_ncw.reshape(N, c_in0, v1, stride)
    xf = jnp.transpose(xf, (0, 3, 1, 2)).reshape(N, stride * c_in0, v1)
    if seg1 != v1:
        xf = jnp.pad(xf, ((0, 0), (0, 0), (0, seg1 - v1)))
    xf = xf.reshape(n_grp, b_blk, stride * c_in0, seg1)
    xf = jnp.transpose(xf, (0, 2, 1, 3)).reshape(
        n_grp, stride * c_in0, b_blk * seg1)

    # Fold conv bias + BatchNorm(eval) into per-block (weight | shift) packs.
    conv_strides = [stride] + [1] * (n_blocks - 1)
    meta, packs = [], []
    seg, v = seg1, v1
    for p, s in zip(params["blocks"], conv_strides):
        c_out, c_in, k = p["w"].shape
        assert k % s == 0, "conv kernel size must be a multiple of its stride"
        n_taps, rows = k // s, s * c_in
        scale = p["gamma"] / jnp.sqrt(p["var"] + BN_EPS)
        shift = p["beta"] + scale * (p["b"] - p["mean"])
        wf = (jnp.transpose(p["w"], (0, 2, 1)).reshape(c_out, k * c_in)
              * scale[:, None])
        packs.append(jnp.concatenate([wf, shift[:, None]], axis=1))
        v = v - n_taps + 1                      # valid conv length (lanes)
        assert v >= 4, "input too short for the four conv/pool blocks"
        v //= 4                                 # MaxPool1d(4) output length
        meta.append((int(n_taps), int(rows), int(seg), int(seg // 4)))
        seg //= 4
    fc_pack = jnp.concatenate(
        [params["fc_w"], params["fc_b"][:, None]], axis=1)   # (n_out, C+1)
    n_out = fc_pack.shape[0]

    kernel = functools.partial(_m5_fused_kernel, meta=tuple(meta),
                               head=(int(v), int(seg)), b_blk=b_blk,
                               strided_ok=strided_ok)
    in_specs = [pl.BlockSpec((None,) + xf.shape[1:], lambda g: (g, 0, 0))]
    in_specs += [pl.BlockSpec(a.shape, lambda g: (0, 0))
                 for a in packs + [fc_pack]]
    out = pl.pallas_call(
        kernel,
        out_shape=jax.ShapeDtypeStruct((n_grp, n_out, b_blk), jnp.float32),
        grid=(n_grp,),
        in_specs=in_specs,
        out_specs=pl.BlockSpec((None, n_out, b_blk), lambda g: (g, 0, 0)),
        compiler_params=pltpu.CompilerParams(
            dimension_semantics=("parallel",)),
    )(xf, *packs, fc_pack)

    out = jnp.transpose(out, (0, 2, 1)).reshape(N, n_out)
    return out.reshape(N, 1, n_out).astype(x_ncw.dtype)


# ---------------------------------------------------------------------------
# Parameters + pure-JAX reference (mirrors the PyTorch forward, NCW layout)
# ---------------------------------------------------------------------------
def init_params(key, n_input, n_output, n_channel, conv_kernel_sizes):
    """Deterministic synthetic parameters (PyTorch-shaped)."""
    chans = [(n_input, n_channel), (n_channel, n_channel),
             (n_channel, 2 * n_channel), (2 * n_channel, 2 * n_channel)]
    blocks = []
    for (c_in, c_out), k in zip(chans, conv_kernel_sizes):
        key, k1, k2, k3, k4, k5, k6 = jax.random.split(key, 7)
        bound = 1.0 / jnp.sqrt(float(c_in * k))
        w = jax.random.uniform(k1, (c_out, c_in, k), jnp.float32, -bound, bound)
        b = jax.random.uniform(k2, (c_out,), jnp.float32, -bound, bound)
        gamma = jax.random.uniform(k3, (c_out,), jnp.float32, 0.5, 1.5)
        beta = jax.random.uniform(k4, (c_out,), jnp.float32, -0.1, 0.1)
        r_mean = jax.random.uniform(k5, (c_out,), jnp.float32, -0.1, 0.1)
        r_var = jax.random.uniform(k6, (c_out,), jnp.float32, 0.5, 1.5)
        blocks.append(dict(w=w, b=b, gamma=gamma, beta=beta,
                           mean=r_mean, var=r_var))
    key, k1, k2 = jax.random.split(key, 3)
    bound = 1.0 / jnp.sqrt(float(2 * n_channel))
    fc_w = jax.random.uniform(k1, (n_output, 2 * n_channel), jnp.float32,
                              -bound, bound)
    fc_b = jax.random.uniform(k2, (n_output,), jnp.float32, -bound, bound)
    return dict(blocks=blocks, fc_w=fc_w, fc_b=fc_b)


def m5_forward_ref(x_ncw, params, stride):
    x = x_ncw
    strides = [stride, 1, 1, 1]
    for p, s in zip(params["blocks"], strides):
        y = jax.lax.conv_general_dilated(
            x, p["w"], window_strides=(s,), padding="VALID",
            dimension_numbers=("NCH", "OIH", "NCH"))
        y = y + p["b"][None, :, None]
        y = (p["gamma"][None, :, None] * (y - p["mean"][None, :, None])
             / jnp.sqrt(p["var"][None, :, None] + BN_EPS)
             + p["beta"][None, :, None])
        y = jnp.maximum(y, 0.0)
        Lc = y.shape[-1]
        Lp = (Lc - 4) // 4 + 1
        y = y[:, :, :4 * Lp].reshape(y.shape[0], y.shape[1], Lp, 4).max(axis=-1)
        x = y
    x = x.mean(axis=-1, keepdims=True)          # adaptive_avg_pool1d(x, 1)
    x = jnp.transpose(x, (0, 2, 1))             # (N, 1, 2*n_channel)
    logits = x @ params["fc_w"].T + params["fc_b"]
    return jax.nn.log_softmax(logits, axis=2)


# ---------------------------------------------------------------------------
if __name__ == "__main__":
    # Small M5 config: n_input=1, n_output=10, stride=4, n_channel=8,
    # K=[8,3,3,3]; L=4096 is the minimum power-of-two length that survives all
    # four conv+pool/4 stages.  N=8 exercises the lane-batched path
    # (B_blk=4, grid=(2,) so both v7x TensorCores are busy).
    N, n_input, n_output = 8, 1, 10
    stride, n_channel = 4, 8
    conv_kernel_sizes = [8, 3, 3, 3]
    L = 4096

    key = jax.random.PRNGKey(0)
    kx, kp = jax.random.split(key)
    x = jax.random.normal(kx, (N, n_input, L), dtype=jnp.float32)
    params = init_params(kp, n_input, n_output, n_channel, conv_kernel_sizes)

    out = jax.block_until_ready(m5_forward_pallas(x, params, stride))
    ref = jax.block_until_ready(m5_forward_ref(x, params, stride))

    assert out.shape == (N, 1, n_output), out.shape
    assert bool(jnp.all(jnp.isfinite(out)))
    max_err = float(jnp.max(jnp.abs(out - ref)))
    assert max_err < 1e-2, f"mismatch vs reference: {max_err}"
    print("KERNEL_OK")
</pallas_src>

<mosaic_0001>
module attributes {stable_mosaic.version = 11 : i64} {
  func.func @_m5_fused_kernel(%arg0: i32, %arg1: memref<1x4x1024xf32, #tpu.memory_space<vmem>>, %arg2: memref<8x9xf32, #tpu.memory_space<vmem>>, %arg3: memref<8x25xf32, #tpu.memory_space<vmem>>, %arg4: memref<16x25xf32, #tpu.memory_space<vmem>>, %arg5: memref<16x49xf32, #tpu.memory_space<vmem>>, %arg6: memref<10x17xf32, #tpu.memory_space<vmem>>, %arg7: memref<1x10x1xf32, #tpu.memory_space<vmem>>) attributes {dimension_semantics = [#tpu.dimension_semantics<parallel>], iteration_bounds = array<i64: 8>, scalar_prefetch = 0 : i64, scratch_operands = 0 : i64, tpu.core_type = #tpu.core_type<tc>, window_params = [{transform_indices = @transform_0, window_bounds = array<i64: 1, 4, 1024>}, {pipeline_mode = #tpu.pipeline_mode<synchronous>, transform_indices = @transform_1, window_bounds = array<i64: 8, 9>}, {pipeline_mode = #tpu.pipeline_mode<synchronous>, transform_indices = @transform_2, window_bounds = array<i64: 8, 25>}, {pipeline_mode = #tpu.pipeline_mode<synchronous>, transform_indices = @transform_3, window_bounds = array<i64: 16, 25>}, {pipeline_mode = #tpu.pipeline_mode<synchronous>, transform_indices = @transform_4, window_bounds = array<i64: 16, 49>}, {pipeline_mode = #tpu.pipeline_mode<synchronous>, transform_indices = @transform_5, window_bounds = array<i64: 10, 17>}, {transform_indices = @transform_6, window_bounds = array<i64: 1, 10, 1>}]} {
    %c0 = arith.constant 0 : index
    %c0_0 = arith.constant 0 : index
    %c0_1 = arith.constant 0 : index
    %0 = vector.load %arg1[%c0, %c0_0, %c0_1] : memref<1x4x1024xf32, #tpu.memory_space<vmem>>, vector<1x4x1024xf32>
    %1 = vector.shape_cast %0 : vector<1x4x1024xf32> to vector<4x1024xf32>
    %c0_2 = arith.constant 0 : index
    %c0_3 = arith.constant 0 : index
    %2 = vector.load %arg2[%c0_2, %c0_3] : memref<8x9xf32, #tpu.memory_space<vmem>>, vector<8x9xf32>
    %cst = arith.constant 0.000000e+00 : f32
    %3 = vector.broadcast %cst : f32 to vector<4x1xf32>
    %4 = tpu.concatenate %1, %3 in 1 : vector<4x1024xf32>, vector<4x1xf32> -> vector<4x1025xf32>
    %5 = vector.extract_strided_slice %2 {offsets = [0, 0], sizes = [8, 4], strides = [1, 1]} : vector<8x9xf32> to vector<8x4xf32>
    %6 = vector.extract_strided_slice %4 {offsets = [0, 0], sizes = [4, 1024], strides = [1, 1]} : vector<4x1025xf32> to vector<4x1024xf32>
    %cst_4 = arith.constant dense<0.000000e+00> : vector<8x1024xf32>
    %7 = tpu.matmul %5, %6, %cst_4 {dimension_numbers = #tpu.dot_dimension_numbers<[1], [0], [0], [1], [0, 0, 1, 1], [], []>} : vector<8x4xf32>, vector<4x1024xf32>, vector<8x1024xf32> -> vector<8x1024xf32>
    %8 = vector.extract_strided_slice %2 {offsets = [0, 4], sizes = [8, 4], strides = [1, 1]} : vector<8x9xf32> to vector<8x4xf32>
    %9 = vector.extract_strided_slice %4 {offsets = [0, 1], sizes = [4, 1024], strides = [1, 1]} : vector<4x1025xf32> to vector<4x1024xf32>
    %cst_5 = arith.constant dense<0.000000e+00> : vector<8x1024xf32>
    %10 = tpu.matmul %8, %9, %cst_5 {dimension_numbers = #tpu.dot_dimension_numbers<[1], [0], [0], [1], [0, 0, 1, 1], [], []>} : vector<8x4xf32>, vector<4x1024xf32>, vector<8x1024xf32> -> vector<8x1024xf32>
    %11 = arith.addf %7, %10 : vector<8x1024xf32>
    %12 = vector.extract_strided_slice %2 {offsets = [0, 8], sizes = [8, 1], strides = [1, 1]} : vector<8x9xf32> to vector<8x1xf32>
    %13 = vector.broadcast %12 : vector<8x1xf32> to vector<8x1024xf32>
    %14 = arith.addf %11, %13 : vector<8x1024xf32>
    %cst_6 = arith.constant 0.000000e+00 : f32
    %15 = vector.broadcast %cst_6 : f32 to vector<8x1024xf32>
    %16 = arith.maximumf %14, %15 : vector<8x1024xf32>
    %17 = vector.extract_strided_slice %16 {offsets = [0, 0], sizes = [8, 1021], strides = [1, 1]} : vector<8x1024xf32> to vector<8x1021xf32>
    %18 = vector.extract_strided_slice %16 {offsets = [0, 1], sizes = [8, 1021], strides = [1, 1]} : vector<8x1024xf32> to vector<8x1021xf32>
    %19 = arith.maximumf %17, %18 : vector<8x1021xf32>
    %20 = vector.extract_strided_slice %16 {offsets = [0, 2], sizes = [8, 1021], strides = [1, 1]} : vector<8x1024xf32> to vector<8x1021xf32>
    %21 = vector.extract_strided_slice %16 {offsets = [0, 3], sizes = [8, 1021], strides = [1, 1]} : vector<8x1024xf32> to vector<8x1021xf32>
    %22 = arith.maximumf %20, %21 : vector<8x1021xf32>
    %23 = arith.maximumf %19, %22 : vector<8x1021xf32>
    %24 = tpu.iota {dimensions = array<i32: 0>} : vector<1021x256xi32>
    %25 = tpu.iota {dimensions = array<i32: 1>} : vector<1021x256xi32>
    %c4_i32 = arith.constant 4 : i32
    %26 = vector.broadcast %c4_i32 : i32 to vector<1021x256xi32>
    %27 = arith.muli %26, %25 : vector<1021x256xi32>
    %28 = arith.cmpi eq, %24, %27 : vector<1021x256xi32>
    %29 = arith.extui %28 : vector<1021x256xi1> to vector<1021x256xi32>
    %30 = arith.sitofp %29 : vector<1021x256xi32> to vector<1021x256xf32>
    %cst_7 = arith.constant dense<0.000000e+00> : vector<8x256xf32>
    %31 = tpu.matmul %23, %30, %cst_7 {dimension_numbers = #tpu.dot_dimension_numbers<[1], [0], [0], [1], [0, 0, 1, 1], [], []>} : vector<8x1021xf32>, vector<1021x256xf32>, vector<8x256xf32> -> vector<8x256xf32>
    %c0_8 = arith.constant 0 : index
    %c0_9 = arith.constant 0 : index
    %32 = vector.load %arg3[%c0_8, %c0_9] : memref<8x25xf32, #tpu.memory_space<vmem>>, vector<8x25xf32>
    %cst_10 = arith.constant 0.000000e+00 : f32
    %33 = vector.broadcast %cst_10 : f32 to vector<8x2xf32>
    %34 = tpu.concatenate %31, %33 in 1 : vector<8x256xf32>, vector<8x2xf32> -> vector<8x258xf32>
    %35 = vector.extract_strided_slice %32 {offsets = [0, 0], sizes = [8, 8], strides = [1, 1]} : vector<8x25xf32> to vector<8x8xf32>
    %36 = vector.extract_strided_slice %34 {offsets = [0, 0], sizes = [8, 256], strides = [1, 1]} : vector<8x258xf32> to vector<8x256xf32>
    %cst_11 = arith.constant dense<0.000000e+00> : vector<8x256xf32>
    %37 = tpu.matmul %35, %36, %cst_11 {dimension_numbers = #tpu.dot_dimension_numbers<[1], [0], [0], [1], [0, 0, 1, 1], [], []>} : vector<8x8xf32>, vector<8x256xf32>, vector<8x256xf32> -> vector<8x256xf32>
    %38 = vector.extract_strided_slice %32 {offsets = [0, 8], sizes = [8, 8], strides = [1, 1]} : vector<8x25xf32> to vector<8x8xf32>
    %39 = vector.extract_strided_slice %34 {offsets = [0, 1], sizes = [8, 256], strides = [1, 1]} : vector<8x258xf32> to vector<8x256xf32>
    %cst_12 = arith.constant dense<0.000000e+00> : vector<8x256xf32>
    %40 = tpu.matmul %38, %39, %cst_12 {dimension_numbers = #tpu.dot_dimension_numbers<[1], [0], [0], [1], [0, 0, 1, 1], [], []>} : vector<8x8xf32>, vector<8x256xf32>, vector<8x256xf32> -> vector<8x256xf32>
    %41 = arith.addf %37, %40 : vector<8x256xf32>
    %42 = vector.extract_strided_slice %32 {offsets = [0, 16], sizes = [8, 8], strides = [1, 1]} : vector<8x25xf32> to vector<8x8xf32>
    %43 = vector.extract_strided_slice %34 {offsets = [0, 2], sizes = [8, 256], strides = [1, 1]} : vector<8x258xf32> to vector<8x256xf32>
    %cst_13 = arith.constant dense<0.000000e+00> : vector<8x256xf32>
    %44 = tpu.matmul %42, %43, %cst_13 {dimension_numbers = #tpu.dot_dimension_numbers<[1], [0], [0], [1], [0, 0, 1, 1], [], []>} : vector<8x8xf32>, vector<8x256xf32>, vector<8x256xf32> -> vector<8x256xf32>
    %45 = arith.addf %41, %44 : vector<8x256xf32>
    %46 = vector.extract_strided_slice %32 {offsets = [0, 24], sizes = [8, 1], strides = [1, 1]} : vector<8x25xf32> to vector<8x1xf32>
    %47 = vector.broadcast %46 : vector<8x1xf32> to vector<8x256xf32>
    %48 = arith.addf %45, %47 : vector<8x256xf32>
    %cst_14 = arith.constant 0.000000e+00 : f32
    %49 = vector.broadcast %cst_14 : f32 to vector<8x256xf32>
    %50 = arith.maximumf %48, %49 : vector<8x256xf32>
    %51 = vector.extract_strided_slice %50 {offsets = [0, 0], sizes = [8, 253], strides = [1, 1]} : vector<8x256xf32> to vector<8x253xf32>
    %52 = vector.extract_strided_slice %50 {offsets = [0, 1], sizes = [8, 253], strides = [1, 1]} : vector<8x256xf32> to vector<8x253xf32>
    %53 = arith.maximumf %51, %52 : vector<8x253xf32>
    %54 = vector.extract_strided_slice %50 {offsets = [0, 2], sizes = [8, 253], strides = [1, 1]} : vector<8x256xf32> to vector<8x253xf32>
    %55 = vector.extract_strided_slice %50 {offsets = [0, 3], sizes = [8, 253], strides = [1, 1]} : vector<8x256xf32> to vector<8x253xf32>
    %56 = arith.maximumf %54, %55 : vector<8x253xf32>
    %57 = arith.maximumf %53, %56 : vector<8x253xf32>
    %58 = tpu.iota {dimensions = array<i32: 0>} : vector<253x64xi32>
    %59 = tpu.iota {dimensions = array<i32: 1>} : vector<253x64xi32>
    %c4_i32_15 = arith.constant 4 : i32
    %60 = vector.broadcast %c4_i32_15 : i32 to vector<253x64xi32>
    %61 = arith.muli %60, %59 : vector<253x64xi32>
    %62 = arith.cmpi eq, %58, %61 : vector<253x64xi32>
    %63 = arith.extui %62 : vector<253x64xi1> to vector<253x64xi32>
    %64 = arith.sitofp %63 : vector<253x64xi32> to vector<253x64xf32>
    %cst_16 = arith.constant dense<0.000000e+00> : vector<8x64xf32>
    %65 = tpu.matmul %57, %64, %cst_16 {dimension_numbers = #tpu.dot_dimension_numbers<[1], [0], [0], [1], [0, 0, 1, 1], [], []>} : vector<8x253xf32>, vector<253x64xf32>, vector<8x64xf32> -> vector<8x64xf32>
    %c0_17 = arith.constant 0 : index
    %c0_18 = arith.constant 0 : index
    %66 = vector.load %arg4[%c0_17, %c0_18] : memref<16x25xf32, #tpu.memory_space<vmem>>, vector<16x25xf32>
    %cst_19 = arith.constant 0.000000e+00 : f32
    %67 = vector.broadcast %cst_19 : f32 to vector<8x2xf32>
    %68 = tpu.concatenate %65, %67 in 1 : vector<8x64xf32>, vector<8x2xf32> -> vector<8x66xf32>
    %69 = vector.extract_strided_slice %66 {offsets = [0, 0], sizes = [16, 8], strides = [1, 1]} : vector<16x25xf32> to vector<16x8xf32>
    %70 = vector.extract_strided_slice %68 {offsets = [0, 0], sizes = [8, 64], strides = [1, 1]} : vector<8x66xf32> to vector<8x64xf32>
    %cst_20 = arith.constant dense<0.000000e+00> : vector<16x64xf32>
    %71 = tpu.matmul %69, %70, %cst_20 {dimension_numbers = #tpu.dot_dimension_numbers<[1], [0], [0], [1], [0, 0, 1, 1], [], []>} : vector<16x8xf32>, vector<8x64xf32>, vector<16x64xf32> -> vector<16x64xf32>
    %72 = vector.extract_strided_slice %66 {offsets = [0, 8], sizes = [16, 8], strides = [1, 1]} : vector<16x25xf32> to vector<16x8xf32>
    %73 = vector.extract_strided_slice %68 {offsets = [0, 1], sizes = [8, 64], strides = [1, 1]} : vector<8x66xf32> to vector<8x64xf32>
    %cst_21 = arith.constant dense<0.000000e+00> : vector<16x64xf32>
    %74 = tpu.matmul %72, %73, %cst_21 {dimension_numbers = #tpu.dot_dimension_numbers<[1], [0], [0], [1], [0, 0, 1, 1], [], []>} : vector<16x8xf32>, vector<8x64xf32>, vector<16x64xf32> -> vector<16x64xf32>
    %75 = arith.addf %71, %74 : vector<16x64xf32>
    %76 = vector.extract_strided_slice %66 {offsets = [0, 16], sizes = [16, 8], strides = [1, 1]} : vector<16x25xf32> to vector<16x8xf32>
    %77 = vector.extract_strided_slice %68 {offsets = [0, 2], sizes = [8, 64], strides = [1, 1]} : vector<8x66xf32> to vector<8x64xf32>
    %cst_22 = arith.constant dense<0.000000e+00> : vector<16x64xf32>
    %78 = tpu.matmul %76, %77, %cst_22 {dimension_numbers = #tpu.dot_dimension_numbers<[1], [0], [0], [1], [0, 0, 1, 1], [], []>} : vector<16x8xf32>, vector<8x64xf32>, vector<16x64xf32> -> vector<16x64xf32>
    %79 = arith.addf %75, %78 : vector<16x64xf32>
    %80 = vector.extract_strided_slice %66 {offsets = [0, 24], sizes = [16, 1], strides = [1, 1]} : vector<16x25xf32> to vector<16x1xf32>
    %81 = vector.broadcast %80 : vector<16x1xf32> to vector<16x64xf32>
    %82 = arith.addf %79, %81 : vector<16x64xf32>
    %cst_23 = arith.constant 0.000000e+00 : f32
    %83 = vector.broadcast %cst_23 : f32 to vector<16x64xf32>
    %84 = arith.maximumf %82, %83 : vector<16x64xf32>
    %85 = vector.extract_strided_slice %84 {offsets = [0, 0], sizes = [16, 61], strides = [1, 1]} : vector<16x64xf32> to vector<16x61xf32>
    %86 = vector.extract_strided_slice %84 {offsets = [0, 1], sizes = [16, 61], strides = [1, 1]} : vector<16x64xf32> to vector<16x61xf32>
    %87 = arith.maximumf %85, %86 : vector<16x61xf32>
    %88 = vector.extract_strided_slice %84 {offsets = [0, 2], sizes = [16, 61], strides = [1, 1]} : vector<16x64xf32> to vector<16x61xf32>
    %89 = vector.extract_strided_slice %84 {offsets = [0, 3], sizes = [16, 61], strides = [1, 1]} : vector<16x64xf32> to vector<16x61xf32>
    %90 = arith.maximumf %88, %89 : vector<16x61xf32>
    %91 = arith.maximumf %87, %90 : vector<16x61xf32>
    %92 = tpu.iota {dimensions = array<i32: 0>} : vector<61x16xi32>
    %93 = tpu.iota {dimensions = array<i32: 1>} : vector<61x16xi32>
    %c4_i32_24 = arith.constant 4 : i32
    %94 = vector.broadcast %c4_i32_24 : i32 to vector<61x16xi32>
    %95 = arith.muli %94, %93 : vector<61x16xi32>
    %96 = arith.cmpi eq, %92, %95 : vector<61x16xi32>
    %97 = arith.extui %96 : vector<61x16xi1> to vector<61x16xi32>
    %98 = arith.sitofp %97 : vector<61x16xi32> to vector<61x16xf32>
    %cst_25 = arith.constant dense<0.000000e+00> : vector<16x16xf32>
    %99 = tpu.matmul %91, %98, %cst_25 {dimension_numbers = #tpu.dot_dimension_numbers<[1], [0], [0], [1], [0, 0, 1, 1], [], []>} : vector<16x61xf32>, vector<61x16xf32>, vector<16x16xf32> -> vector<16x16xf32>
    %c0_26 = arith.constant 0 : index
    %c0_27 = arith.constant 0 : index
    %100 = vector.load %arg5[%c0_26, %c0_27] : memref<16x49xf32, #tpu.memory_space<vmem>>, vector<16x49xf32>
    %cst_28 = arith.constant 0.000000e+00 : f32
    %101 = vector.broadcast %cst_28 : f32 to vector<16x2xf32>
    %102 = tpu.concatenate %99, %101 in 1 : vector<16x16xf32>, vector<16x2xf32> -> vector<16x18xf32>
    %103 = vector.extract_strided_slice %100 {offsets = [0, 0], sizes = [16, 16], strides = [1, 1]} : vector<16x49xf32> to vector<16x16xf32>
    %104 = vector.extract_strided_slice %102 {offsets = [0, 0], sizes = [16, 16], strides = [1, 1]} : vector<16x18xf32> to vector<16x16xf32>
    %cst_29 = arith.constant dense<0.000000e+00> : vector<16x16xf32>
    %105 = tpu.matmul %103, %104, %cst_29 {dimension_numbers = #tpu.dot_dimension_numbers<[1], [0], [0], [1], [0, 0, 1, 1], [], []>} : vector<16x16xf32>, vector<16x16xf32>, vector<16x16xf32> -> vector<16x16xf32>
    %106 = vector.extract_strided_slice %100 {offsets = [0, 16], sizes = [16, 16], strides = [1, 1]} : vector<16x49xf32> to vector<16x16xf32>
    %107 = vector.extract_strided_slice %102 {offsets = [0, 1], sizes = [16, 16], strides = [1, 1]} : vector<16x18xf32> to vector<16x16xf32>
    %cst_30 = arith.constant dense<0.000000e+00> : vector<16x16xf32>
    %108 = tpu.matmul %106, %107, %cst_30 {dimension_numbers = #tpu.dot_dimension_numbers<[1], [0], [0], [1], [0, 0, 1, 1], [], []>} : vector<16x16xf32>, vector<16x16xf32>, vector<16x16xf32> -> vector<16x16xf32>
    %109 = arith.addf %105, %108 : vector<16x16xf32>
    %110 = vector.extract_strided_slice %100 {offsets = [0, 32], sizes = [16, 16], strides = [1, 1]} : vector<16x49xf32> to vector<16x16xf32>
    %111 = vector.extract_strided_slice %102 {offsets = [0, 2], sizes = [16, 16], strides = [1, 1]} : vector<16x18xf32> to vector<16x16xf32>
    %cst_31 = arith.constant dense<0.000000e+00> : vector<16x16xf32>
    %112 = tpu.matmul %110, %111, %cst_31 {dimension_numbers = #tpu.dot_dimension_numbers<[1], [0], [0], [1], [0, 0, 1, 1], [], []>} : vector<16x16xf32>, vector<16x16xf32>, vector<16x16xf32> -> vector<16x16xf32>
    %113 = arith.addf %109, %112 : vector<16x16xf32>
    %114 = vector.extract_strided_slice %100 {offsets = [0, 48], sizes = [16, 1], strides = [1, 1]} : vector<16x49xf32> to vector<16x1xf32>
    %115 = vector.broadcast %114 : vector<16x1xf32> to vector<16x16xf32>
    %116 = arith.addf %113, %115 : vector<16x16xf32>
    %cst_32 = arith.constant 0.000000e+00 : f32
    %117 = vector.broadcast %cst_32 : f32 to vector<16x16xf32>
    %118 = arith.maximumf %116, %117 : vector<16x16xf32>
    %119 = vector.extract_strided_slice %118 {offsets = [0, 0], sizes = [16, 13], strides = [1, 1]} : vector<16x16xf32> to vector<16x13xf32>
    %120 = vector.extract_strided_slice %118 {offsets = [0, 1], sizes = [16, 13], strides = [1, 1]} : vector<16x16xf32> to vector<16x13xf32>
    %121 = arith.maximumf %119, %120 : vector<16x13xf32>
    %122 = vector.extract_strided_slice %118 {offsets = [0, 2], sizes = [16, 13], strides = [1, 1]} : vector<16x16xf32> to vector<16x13xf32>
    %123 = vector.extract_strided_slice %118 {offsets = [0, 3], sizes = [16, 13], strides = [1, 1]} : vector<16x16xf32> to vector<16x13xf32>
    %124 = arith.maximumf %122, %123 : vector<16x13xf32>
    %125 = arith.maximumf %121, %124 : vector<16x13xf32>
    %126 = tpu.iota {dimensions = array<i32: 0>} : vector<13x4xi32>
    %127 = tpu.iota {dimensions = array<i32: 1>} : vector<13x4xi32>
    %c4_i32_33 = arith.constant 4 : i32
    %128 = vector.broadcast %c4_i32_33 : i32 to vector<13x4xi32>
    %129 = arith.muli %128, %127 : vector<13x4xi32>
    %130 = arith.cmpi eq, %126, %129 : vector<13x4xi32>
    %131 = arith.extui %130 : vector<13x4xi1> to vector<13x4xi32>
    %132 = arith.sitofp %131 : vector<13x4xi32> to vector<13x4xf32>
    %cst_34 = arith.constant dense<0.000000e+00> : vector<16x4xf32>
    %133 = tpu.matmul %125, %132, %cst_34 {dimension_numbers = #tpu.dot_dimension_numbers<[1], [0], [0], [1], [0, 0, 1, 1], [], []>} : vector<16x13xf32>, vector<13x4xf32>, vector<16x4xf32> -> vector<16x4xf32>
    %134 = vector.extract_strided_slice %133 {offsets = [0, 0], sizes = [16, 2], strides = [1, 1]} : vector<16x4xf32> to vector<16x2xf32>
    %135 = vector.extract_strided_slice %133 {offsets = [0, 1], sizes = [16, 2], strides = [1, 1]} : vector<16x4xf32> to vector<16x2xf32>
    %136 = arith.addf %134, %135 : vector<16x2xf32>
    %137 = vector.extract_strided_slice %133 {offsets = [0, 2], sizes = [16, 2], strides = [1, 1]} : vector<16x4xf32> to vector<16x2xf32>
    %138 = arith.addf %136, %137 : vector<16x2xf32>
    %139 = tpu.iota {dimensions = array<i32: 0>} : vector<1x1xi32>
    %140 = tpu.iota {dimensions = array<i32: 1>} : vector<1x1xi32>
    %c4_i32_35 = arith.constant 4 : i32
    %141 = vector.broadcast %c4_i32_35 : i32 to vector<1x1xi32>
    %142 = arith.muli %141, %140 : vector<1x1xi32>
    %143 = arith.cmpi eq, %139, %142 : vector<1x1xi32>
    %144 = arith.extui %143 : vector<1x1xi1> to vector<1x1xi32>
    %145 = arith.sitofp %144 : vector<1x1xi32> to vector<1x1xf32>
    %146 = vector.extract_strided_slice %138 {offsets = [0, 0], sizes = [16, 1], strides = [1, 1]} : vector<16x2xf32> to vector<16x1xf32>
    %cst_36 = arith.constant dense<0.000000e+00> : vector<16x1xf32>
    %147 = tpu.matmul %146, %145, %cst_36 {dimension_numbers = #tpu.dot_dimension_numbers<[1], [0], [0], [1], [0, 0, 1, 1], [], []>} : vector<16x1xf32>, vector<1x1xf32>, vector<16x1xf32> -> vector<16x1xf32>
    %cst_37 = arith.constant 0.333333343 : f32
    %148 = vector.broadcast %cst_37 : f32 to vector<16x1xf32>
    %149 = arith.mulf %147, %148 : vector<16x1xf32>
    %c0_38 = arith.constant 0 : index
    %c0_39 = arith.constant 0 : index
    %150 = vector.load %arg6[%c0_38, %c0_39] : memref<10x17xf32, #tpu.memory_space<vmem>>, vector<10x17xf32>
    %151 = vector.extract_strided_slice %150 {offsets = [0, 0], sizes = [10, 16], strides = [1, 1]} : vector<10x17xf32> to vector<10x16xf32>
    %cst_40 = arith.constant dense<0.000000e+00> : vector<10x1xf32>
    %152 = tpu.matmul %151, %149, %cst_40 {dimension_numbers = #tpu.dot_dimension_numbers<[1], [0], [0], [1], [0, 0, 1, 1], [], []>} : vector<10x16xf32>, vector<16x1xf32>, vector<10x1xf32> -> vector<10x1xf32>
    %153 = vector.extract_strided_slice %150 {offsets = [0, 16], sizes = [10, 1], strides = [1, 1]} : vector<10x17xf32> to vector<10x1xf32>
    %154 = arith.addf %152, %153 : vector<10x1xf32>
    %cst_41 = arith.constant dense<0xFF800000> : vector<1xf32>
    %155 = vector.multi_reduction <maximumf>, %154, %cst_41 [0] : vector<10x1xf32> to vector<1xf32>
    %156 = vector.shape_cast %155 : vector<1xf32> to vector<1x1xf32>
    %157 = vector.broadcast %156 : vector<1x1xf32> to vector<10x1xf32>
    %158 = arith.subf %154, %157 : vector<10x1xf32>
    %159 = math.exp %158 : vector<10x1xf32>
    %cst_42 = arith.constant dense<0.000000e+00> : vector<1xf32>
    %160 = vector.multi_reduction <add>, %159, %cst_42 [0] : vector<10x1xf32> to vector<1xf32>
    %161 = vector.shape_cast %160 : vector<1xf32> to vector<1x1xf32>
    %162 = math.log %161 : vector<1x1xf32>
    %163 = vector.broadcast %162 : vector<1x1xf32> to vector<10x1xf32>
    %164 = arith.subf %158, %163 : vector<10x1xf32>
    %c0_43 = arith.constant 0 : index
    %c0_44 = arith.constant 0 : index
    %c0_45 = arith.constant 0 : index
    %165 = vector.load %arg7[%c0_43, %c0_44, %c0_45] : memref<1x10x1xf32, #tpu.memory_space<vmem>>, vector<1x10x1xf32>
    %166 = vector.shape_cast %165 : vector<1x10x1xf32> to vector<10x1xf32>
    %167 = vector.shape_cast %164 : vector<10x1xf32> to vector<1x10x1xf32>
    tpu.vector_store %arg7[%c0_43, %c0_44, %c0_45], %167 {strides = array<i32>} : memref<1x10x1xf32, #tpu.memory_space<vmem>>, vector<1x10x1xf32>,
    return
  }
  func.func @transform_0(%arg0: i32) -> (i32, i32, i32) {
    %c0_i32 = arith.constant 0 : i32
    %c0_i32_0 = arith.constant 0 : i32
    %c0_i32_1 = arith.constant 0 : i32
    return %arg0, %c0_i32, %c0_i32_0 : i32, i32, i32
  }
  func.func @transform_1(%arg0: i32) -> (i32, i32) {
    %c0_i32 = arith.constant 0 : i32
    %c0_i32_0 = arith.constant 0 : i32
    %c0_i32_1 = arith.constant 0 : i32
    return %c0_i32, %c0_i32_0 : i32, i32
  }
  func.func @transform_2(%arg0: i32) -> (i32, i32) {
    %c0_i32 = arith.constant 0 : i32
    %c0_i32_0 = arith.constant 0 : i32
    %c0_i32_1 = arith.constant 0 : i32
    return %c0_i32, %c0_i32_0 : i32, i32
  }
  func.func @transform_3(%arg0: i32) -> (i32, i32) {
    %c0_i32 = arith.constant 0 : i32
    %c0_i32_0 = arith.constant 0 : i32
    %c0_i32_1 = arith.constant 0 : i32
    return %c0_i32, %c0_i32_0 : i32, i32
  }
  func.func @transform_4(%arg0: i32) -> (i32, i32) {
    %c0_i32 = arith.constant 0 : i32
    %c0_i32_0 = arith.constant 0 : i32
    %c0_i32_1 = arith.constant 0 : i32
    return %c0_i32, %c0_i32_0 : i32, i32
  }
  func.func @transform_5(%arg0: i32) -> (i32, i32) {
    %c0_i32 = arith.constant 0 : i32
    %c0_i32_0 = arith.constant 0 : i32
    %c0_i32_1 = arith.constant 0 : i32
    return %c0_i32, %c0_i32_0 : i32, i32
  }
  func.func @transform_6(%arg0: i32) -> (i32, i32, i32) {
    %c0_i32 = arith.constant 0 : i32
    %c0_i32_0 = arith.constant 0 : i32
    %c0_i32_1 = arith.constant 0 : i32
    return %arg0, %c0_i32, %c0_i32_0 : i32, i32, i32
  }
}

</mosaic_0001>

<llo_original>
// kernel: tpu_custom_call.1
$region0: #{tpu_custom_call.1}
  #allocation0 [shape = 'u32[]', space=smem, size = 0x4, offset = 0x4, fixed_abs, tag = 'smem constant byte address 0x4 - core index']
  #allocation1 [shape = 'u32[144,128]{1,0:T(1,128)}', space=vmem, size = 0x12000, scoped, tag = 'internal scratch']
  %s0 = inlined_call_operand.hbm [shape: f32[8,4,1024], index: 0, kind: input, shape index: {}]
  %s1 = inlined_call_operand.hbm [shape: f32[8,9], index: 1, kind: input, shape index: {}]
  %s2 = inlined_call_operand.hbm [shape: f32[8,25], index: 2, kind: input, shape index: {}]
  %s3 = inlined_call_operand.hbm [shape: f32[16,25], index: 3, kind: input, shape index: {}]
  %s4 = inlined_call_operand.hbm [shape: f32[16,49], index: 4, kind: input, shape index: {}]
  %s5 = inlined_call_operand.hbm [shape: f32[10,17], index: 5, kind: input, shape index: {}]
  %s6 = inlined_call_operand.vmem [shape: f32[8,10,1], index: 6, kind: output, shape index: {}]
  %s7 = sld [smem:[#allocation0]]
  $region81: #{tpu_custom_call.1} parent=0
    _
  %s9 = ssub.s32 1, %s7
  %s10 = scalar_select 0, %s9, %s7
  $region1: #{tpu_custom_call.1} parent=0
    #allocation2 [shape = 'u8[32768]{0}', space=vmem, size = 0x8000, scoped, tag = 'input window, operand 0']
    #allocation3 [shape = 's32[2]{0}', space=sflag, size = 0x8, scoped, tag = 'scoped memory for tpu_custom_call.1']
    #allocation4 [shape = 'u8[4096]{0}', space=vmem, size = 0x1000, scoped, tag = 'input window, operand 1, single buffered']
    #allocation5 [shape = 's32[1]{0}', space=sflag, size = 0x4, scoped, tag = 'scoped memory for tpu_custom_call.1']
    #allocation6 [shape = 'u8[4096]{0}', space=vmem, size = 0x1000, scoped, tag = 'input window, operand 2, single buffered']
    #allocation7 [shape = 'u8[8192]{0}', space=vmem, size = 0x2000, scoped, tag = 'input window, operand 3, single buffered']
    #allocation8 [shape = 's32[1]{0}', space=sflag, size = 0x4, scoped, tag = 'scoped memory for tpu_custom_call.1']
    #allocation9 [shape = 'u8[8192]{0}', space=vmem, size = 0x2000, scoped, tag = 'input window, operand 4, single buffered']
    #allocation10 [shape = 'u8[8192]{0}', space=vmem, size = 0x2000, scoped, tag = 'input window, operand 5, single buffered']
    #allocation11 [shape = 's32[1]{0}', space=sflag, size = 0x4, scoped, tag = 'scoped memory for tpu_custom_call.1']
    %11 = vsyncpa [#allocation3], 0
    %s12 = scalar_lea.sflag [#allocation3], 1
    %13 = vsyncpa %s12, 0
    %14 = vsyncpa [#allocation5], 0
    %15 = vsyncpa [#allocation8], 0
    %16 = vsyncpa [#allocation11], 0
    loop: start=0, step=1, limit=10
    $region2: #{tpu_custom_call.1} parent=1 // loop_pre_header
      _
    $region3: #{tpu_custom_call.1} parent=1 // loop_header
      %s18 = sphi 0, %s22
      %p19 = scmp.ge.s32.totalorder %s18, 10
      %s28 = sphi 0, %s30
      %s31 = sphi 0, %s28
      %s32 = sphi 0, %s31
      %s48 = sphi 0, %s32
      %s52 = sphi 0, %s52
      %s54 = sphi 0, %s52
      %s55 = sphi 0, %s54
      %s69 = sphi 0, %s55
      %s73 = sphi 0, %s73
      %s75 = sphi 0, %s73
      %s76 = sphi 0, %s75
      %s90 = sphi 0, %s76
      %s94 = sphi 0, %s94
      %s96 = sphi 0, %s94
      %s97 = sphi 0, %s96
      %s111 = sphi 0, %s97
      %s115 = sphi 0, %s115
      %s117 = sphi 0, %s115
      %s118 = sphi 0, %s117
      %s132 = sphi 0, %s118
      %s136 = sphi 0, %s136
      %s138 = sphi 0, %s136
      %s139 = sphi 0, %s138
      %s153 = sphi 0, %s139
      %s159 = sphi 0, %s161
      %s162 = sphi 0, %s159
      %s163 = sphi 0, %s162
      %s179 = sphi 0, %s163
    $region4: #{tpu_custom_call.1} parent=1 // loop_header_branch
      %21 = sbr.rel (%p19) target = $region8
    $region5: #{tpu_custom_call.1} parent=1 // loop_body
      %s23 = ssub.s32 %s18, 1
      %s24 = ssub.s32 %s18, 2
      %s25 = sadd.s32 %s18, 1
      %s26 = ssub.s32 %s18, %s25
      %p27 = scmp.eq.s32.totalorder %s26, 0
      %s29 = sadd.s32 %s28, 1
      %s30 = scalar_select %p27, %s28, %s29
      %p33 = pneg %p27
      %p34 = scmp.eq.s32.totalorder %s18, 7
      %p35 = por %p33, %p34
      %p36 = scmp.ne.s32.totalorder %s28, %s31
      %p37 = scmp.eq.s32.totalorder %s18, 0
      %p38 = por %p36, %p37
      %p39 = scmp.ne.s32.totalorder %s28, %s31
      %p40 = scmp.eq.s32.totalorder %s23, 7
      %p41 = por %p39, %p40
      %p42 = scmp.ne.s32.totalorder %s31, %s32
      %p43 = scmp.eq.s32.totalorder %s23, 0
      %p44 = por %p42, %p43
      %p45 = scmp.ne.s32.totalorder %s31, %s32
      %p46 = scmp.eq.s32.totalorder %s24, 7
      %p47 = por %p45, %p46
      %p49 = scmp.ne.s32.totalorder %s32, %s48
      %p50 = scmp.eq.s32.totalorder %s24, 0
      %p51 = por %p49, %p50
      %s53 = sadd.s32 %s52, 1
      %p56 = scmp.eq.s32.totalorder %s18, 7
      %p57 = scmp.ne.s32.totalorder %s52, %s54
      %p58 = scmp.eq.s32.totalorder %s18, 0
      %p59 = por %p57, %p58
      %p60 = scmp.ne.s32.totalorder %s52, %s54
      %p61 = scmp.eq.s32.totalorder %s23, 7
      %p62 = por %p60, %p61
      %p63 = scmp.ne.s32.totalorder %s54, %s55
      %p64 = scmp.eq.s32.totalorder %s23, 0
      %p65 = por %p63, %p64
      %p66 = scmp.ne.s32.totalorder %s54, %s55
      %p67 = scmp.eq.s32.totalorder %s24, 7
      %p68 = por %p66, %p67
      %p70 = scmp.ne.s32.totalorder %s55, %s69
      %p71 = scmp.eq.s32.totalorder %s24, 0
      %p72 = por %p70, %p71
      %s74 = sadd.s32 %s73, 1
      %p77 = scmp.eq.s32.totalorder %s18, 7
      %p78 = scmp.ne.s32.totalorder %s73, %s75
      %p79 = scmp.eq.s32.totalorder %s18, 0
      %p80 = por %p78, %p79
      %p81 = scmp.ne.s32.totalorder %s73, %s75
      %p82 = scmp.eq.s32.totalorder %s23, 7
      %p83 = por %p81, %p82
      %p84 = scmp.ne.s32.totalorder %s75, %s76
      %p85 = scmp.eq.s32.totalorder %s23, 0
      %p86 = por %p84, %p85
      %p87 = scmp.ne.s32.totalorder %s75, %s76
      %p88 = scmp.eq.s32.totalorder %s24, 7
      %p89 = por %p87, %p88
      %p91 = scmp.ne.s32.totalorder %s76, %s90
      %p92 = scmp.eq.s32.totalorder %s24, 0
      %p93 = por %p91, %p92
      %s95 = sadd.s32 %s94, 1
      %p98 = scmp.eq.s32.totalorder %s18, 7
      %p99 = scmp.ne.s32.totalorder %s94, %s96
      %p100 = scmp.eq.s32.totalorder %s18, 0
      %p101 = por %p99, %p100
      %p102 = scmp.ne.s32.totalorder %s94, %s96
      %p103 = scmp.eq.s32.totalorder %s23, 7
      %p104 = por %p102, %p103
      %p105 = scmp.ne.s32.totalorder %s96, %s97
      %p106 = scmp.eq.s32.totalorder %s23, 0
      %p107 = por %p105, %p106
      %p108 = scmp.ne.s32.totalorder %s96, %s97
      %p109 = scmp.eq.s32.totalorder %s24, 7
      %p110 = por %p108, %p109
      %p112 = scmp.ne.s32.totalorder %s97, %s111
      %p113 = scmp.eq.s32.totalorder %s24, 0
      %p114 = por %p112, %p113
      %s116 = sadd.s32 %s115, 1
      %p119 = scmp.eq.s32.totalorder %s18, 7
      %p120 = scmp.ne.s32.totalorder %s115, %s117
      %p121 = scmp.eq.s32.totalorder %s18, 0
      %p122 = por %p120, %p121
      %p123 = scmp.ne.s32.totalorder %s115, %s117
      %p124 = scmp.eq.s32.totalorder %s23, 7
      %p125 = por %p123, %p124
      %p126 = scmp.ne.s32.totalorder %s117, %s118
      %p127 = scmp.eq.s32.totalorder %s23, 0
      %p128 = por %p126, %p127
      %p129 = scmp.ne.s32.totalorder %s117, %s118
      %p130 = scmp.eq.s32.totalorder %s24, 7
      %p131 = por %p129, %p130
      %p133 = scmp.ne.s32.totalorder %s118, %s132
      %p134 = scmp.eq.s32.totalorder %s24, 0
      %p135 = por %p133, %p134
      %s137 = sadd.s32 %s136, 1
      %p140 = scmp.eq.s32.totalorder %s18, 7
      %p141 = scmp.ne.s32.totalorder %s136, %s138
      %p142 = scmp.eq.s32.totalorder %s18, 0
      %p143 = por %p141, %p142
      %p144 = scmp.ne.s32.totalorder %s136, %s138
      %p145 = scmp.eq.s32.totalorder %s23, 7
      %p146 = por %p144, %p145
      %p147 = scmp.ne.s32.totalorder %s138, %s139
      %p148 = scmp.eq.s32.totalorder %s23, 0
      %p149 = por %p147, %p148
      %p150 = scmp.ne.s32.totalorder %s138, %s139
      %p151 = scmp.eq.s32.totalorder %s24, 7
      %p152 = por %p150, %p151
      %p154 = scmp.ne.s32.totalorder %s139, %s153
      %p155 = scmp.eq.s32.totalorder %s24, 0
      %p156 = por %p154, %p155
      %s157 = ssub.s32 %s18, %s25
      %p158 = scmp.eq.s32.totalorder %s157, 0
      %s160 = sadd.s32 %s159, 1
      %s161 = scalar_select %p158, %s159, %s160
      %p164 = pneg %p158
      %p165 = scmp.eq.s32.totalorder %s18, 7
      %p166 = por %p164, %p165
      %p167 = scmp.ne.s32.totalorder %s159, %s162
      %p168 = scmp.eq.s32.totalorder %s18, 0
      %p169 = por %p167, %p168
      %p170 = scmp.ne.s32.totalorder %s159, %s162
      %p171 = scmp.eq.s32.totalorder %s23, 7
      %p172 = por %p170, %p171
      %p173 = scmp.ne.s32.totalorder %s162, %s163
      %p174 = scmp.eq.s32.totalorder %s23, 0
      %p175 = por %p173, %p174
      %p176 = scmp.ne.s32.totalorder %s162, %s163
      %p177 = scmp.eq.s32.totalorder %s24, 7
      %p178 = por %p176, %p177
      %p180 = scmp.ne.s32.totalorder %s163, %s179
      %p181 = scmp.eq.s32.totalorder %s24, 0
      %p182 = por %p180, %p181
      %p183 = scmp.le.s32.totalorder 1, %s18
      %p184 = scmp.lt.s32.totalorder %s18, 9
      %p185 = pnand %p183, %p184
      %p186 = pneg %p185
      // Predicated region
      $region9: #{tpu_custom_call.1} parent=5 // pred_check
        _
      $region10: #{tpu_custom_call.1} parent=5 // pred_check_branch
        %188 = sbr.rel (%p185) target = $region12
      $region11: #{tpu_custom_call.1} parent=5 // pred_region
        %s189 = ssub.s32 %s18, 1
        // Predicated region
        $region13: #{tpu_custom_call.1} parent=11 // pred_check
          %p190 = pneg %p65
        $region14: #{tpu_custom_call.1} parent=11 // pred_check_branch
          %192 = sbr.rel (%p190) target = $region16
        $region15: #{tpu_custom_call.1} parent=11 // pred_region
          %s194 = ssub.s32 128, 128
          %195 = vsyncadd [#allocation5], %s194
          %s197 = sshll.u32 [#allocation4], 4
          %s198 = int_to_ptr.vmem [resolvable:$true] %s197
          %200 = dma.hbm_to_vmem [thread:$0]  %s1, 128, %s198, [#allocation5]
        $region16: #{tpu_custom_call.1} parent=11 // pred_fallthru
          _
        // Predicated region
        $region17: #{tpu_custom_call.1} parent=11 // pred_check
          %p201 = pneg %p86
        $region18: #{tpu_custom_call.1} parent=11 // pred_check_branch
          %203 = sbr.rel (%p201) target = $region20
        $region19: #{tpu_custom_call.1} parent=11 // pred_region
          %s205 = ssub.s32 128, 128
          %206 = vsyncadd [#allocation5], %s205
          %s208 = sshll.u32 [#allocation6], 4
          %s209 = int_to_ptr.vmem [resolvable:$true] %s208
          %211 = dma.hbm_to_vmem [thread:$0]  %s2, 128, %s209, [#allocation5]
        $region20: #{tpu_custom_call.1} parent=11 // pred_fallthru
          _
        // Predicated region
        $region21: #{tpu_custom_call.1} parent=11 // pred_check
          %p212 = pneg %p107
        $region22: #{tpu_custom_call.1} parent=11 // pred_check_branch
          %214 = sbr.rel (%p212) target = $region24
        $region23: #{tpu_custom_call.1} parent=11 // pred_region
          %s216 = ssub.s32 256, 256
          %217 = vsyncadd [#allocation8], %s216
          %s218 = sshll.u32 [#allocation7], 4
          %s219 = int_to_ptr.vmem [resolvable:$true] %s218
          %224 = dma.hbm_to_vmem [thread:$0]  %s3, 256, %s219, [#allocation8], 128, 128, 8
        $region24: #{tpu_custom_call.1} parent=11 // pred_fallthru
          _
        // Predicated region
        $region25: #{tpu_custom_call.1} parent=11 // pred_check
          %p225 = pneg %p128
        $region26: #{tpu_custom_call.1} parent=11 // pred_check_branch
          %227 = sbr.rel (%p225) target = $region28
        $region27: #{tpu_custom_call.1} parent=11 // pred_region
          %s229 = ssub.s32 256, 256
          %230 = vsyncadd [#allocation8], %s229
          %s231 = sshll.u32 [#allocation9], 4
          %s232 = int_to_ptr.vmem [resolvable:$true] %s231
          %237 = dma.hbm_to_vmem [thread:$0]  %s4, 256, %s232, [#allocation8], 128, 128, 8
        $region28: #{tpu_custom_call.1} parent=11 // pred_fallthru
          _
        // Predicated region
        $region29: #{tpu_custom_call.1} parent=11 // pred_check
          %p238 = pneg %p149
        $region30: #{tpu_custom_call.1} parent=11 // pred_check_branch
          %240 = sbr.rel (%p238) target = $region32
        $region31: #{tpu_custom_call.1} parent=11 // pred_region
          %s242 = ssub.s32 256, 256
          %243 = vsyncadd [#allocation11], %s242
          %s244 = sshll.u32 [#allocation10], 4
          %s245 = int_to_ptr.vmem [resolvable:$true] %s244
          %250 = dma.hbm_to_vmem [thread:$0]  %s5, 256, %s245, [#allocation11], 128, 128, 8
        $region32: #{tpu_custom_call.1} parent=11 // pred_fallthru
          _
      $region12: #{tpu_custom_call.1} parent=5 // pred_fallthru
        _
      %p251 = scmp.lt.s32.totalorder %s18, 8
      // Predicated region
      $region33: #{tpu_custom_call.1} parent=5 // pred_check
        %p252 = pneg %p251
      $region34: #{tpu_custom_call.1} parent=5 // pred_check_branch
        %254 = sbr.rel (%p252) target = $region36
      $region35: #{tpu_custom_call.1} parent=5 // pred_region
        // Predicated region
        $region37: #{tpu_custom_call.1} parent=35 // pred_check
          %p255 = pneg %p38
        $region38: #{tpu_custom_call.1} parent=35 // pred_check_branch
          %257 = sbr.rel (%p255) target = $region40
        $region39: #{tpu_custom_call.1} parent=35 // pred_region
          %s258 = sand.u32 %s28, 1
          %s259 = scalar_lea.sflag [#allocation3], %s258
          %s260 = sand.u32 %s28, 1
          %s261 = smul.addr %s260, 32
          %s262 = scalar_lea.vmem [#allocation2], %s261
          %s264 = ssub.s32 512, 512
          %265 = vsyncadd %s259, %s264
          %s266 = smul.addr %s18, 8
          %s267 = smul.addr %s266, 64
          %s268 = scalar_lea.hbm %s0, %s267
          %s270 = sshll.u32 %s262, 4
          %s271 = int_to_ptr.vmem [resolvable:$true] %s270
          %273 = dma.hbm_to_vmem [thread:$0]  %s268, 512, %s271, %s259
        $region40: #{tpu_custom_call.1} parent=35 // pred_fallthru
          _
      $region36: #{tpu_custom_call.1} parent=5 // pred_fallthru
        _
      %p274 = scmp.le.s32.totalorder 1, %s18
      %p275 = scmp.lt.s32.totalorder %s18, 9
      %p276 = pnand %p274, %p275
      %p277 = pneg %p276
      // Predicated region
      $region41: #{tpu_custom_call.1} parent=5 // pred_check
        _
      $region42: #{tpu_custom_call.1} parent=5 // pred_check_branch
        %279 = sbr.rel (%p276) target = $region44
      $region43: #{tpu_custom_call.1} parent=5 // pred_region
        %s280 = ssub.s32 %s18, 1
        %s281 = sand.u32 %s31, 1
        %s282 = scalar_lea.sflag [#allocation3], %s281
        %s283 = sand.u32 %s31, 1
        %s284 = smul.addr %s283, 32
        %s285 = scalar_lea.vmem [#allocation2], %s284
        // Predicated region
        $region45: #{tpu_custom_call.1} parent=43 // pred_check
          %p286 = pneg %p44
        $region46: #{tpu_custom_call.1} parent=43 // pred_check_branch
          %288 = sbr.rel (%p286) target = $region48
        $region47: #{tpu_custom_call.1} parent=43 // pred_region
          %289 = dma.done %s282, 512
        $region48: #{tpu_custom_call.1} parent=43 // pred_fallthru
          _
        // Predicated region
        $region49: #{tpu_custom_call.1} parent=43 // pred_check
          %p290 = pneg %p65
        $region50: #{tpu_custom_call.1} parent=43 // pred_check_branch
          %292 = sbr.rel (%p290) target = $region52
        $region51: #{tpu_custom_call.1} parent=43 // pred_region
          %293 = dma.done [#allocation5], 128
        $region52: #{tpu_custom_call.1} parent=43 // pred_fallthru
          _
        // Predicated region
        $region53: #{tpu_custom_call.1} parent=43 // pred_check
          %p294 = pneg %p86
        $region54: #{tpu_custom_call.1} parent=43 // pred_check_branch
          %296 = sbr.rel (%p294) target = $region56
        $region55: #{tpu_custom_call.1} parent=43 // pred_region
          %297 = dma.done [#allocation5], 128
        $region56: #{tpu_custom_call.1} parent=43 // pred_fallthru
          _
        // Predicated region
        $region57: #{tpu_custom_call.1} parent=43 // pred_check
          %p298 = pneg %p107
        $region58: #{tpu_custom_call.1} parent=43 // pred_check_branch
          %300 = sbr.rel (%p298) target = $region60
        $region59: #{tpu_custom_call.1} parent=43 // pred_region
          %301 = dma.done [#allocation8], 256
        $region60: #{tpu_custom_call.1} parent=43 // pred_fallthru
          _
        // Predicated region
        $region61: #{tpu_custom_call.1} parent=43 // pred_check
          %p302 = pneg %p128
        $region62: #{tpu_custom_call.1} parent=43 // pred_check_branch
          %304 = sbr.rel (%p302) target = $region64
        $region63: #{tpu_custom_call.1} parent=43 // pred_region
          %305 = dma.done [#allocation8], 256
        $region64: #{tpu_custom_call.1} parent=43 // pred_fallthru
          _
        // Predicated region
        $region65: #{tpu_custom_call.1} parent=43 // pred_check
          %p306 = pneg %p149
        $region66: #{tpu_custom_call.1} parent=43 // pred_check_branch
          %308 = sbr.rel (%p306) target = $region68
        $region67: #{tpu_custom_call.1} parent=43 // pred_region
          %309 = dma.done [#allocation11], 256
        $region68: #{tpu_custom_call.1} parent=43 // pred_fallthru
          _
        %s310 = sand.u32 %s31, 1
        %s311 = scalar_lea.sflag [#allocation3], %s310
        %s312 = sand.u32 %s31, 1
        %s313 = smul.addr %s312, 32
        %s314 = scalar_lea.vmem [#allocation2], %s313
        %p315 = pneg %p44
        %p316 = pneg %p41
        %p317 = pneg %p65
        %p318 = pneg %p62
        %p319 = pneg %p86
        %p320 = pneg %p83
        %p321 = pneg %p107
        %p322 = pneg %p104
        %p323 = pneg %p128
        %p324 = pneg %p125
        %p325 = pneg %p149
        %p326 = pneg %p146
        %p327 = pneg %p175
        %p328 = pneg %p172
        %p329 = scmp.lt.s32.totalorder %s23, 7
        %s330 = scalar_select %p329, %s23, 7
        %s331 = smul.addr %s330, 2
        %s332 = smul.addr %s331, 8
        %s333 = scalar_lea.vmem %s6, %s332
        %p334 = scmp.lt.s32.totalorder %s23, 7
        %s335 = scalar_select %p334, %s23, 7
        %s336 = smul.addr %s335, 2
        %s337 = smul.addr %s336, 8
        %s338 = scalar_lea.vmem %s6, %s337
        %v339 = vld [vmem:[%s285] sm:$0xff]
        %v340 = vld [vmem:[%s285 + $0x8] sm:$0xff]
        %v341 = vld [vmem:[%s285 + $0x10] sm:$0xff]
        %v342 = vld [vmem:[%s285 + $0x18] sm:$0xff]
        %v343 = vld [vmem:[#allocation4] sm:$0xff]
        %v348 = vcombine.high %v339, %v339
        %v349 = vcombine.high %v340, %v340
        %v350 = vcombine.high %v341, %v341
        %v351 = vcombine.high %v342, %v342
        %353 = vrot.lane.b32.xlu0 %v343, 124
        %v354 = vpop.permute.xlu0 %353
        %356 = vrot.lane.b32.xlu0 %v339, 127
        %v357 = vpop.permute.xlu0 %356
        %358 = vrot.lane.b32.xlu0 %v348, 127
        %v359 = vpop.permute.xlu0 %358
        %360 = vrot.lane.b32.xlu0 %v340, 127
        %v361 = vpop.permute.xlu0 %360
        %362 = vrot.lane.b32.xlu0 %v349, 127
        %v363 = vpop.permute.xlu0 %362
        %364 = vrot.lane.b32.xlu0 %v341, 127
        %v365 = vpop.permute.xlu0 %364
        %366 = vrot.lane.b32.xlu0 %v350, 127
        %v367 = vpop.permute.xlu0 %366
        %368 = vrot.lane.b32.xlu0 %v342, 127
        %v369 = vpop.permute.xlu0 %368
        %370 = vrot.lane.b32.xlu0 %v351, 127
        %v371 = vpop.permute.xlu0 %370
        %372 = vrot.lane.b32.xlu0 0.0, 127
        %v373 = vpop.permute.xlu0 %372
        %vm374 = vcmask 1039360
        %v375 = vsel %vm374, %v357, %v359
        %v376 = vsel %vm374, %v359, %v361
        %v377 = vsel %vm374, %v361, %v363
        %v378 = vsel %vm374, %v363, %v365
        %v379 = vsel %vm374, %v365, %v367
        %v380 = vsel %vm374, %v367, %v369
        %v381 = vsel %vm374, %v369, %v371
        %v382 = vsel %vm374, %v371, %v373
        %vm383 = vcmask 31744
        %v384 = vsel %vm383, %v354, 0
        %vm386 = vcmask 1043456
        %v387 = vsel %vm386, %v375, 0
        %v389 = vsel %vm386, %v376, 0
        %v391 = vsel %vm386, %v377, 0
        %v393 = vsel %vm386, %v378, 0
        %v395 = vsel %vm386, %v379, 0
        %v397 = vsel %vm386, %v380, 0
        %v399 = vsel %vm386, %v381, 0
        %v401 = vsel %vm386, %v382, 0
        %403 = vmatprep.subr.mxu0 0.0
        %404 = vmatpush1.msra.mxu0 0.0
        %405 = vmatprep.subr.mxu0 0.0
        %406 = vmatpush1.msra.mxu0 0.0
        %407 = vmatprep.subr.mxu0 0.0
        %408 = vmatpush1.msra.mxu0 0.0
        %409 = vmatprep.subr.mxu0 0.0
        %410 = vmatpush1.msra.mxu0 0.0
        %411 = vmatprep.subr.mxu0 0.0
        %412 = vmatpush1.msra.mxu0 0.0
        %413 = vmatprep.subr.mxu0 0.0
        %414 = vmatpush1.msra.mxu0 0.0
        %415 = vmatprep.subr.mxu0 0.0
        %416 = vmatpush1.msra.mxu0 0.0
        %417 = vmatprep.subr.mxu0 0.0
        %418 = vmatpush1.msra.mxu0 0.0
        %419 = vmatprep.subr.mxu0 0.0
        %420 = vmatpush1.msra.mxu0 0.0
        %421 = vmatprep.subr.mxu0 0.0
        %422 = vmatpush1.msra.mxu0 0.0
        %423 = vmatprep.subr.mxu0 0.0
        %424 = vmatpush1.msra.mxu0 0.0
        %425 = vmatprep.subr.mxu0 0.0
        %426 = vmatpush1.msra.mxu0 0.0
        %427 = vmatprep.subr.mxu0 0.0
        %428 = vmatpush1.msra.mxu0 0.0
        %429 = vmatprep.subr.mxu0 0.0
        %430 = vmatpush1.msra.mxu0 0.0
        %431 = vmatprep.subr.mxu0 0.0
        %432 = vmatpush1.msra.mxu0 0.0
        %433 = vmatprep.subr.mxu0 %v389
        %434 = vmatpush1.msra.mxu0 %v387
        %435 = vmatprep.subr.mxu0 0.0
        %436 = vmatpush2.msra.mxu0 0.0
        %437 = vmatprep.subr.mxu0 0.0
        %438 = vmatpush2.msra.mxu0 0.0
        %439 = vmatprep.subr.mxu0 0.0
        %440 = vmatpush2.msra.mxu0 0.0
        %441 = vmatprep.subr.mxu0 0.0
        %442 = vmatpush2.msra.mxu0 0.0
        %443 = vmatprep.subr.mxu0 0.0
        %444 = vmatpush2.msra.mxu0 0.0
        %445 = vmatprep.subr.mxu0 0.0
        %446 = vmatpush2.msra.mxu0 0.0
        %447 = vmatprep.subr.mxu0 0.0
        %448 = vmatpush2.msra.mxu0 0.0
        %449 = vmatprep.subr.mxu0 0.0
        %450 = vmatpush2.msra.mxu0 0.0
        %451 = vmatprep.subr.mxu0 0.0
        %452 = vmatpush2.msra.mxu0 0.0
        %453 = vmatprep.subr.mxu0 0.0
        %454 = vmatpush2.msra.mxu0 0.0
        %455 = vmatprep.subr.mxu0 0.0
        %456 = vmatpush2.msra.mxu0 0.0
        %457 = vmatprep.subr.mxu0 0.0
        %458 = vmatpush2.msra.mxu0 0.0
        %459 = vmatprep.subr.mxu0 0.0
        %460 = vmatpush2.msra.mxu0 0.0
        %461 = vmatprep.subr.mxu0 0.0
        %462 = vmatpush2.msra.mxu0 0.0
        %463 = vmatprep.subr.mxu0 0.0
        %464 = vmatpush2.msra.mxu0 0.0
        %465 = vmatprep.subr.mxu0 0.0
        %466 = vmatpush2.msra.mxu0 0.0
        %467 = vmatprep.mubr.f32.mxu0 0.0
        %468 = vmatmul.mubr.f32.gmra.mxu0 %v384
        %v469 = vpop.f32.mrf.mxu0
        %v470 = vadd.f32 0.0, %v469
        %v471 = vpop.f32.mrf.mxu0
        %v472 = vadd.f32 0.0, %v471
        %473 = vdwg.mxu0
        %474 = vmatprep.subr.mxu0 0.0
        %475 = vmatpush1.msra.mxu0 0.0
        %476 = vmatprep.subr.mxu0 0.0
        %477 = vmatpush1.msra.mxu0 0.0
        %478 = vmatprep.subr.mxu0 0.0
        %479 = vmatpush1.msra.mxu0 0.0
        %480 = vmatprep.subr.mxu0 0.0
        %481 = vmatpush1.msra.mxu0 0.0
        %482 = vmatprep.subr.mxu0 0.0
        %483 = vmatpush1.msra.mxu0 0.0
        %484 = vmatprep.subr.mxu0 0.0
        %485 = vmatpush1.msra.mxu0 0.0
        %486 = vmatprep.subr.mxu0 0.0
        %487 = vmatpush1.msra.mxu0 0.0
        %488 = vmatprep.subr.mxu0 0.0
        %489 = vmatpush1.msra.mxu0 0.0
        %490 = vmatprep.subr.mxu0 0.0
        %491 = vmatpush1.msra.mxu0 0.0
        %492 = vmatprep.subr.mxu0 0.0
        %493 = vmatpush1.msra.mxu0 0.0
        %494 = vmatprep.subr.mxu0 0.0
        %495 = vmatpush1.msra.mxu0 0.0
        %496 = vmatprep.subr.mxu0 0.0
        %497 = vmatpush1.msra.mxu0 0.0
        %498 = vmatprep.subr.mxu0 0.0
        %499 = vmatpush1.msra.mxu0 0.0
        %500 = vmatprep.subr.mxu0 0.0
        %501 = vmatpush1.msra.mxu0 0.0
        %502 = vmatprep.subr.mxu0 0.0
        %503 = vmatpush1.msra.mxu0 0.0
        %504 = vmatprep.subr.mxu0 %v393
        %505 = vmatpush1.msra.mxu0 %v391
        %506 = vmatprep.subr.mxu0 0.0
        %507 = vmatpush2.msra.mxu0 0.0
        %508 = vmatprep.subr.mxu0 0.0
        %509 = vmatpush2.msra.mxu0 0.0
        %510 = vmatprep.subr.mxu0 0.0
        %511 = vmatpush2.msra.mxu0 0.0
        %512 = vmatprep.subr.mxu0 0.0
        %513 = vmatpush2.msra.mxu0 0.0
        %514 = vmatprep.subr.mxu0 0.0
        %515 = vmatpush2.msra.mxu0 0.0
        %516 = vmatprep.subr.mxu0 0.0
        %517 = vmatpush2.msra.mxu0 0.0
        %518 = vmatprep.subr.mxu0 0.0
        %519 = vmatpush2.msra.mxu0 0.0
        %520 = vmatprep.subr.mxu0 0.0
        %521 = vmatpush2.msra.mxu0 0.0
        %522 = vmatprep.subr.mxu0 0.0
        %523 = vmatpush2.msra.mxu0 0.0
        %524 = vmatprep.subr.mxu0 0.0
        %525 = vmatpush2.msra.mxu0 0.0
        %526 = vmatprep.subr.mxu0 0.0
        %527 = vmatpush2.msra.mxu0 0.0
        %528 = vmatprep.subr.mxu0 0.0
        %529 = vmatpush2.msra.mxu0 0.0
        %530 = vmatprep.subr.mxu0 0.0
        %531 = vmatpush2.msra.mxu0 0.0
        %532 = vmatprep.subr.mxu0 0.0
        %533 = vmatpush2.msra.mxu0 0.0
        %534 = vmatprep.subr.mxu0 0.0
        %535 = vmatpush2.msra.mxu0 0.0
        %536 = vmatprep.subr.mxu0 0.0
        %537 = vmatpush2.msra.mxu0 0.0
        %538 = vmatprep.mubr.f32.mxu0 0.0
        %539 = vmatmul.mubr.f32.gmra.mxu0 %v384
        %v540 = vpop.f32.mrf.mxu0
        %v541 = vadd.f32 0.0, %v540
        %v542 = vpop.f32.mrf.mxu0
        %v543 = vadd.f32 0.0, %v542
        %544 = vdwg.mxu0
        %545 = vmatprep.subr.mxu0 0.0
        %546 = vmatpush1.msra.mxu0 0.0
        %547 = vmatprep.subr.mxu0 0.0
        %548 = vmatpush1.msra.mxu0 0.0
        %549 = vmatprep.subr.mxu0 0.0
        %550 = vmatpush1.msra.mxu0 0.0
        %551 = vmatprep.subr.mxu0 0.0
        %552 = vmatpush1.msra.mxu0 0.0
        %553 = vmatprep.subr.mxu0 0.0
        %554 = vmatpush1.msra.mxu0 0.0
        %555 = vmatprep.subr.mxu0 0.0
        %556 = vmatpush1.msra.mxu0 0.0
        %557 = vmatprep.subr.mxu0 0.0
        %558 = vmatpush1.msra.mxu0 0.0
        %559 = vmatprep.subr.mxu0 0.0
        %560 = vmatpush1.msra.mxu0 0.0
        %561 = vmatprep.subr.mxu0 0.0
        %562 = vmatpush1.msra.mxu0 0.0
        %563 = vmatprep.subr.mxu0 0.0
        %564 = vmatpush1.msra.mxu0 0.0
        %565 = vmatprep.subr.mxu0 0.0
        %566 = vmatpush1.msra.mxu0 0.0
        %567 = vmatprep.subr.mxu0 0.0
        %568 = vmatpush1.msra.mxu0 0.0
        %569 = vmatprep.subr.mxu0 0.0
        %570 = vmatpush1.msra.mxu0 0.0
        %571 = vmatprep.subr.mxu0 0.0
        %572 = vmatpush1.msra.mxu0 0.0
        %573 = vmatprep.subr.mxu0 0.0
        %574 = vmatpush1.msra.mxu0 0.0
        %575 = vmatprep.subr.mxu0 %v397
        %576 = vmatpush1.msra.mxu0 %v395
        %577 = vmatprep.subr.mxu0 0.0
        %578 = vmatpush2.msra.mxu0 0.0
        %579 = vmatprep.subr.mxu0 0.0
        %580 = vmatpush2.msra.mxu0 0.0
        %581 = vmatprep.subr.mxu0 0.0
        %582 = vmatpush2.msra.mxu0 0.0
        %583 = vmatprep.subr.mxu0 0.0
        %584 = vmatpush2.msra.mxu0 0.0
        %585 = vmatprep.subr.mxu0 0.0
        %586 = vmatpush2.msra.mxu0 0.0
        %587 = vmatprep.subr.mxu0 0.0
        %588 = vmatpush2.msra.mxu0 0.0
        %589 = vmatprep.subr.mxu0 0.0
        %590 = vmatpush2.msra.mxu0 0.0
        %591 = vmatprep.subr.mxu0 0.0
        %592 = vmatpush2.msra.mxu0 0.0
        %593 = vmatprep.subr.mxu0 0.0
        %594 = vmatpush2.msra.mxu0 0.0
        %595 = vmatprep.subr.mxu0 0.0
        %596 = vmatpush2.msra.mxu0 0.0
        %597 = vmatprep.subr.mxu0 0.0
        %598 = vmatpush2.msra.mxu0 0.0
        %599 = vmatprep.subr.mxu0 0.0
        %600 = vmatpush2.msra.mxu0 0.0
        %601 = vmatprep.subr.mxu0 0.0
        %602 = vmatpush2.msra.mxu0 0.0
        %603 = vmatprep.subr.mxu0 0.0
        %604 = vmatpush2.msra.mxu0 0.0
        %605 = vmatprep.subr.mxu0 0.0
        %606 = vmatpush2.msra.mxu0 0.0
        %607 = vmatprep.subr.mxu0 0.0
        %608 = vmatpush2.msra.mxu0 0.0
        %609 = vmatprep.mubr.f32.mxu0 0.0
        %610 = vmatmul.mubr.f32.gmra.mxu0 %v384
        %v611 = vpop.f32.mrf.mxu0
        %v612 = vadd.f32 0.0, %v611
        %v613 = vpop.f32.mrf.mxu0
        %v614 = vadd.f32 0.0, %v613
        %615 = vdwg.mxu0
        %616 = vmatprep.subr.mxu0 0.0
        %617 = vmatpush1.msra.mxu0 0.0
        %618 = vmatprep.subr.mxu0 0.0
        %619 = vmatpush1.msra.mxu0 0.0
        %620 = vmatprep.subr.mxu0 0.0
        %621 = vmatpush1.msra.mxu0 0.0
        %622 = vmatprep.subr.mxu0 0.0
        %623 = vmatpush1.msra.mxu0 0.0
        %624 = vmatprep.subr.mxu0 0.0
        %625 = vmatpush1.msra.mxu0 0.0
        %626 = vmatprep.subr.mxu0 0.0
        %627 = vmatpush1.msra.mxu0 0.0
        %628 = vmatprep.subr.mxu0 0.0
        %629 = vmatpush1.msra.mxu0 0.0
        %630 = vmatprep.subr.mxu0 0.0
        %631 = vmatpush1.msra.mxu0 0.0
        %632 = vmatprep.subr.mxu0 0.0
        %633 = vmatpush1.msra.mxu0 0.0
        %634 = vmatprep.subr.mxu0 0.0
        %635 = vmatpush1.msra.mxu0 0.0
        %636 = vmatprep.subr.mxu0 0.0
        %637 = vmatpush1.msra.mxu0 0.0
        %638 = vmatprep.subr.mxu0 0.0
        %639 = vmatpush1.msra.mxu0 0.0
        %640 = vmatprep.subr.mxu0 0.0
        %641 = vmatpush1.msra.mxu0 0.0
        %642 = vmatprep.subr.mxu0 0.0
        %643 = vmatpush1.msra.mxu0 0.0
        %644 = vmatprep.subr.mxu0 0.0
        %645 = vmatpush1.msra.mxu0 0.0
        %646 = vmatprep.subr.mxu0 %v401
        %647 = vmatpush1.msra.mxu0 %v399
        %648 = vmatprep.subr.mxu0 0.0
        %649 = vmatpush2.msra.mxu0 0.0
        %650 = vmatprep.subr.mxu0 0.0
        %651 = vmatpush2.msra.mxu0 0.0
        %652 = vmatprep.subr.mxu0 0.0
        %653 = vmatpush2.msra.mxu0 0.0
        %654 = vmatprep.subr.mxu0 0.0
        %655 = vmatpush2.msra.mxu0 0.0
        %656 = vmatprep.subr.mxu0 0.0
        %657 = vmatpush2.msra.mxu0 0.0
        %658 = vmatprep.subr.mxu0 0.0
        %659 = vmatpush2.msra.mxu0 0.0
        %660 = vmatprep.subr.mxu0 0.0
        %661 = vmatpush2.msra.mxu0 0.0
        %662 = vmatprep.subr.mxu0 0.0
        %663 = vmatpush2.msra.mxu0 0.0
        %664 = vmatprep.subr.mxu0 0.0
        %665 = vmatpush2.msra.mxu0 0.0
        %666 = vmatprep.subr.mxu0 0.0
        %667 = vmatpush2.msra.mxu0 0.0
        %668 = vmatprep.subr.mxu0 0.0
        %669 = vmatpush2.msra.mxu0 0.0
        %670 = vmatprep.subr.mxu0 0.0
        %671 = vmatpush2.msra.mxu0 0.0
        %672 = vmatprep.subr.mxu0 0.0
        %673 = vmatpush2.msra.mxu0 0.0
        %674 = vmatprep.subr.mxu0 0.0
        %675 = vmatpush2.msra.mxu0 0.0
        %676 = vmatprep.subr.mxu0 0.0
        %677 = vmatpush2.msra.mxu0 0.0
        %678 = vmatprep.subr.mxu0 0.0
        %679 = vmatpush2.msra.mxu0 0.0
        %680 = vmatprep.mubr.f32.mxu0 0.0
        %681 = vmatmul.mubr.f32.gmra.mxu0 %v384
        %v682 = vpop.f32.mrf.mxu0
        %v683 = vadd.f32 0.0, %v682
        %v684 = vpop.f32.mrf.mxu0
        %v685 = vadd.f32 0.0, %v684
        %686 = vdwg.mxu0
        %v687 = vsel %vm383, %v343, 0
        %v689 = vsel %vm386, %v339, 0
        %v691 = vsel %vm386, %v348, 0
        %v693 = vsel %vm386, %v340, 0
        %v695 = vsel %vm386, %v349, 0
        %v697 = vsel %vm386, %v341, 0
        %v699 = vsel %vm386, %v350, 0
        %v701 = vsel %vm386, %v342, 0
        %v703 = vsel %vm386, %v351, 0
        %705 = vmatprep.subr.mxu0 0.0
        %706 = vmatpush1.msra.mxu0 0.0
        %707 = vmatprep.subr.mxu0 0.0
        %708 = vmatpush1.msra.mxu0 0.0
        %709 = vmatprep.subr.mxu0 0.0
        %710 = vmatpush1.msra.mxu0 0.0
        %711 = vmatprep.subr.mxu0 0.0
        %712 = vmatpush1.msra.mxu0 0.0
        %713 = vmatprep.subr.mxu0 0.0
        %714 = vmatpush1.msra.mxu0 0.0
        %715 = vmatprep.subr.mxu0 0.0
        %716 = vmatpush1.msra.mxu0 0.0
        %717 = vmatprep.subr.mxu0 0.0
        %718 = vmatpush1.msra.mxu0 0.0
        %719 = vmatprep.subr.mxu0 0.0
        %720 = vmatpush1.msra.mxu0 0.0
        %721 = vmatprep.subr.mxu0 0.0
        %722 = vmatpush1.msra.mxu0 0.0
        %723 = vmatprep.subr.mxu0 0.0
        %724 = vmatpush1.msra.mxu0 0.0
        %725 = vmatprep.subr.mxu0 0.0
        %726 = vmatpush1.msra.mxu0 0.0
        %727 = vmatprep.subr.mxu0 0.0
        %728 = vmatpush1.msra.mxu0 0.0
        %729 = vmatprep.subr.mxu0 0.0
        %730 = vmatpush1.msra.mxu0 0.0
        %731 = vmatprep.subr.mxu0 0.0
        %732 = vmatpush1.msra.mxu0 0.0
        %733 = vmatprep.subr.mxu0 0.0
        %734 = vmatpush1.msra.mxu0 0.0
        %735 = vmatprep.subr.mxu0 %v691
        %736 = vmatpush1.msra.mxu0 %v689
        %737 = vmatprep.subr.mxu0 0.0
        %738 = vmatpush2.msra.mxu0 0.0
        %739 = vmatprep.subr.mxu0 0.0
        %740 = vmatpush2.msra.mxu0 0.0
        %741 = vmatprep.subr.mxu0 0.0
        %742 = vmatpush2.msra.mxu0 0.0
        %743 = vmatprep.subr.mxu0 0.0
        %744 = vmatpush2.msra.mxu0 0.0
        %745 = vmatprep.subr.mxu0 0.0
        %746 = vmatpush2.msra.mxu0 0.0
        %747 = vmatprep.subr.mxu0 0.0
        %748 = vmatpush2.msra.mxu0 0.0
        %749 = vmatprep.subr.mxu0 0.0
        %750 = vmatpush2.msra.mxu0 0.0
        %751 = vmatprep.subr.mxu0 0.0
        %752 = vmatpush2.msra.mxu0 0.0
        %753 = vmatprep.subr.mxu0 0.0
        %754 = vmatpush2.msra.mxu0 0.0
        %755 = vmatprep.subr.mxu0 0.0
        %756 = vmatpush2.msra.mxu0 0.0
        %757 = vmatprep.subr.mxu0 0.0
        %758 = vmatpush2.msra.mxu0 0.0
        %759 = vmatprep.subr.mxu0 0.0
        %760 = vmatpush2.msra.mxu0 0.0
        %761 = vmatprep.subr.mxu0 0.0
        %762 = vmatpush2.msra.mxu0 0.0
        %763 = vmatprep.subr.mxu0 0.0
        %764 = vmatpush2.msra.mxu0 0.0
        %765 = vmatprep.subr.mxu0 0.0
        %766 = vmatpush2.msra.mxu0 0.0
        %767 = vmatprep.subr.mxu0 0.0
        %768 = vmatpush2.msra.mxu0 0.0
        %769 = vmatprep.mubr.f32.mxu0 0.0
        %770 = vmatmul.mubr.f32.gmra.mxu0 %v687
        %v771 = vpop.f32.mrf.mxu0
        %v772 = vadd.f32 %v470, %v771
        %v773 = vpop.f32.mrf.mxu0
        %v774 = vadd.f32 %v472, %v773
        %775 = vdwg.mxu0
        %776 = vmatprep.subr.mxu0 0.0
        %777 = vmatpush1.msra.mxu0 0.0
        %778 = vmatprep.subr.mxu0 0.0
        %779 = vmatpush1.msra.mxu0 0.0
        %780 = vmatprep.subr.mxu0 0.0
        %781 = vmatpush1.msra.mxu0 0.0
        %782 = vmatprep.subr.mxu0 0.0
        %783 = vmatpush1.msra.mxu0 0.0
        %784 = vmatprep.subr.mxu0 0.0
        %785 = vmatpush1.msra.mxu0 0.0
        %786 = vmatprep.subr.mxu0 0.0
        %787 = vmatpush1.msra.mxu0 0.0
        %788 = vmatprep.subr.mxu0 0.0
        %789 = vmatpush1.msra.mxu0 0.0
        %790 = vmatprep.subr.mxu0 0.0
        %791 = vmatpush1.msra.mxu0 0.0
        %792 = vmatprep.subr.mxu0 0.0
        %793 = vmatpush1.msra.mxu0 0.0
        %794 = vmatprep.subr.mxu0 0.0
        %795 = vmatpush1.msra.mxu0 0.0
        %796 = vmatprep.subr.mxu0 0.0
        %797 = vmatpush1.msra.mxu0 0.0
        %798 = vmatprep.subr.mxu0 0.0
        %799 = vmatpush1.msra.mxu0 0.0
        %800 = vmatprep.subr.mxu0 0.0
        %801 = vmatpush1.msra.mxu0 0.0
        %802 = vmatprep.subr.mxu0 0.0
        %803 = vmatpush1.msra.mxu0 0.0
        %804 = vmatprep.subr.mxu0 0.0
        %805 = vmatpush1.msra.mxu0 0.0
        %806 = vmatprep.subr.mxu0 %v695
        %807 = vmatpush1.msra.mxu0 %v693
        %808 = vmatprep.subr.mxu0 0.0
        %809 = vmatpush2.msra.mxu0 0.0
        %810 = vmatprep.subr.mxu0 0.0
        %811 = vmatpush2.msra.mxu0 0.0
        %812 = vmatprep.subr.mxu0 0.0
        %813 = vmatpush2.msra.mxu0 0.0
        %814 = vmatprep.subr.mxu0 0.0
        %815 = vmatpush2.msra.mxu0 0.0
        %816 = vmatprep.subr.mxu0 0.0
        %817 = vmatpush2.msra.mxu0 0.0
        %818 = vmatprep.subr.mxu0 0.0
        %819 = vmatpush2.msra.mxu0 0.0
        %820 = vmatprep.subr.mxu0 0.0
        %821 = vmatpush2.msra.mxu0 0.0
        %822 = vmatprep.subr.mxu0 0.0
        %823 = vmatpush2.msra.mxu0 0.0
        %824 = vmatprep.subr.mxu0 0.0
        %825 = vmatpush2.msra.mxu0 0.0
        %826 = vmatprep.subr.mxu0 0.0
        %827 = vmatpush2.msra.mxu0 0.0
        %828 = vmatprep.subr.mxu0 0.0
        %829 = vmatpush2.msra.mxu0 0.0
        %830 = vmatprep.subr.mxu0 0.0
        %831 = vmatpush2.msra.mxu0 0.0
        %832 = vmatprep.subr.mxu0 0.0
        %833 = vmatpush2.msra.mxu0 0.0
        %834 = vmatprep.subr.mxu0 0.0
        %835 = vmatpush2.msra.mxu0 0.0
        %836 = vmatprep.subr.mxu0 0.0
        %837 = vmatpush2.msra.mxu0 0.0
        %838 = vmatprep.subr.mxu0 0.0
        %839 = vmatpush2.msra.mxu0 0.0
        %840 = vmatprep.mubr.f32.mxu0 0.0
        %841 = vmatmul.mubr.f32.gmra.mxu0 %v687
        %v842 = vpop.f32.mrf.mxu0
        %v843 = vadd.f32 %v541, %v842
        %v844 = vpop.f32.mrf.mxu0
        %v845 = vadd.f32 %v543, %v844
        %846 = vdwg.mxu0
        %847 = vmatprep.subr.mxu0 0.0
        %848 = vmatpush1.msra.mxu0 0.0
        %849 = vmatprep.subr.mxu0 0.0
        %850 = vmatpush1.msra.mxu0 0.0
        %851 = vmatprep.subr.mxu0 0.0
        %852 = vmatpush1.msra.mxu0 0.0
        %853 = vmatprep.subr.mxu0 0.0
        %854 = vmatpush1.msra.mxu0 0.0
        %855 = vmatprep.subr.mxu0 0.0
        %856 = vmatpush1.msra.mxu0 0.0
        %857 = vmatprep.subr.mxu0 0.0
        %858 = vmatpush1.msra.mxu0 0.0
        %859 = vmatprep.subr.mxu0 0.0
        %860 = vmatpush1.msra.mxu0 0.0
        %861 = vmatprep.subr.mxu0 0.0
        %862 = vmatpush1.msra.mxu0 0.0
        %863 = vmatprep.subr.mxu0 0.0
        %864 = vmatpush1.msra.mxu0 0.0
        %865 = vmatprep.subr.mxu0 0.0
        %866 = vmatpush1.msra.mxu0 0.0
        %867 = vmatprep.subr.mxu0 0.0
        %868 = vmatpush1.msra.mxu0 0.0
        %869 = vmatprep.subr.mxu0 0.0
        %870 = vmatpush1.msra.mxu0 0.0
        %871 = vmatprep.subr.mxu0 0.0
        %872 = vmatpush1.msra.mxu0 0.0
        %873 = vmatprep.subr.mxu0 0.0
        %874 = vmatpush1.msra.mxu0 0.0
        %875 = vmatprep.subr.mxu0 0.0
        %876 = vmatpush1.msra.mxu0 0.0
        %877 = vmatprep.subr.mxu0 %v699
        %878 = vmatpush1.msra.mxu0 %v697
        %879 = vmatprep.subr.mxu0 0.0
        %880 = vmatpush2.msra.mxu0 0.0
        %881 = vmatprep.subr.mxu0 0.0
        %882 = vmatpush2.msra.mxu0 0.0
        %883 = vmatprep.subr.mxu0 0.0
        %884 = vmatpush2.msra.mxu0 0.0
        %885 = vmatprep.subr.mxu0 0.0
        %886 = vmatpush2.msra.mxu0 0.0
        %887 = vmatprep.subr.mxu0 0.0
        %888 = vmatpush2.msra.mxu0 0.0
        %889 = vmatprep.subr.mxu0 0.0
        %890 = vmatpush2.msra.mxu0 0.0
        %891 = vmatprep.subr.mxu0 0.0
        %892 = vmatpush2.msra.mxu0 0.0
        %893 = vmatprep.subr.mxu0 0.0
        %894 = vmatpush2.msra.mxu0 0.0
        %895 = vmatprep.subr.mxu0 0.0
        %896 = vmatpush2.msra.mxu0 0.0
        %897 = vmatprep.subr.mxu0 0.0
        %898 = vmatpush2.msra.mxu0 0.0
        %899 = vmatprep.subr.mxu0 0.0
        %900 = vmatpush2.msra.mxu0 0.0
        %901 = vmatprep.subr.mxu0 0.0
        %902 = vmatpush2.msra.mxu0 0.0
        %903 = vmatprep.subr.mxu0 0.0
        %904 = vmatpush2.msra.mxu0 0.0
        %905 = vmatprep.subr.mxu0 0.0
        %906 = vmatpush2.msra.mxu0 0.0
        %907 = vmatprep.subr.mxu0 0.0
        %908 = vmatpush2.msra.mxu0 0.0
        %909 = vmatprep.subr.mxu0 0.0
        %910 = vmatpush2.msra.mxu0 0.0
        %911 = vmatprep.mubr.f32.mxu0 0.0
        %912 = vmatmul.mubr.f32.gmra.mxu0 %v687
        %v913 = vpop.f32.mrf.mxu0
        %v914 = vadd.f32 %v612, %v913
        %v915 = vpop.f32.mrf.mxu0
        %v916 = vadd.f32 %v614, %v915
        %917 = vdwg.mxu0
        %918 = vmatprep.subr.mxu0 0.0
        %919 = vmatpush1.msra.mxu0 0.0
        %920 = vmatprep.subr.mxu0 0.0
        %921 = vmatpush1.msra.mxu0 0.0
        %922 = vmatprep.subr.mxu0 0.0
        %923 = vmatpush1.msra.mxu0 0.0
        %924 = vmatprep.subr.mxu0 0.0
        %925 = vmatpush1.msra.mxu0 0.0
        %926 = vmatprep.subr.mxu0 0.0
        %927 = vmatpush1.msra.mxu0 0.0
        %928 = vmatprep.subr.mxu0 0.0
        %929 = vmatpush1.msra.mxu0 0.0
        %930 = vmatprep.subr.mxu0 0.0
        %931 = vmatpush1.msra.mxu0 0.0
        %932 = vmatprep.subr.mxu0 0.0
        %933 = vmatpush1.msra.mxu0 0.0
        %934 = vmatprep.subr.mxu0 0.0
        %935 = vmatpush1.msra.mxu0 0.0
        %936 = vmatprep.subr.mxu0 0.0
        %937 = vmatpush1.msra.mxu0 0.0
        %938 = vmatprep.subr.mxu0 0.0
        %939 = vmatpush1.msra.mxu0 0.0
        %940 = vmatprep.subr.mxu0 0.0
        %941 = vmatpush1.msra.mxu0 0.0
        %942 = vmatprep.subr.mxu0 0.0
        %943 = vmatpush1.msra.mxu0 0.0
        %944 = vmatprep.subr.mxu0 0.0
        %945 = vmatpush1.msra.mxu0 0.0
        %946 = vmatprep.subr.mxu0 0.0
        %947 = vmatpush1.msra.mxu0 0.0
        %948 = vmatprep.subr.mxu0 %v703
        %949 = vmatpush1.msra.mxu0 %v701
        %950 = vmatprep.subr.mxu0 0.0
        %951 = vmatpush2.msra.mxu0 0.0
        %952 = vmatprep.subr.mxu0 0.0
        %953 = vmatpush2.msra.mxu0 0.0
        %954 = vmatprep.subr.mxu0 0.0
        %955 = vmatpush2.msra.mxu0 0.0
        %956 = vmatprep.subr.mxu0 0.0
        %957 = vmatpush2.msra.mxu0 0.0
        %958 = vmatprep.subr.mxu0 0.0
        %959 = vmatpush2.msra.mxu0 0.0
        %960 = vmatprep.subr.mxu0 0.0
        %961 = vmatpush2.msra.mxu0 0.0
        %962 = vmatprep.subr.mxu0 0.0
        %963 = vmatpush2.msra.mxu0 0.0
        %964 = vmatprep.subr.mxu0 0.0
        %965 = vmatpush2.msra.mxu0 0.0
        %966 = vmatprep.subr.mxu0 0.0
        %967 = vmatpush2.msra.mxu0 0.0
        %968 = vmatprep.subr.mxu0 0.0
        %969 = vmatpush2.msra.mxu0 0.0
        %970 = vmatprep.subr.mxu0 0.0
        %971 = vmatpush2.msra.mxu0 0.0
        %972 = vmatprep.subr.mxu0 0.0
        %973 = vmatpush2.msra.mxu0 0.0
        %974 = vmatprep.subr.mxu0 0.0
        %975 = vmatpush2.msra.mxu0 0.0
        %976 = vmatprep.subr.mxu0 0.0
        %977 = vmatpush2.msra.mxu0 0.0
        %978 = vmatprep.subr.mxu0 0.0
        %979 = vmatpush2.msra.mxu0 0.0
        %980 = vmatprep.subr.mxu0 0.0
        %981 = vmatpush2.msra.mxu0 0.0
        %982 = vmatprep.mubr.f32.mxu0 0.0
        %983 = vmatmul.mubr.f32.gmra.mxu0 %v687
        %v984 = vpop.f32.mrf.mxu0
        %v985 = vadd.f32 %v683, %v984
        %v986 = vpop.f32.mrf.mxu0
        %v987 = vadd.f32 %v685, %v986
        %988 = vdwg.mxu0
        %989 = vset.pattern.permute.xlu0 8
        %990 = vperm.xlu0 %989, %v343
        %v991 = vpop.permute.xlu0 %990
        %v993 = vadd.f32 %v772, %v991
        %v994 = vadd.f32 %v774, %v991
        %v995 = vadd.f32 %v843, %v991
        %v996 = vadd.f32 %v845, %v991
        %v997 = vadd.f32 %v914, %v991
        %v998 = vadd.f32 %v916, %v991
        %v999 = vadd.f32 %v985, %v991
        %v1000 = vadd.f32 %v987, %v991
        %v1001 = vmax.f32 %v993, 0.0
        %v1002 = vmax.f32 %v994, 0.0
        %v1003 = vmax.f32 %v995, 0.0
        %v1004 = vmax.f32 %v996, 0.0
        %v1005 = vmax.f32 %v997, 0.0
        %v1006 = vmax.f32 %v998, 0.0
        %v1007 = vmax.f32 %v999, 0.0
        %v1008 = vmax.f32 %v1000, 0.0
        %1017 = vrot.lane.b32.xlu0 %v1001, 127
        %v1018 = vpop.permute.xlu0 %1017
        %1019 = vrot.lane.b32.xlu0 %v1002, 127
        %v1020 = vpop.permute.xlu0 %1019
        %1021 = vrot.lane.b32.xlu0 %v1003, 127
        %v1022 = vpop.permute.xlu0 %1021
        %1023 = vrot.lane.b32.xlu0 %v1004, 127
        %v1024 = vpop.permute.xlu0 %1023
        %1025 = vrot.lane.b32.xlu0 %v1005, 127
        %v1026 = vpop.permute.xlu0 %1025
        %1027 = vrot.lane.b32.xlu0 %v1006, 127
        %v1028 = vpop.permute.xlu0 %1027
        %1029 = vrot.lane.b32.xlu0 %v1007, 127
        %v1030 = vpop.permute.xlu0 %1029
        %1031 = vrot.lane.b32.xlu0 %v1008, 127
        %v1032 = vpop.permute.xlu0 %1031
        %v1033 = vsel %vm374, %v1018, %v1020
        %v1034 = vsel %vm374, %v1020, %v1022
        %v1035 = vsel %vm374, %v1022, %v1024
        %v1036 = vsel %vm374, %v1024, %v1026
        %v1037 = vsel %vm374, %v1026, %v1028
        %v1038 = vsel %vm374, %v1028, %v1030
        %v1039 = vsel %vm374, %v1030, %v1032
        %v1048 = vmax.f32 %v1001, %v1033
        %v1049 = vmax.f32 %v1002, %v1034
        %v1050 = vmax.f32 %v1003, %v1035
        %v1051 = vmax.f32 %v1004, %v1036
        %v1052 = vmax.f32 %v1005, %v1037
        %v1053 = vmax.f32 %v1006, %v1038
        %v1054 = vmax.f32 %v1007, %v1039
        %v1055 = vmax.f32 %v1008, %v1032
        %1064 = vrot.lane.b32.xlu0 %v1048, 126
        %v1065 = vpop.permute.xlu0 %1064
        %1066 = vrot.lane.b32.xlu0 %v1049, 126
        %v1067 = vpop.permute.xlu0 %1066
        %1068 = vrot.lane.b32.xlu0 %v1050, 126
        %v1069 = vpop.permute.xlu0 %1068
        %1070 = vrot.lane.b32.xlu0 %v1051, 126
        %v1071 = vpop.permute.xlu0 %1070
        %1072 = vrot.lane.b32.xlu0 %v1052, 126
        %v1073 = vpop.permute.xlu0 %1072
        %1074 = vrot.lane.b32.xlu0 %v1053, 126
        %v1075 = vpop.permute.xlu0 %1074
        %1076 = vrot.lane.b32.xlu0 %v1054, 126
        %v1077 = vpop.permute.xlu0 %1076
        %1078 = vrot.lane.b32.xlu0 %v1055, 126
        %v1079 = vpop.permute.xlu0 %1078
        %vm1080 = vcmask 1031168
        %v1081 = vsel %vm1080, %v1065, %v1067
        %v1082 = vsel %vm1080, %v1067, %v1069
        %v1083 = vsel %vm1080, %v1069, %v1071
        %v1084 = vsel %vm1080, %v1071, %v1073
        %v1085 = vsel %vm1080, %v1073, %v1075
        %v1086 = vsel %vm1080, %v1075, %v1077
        %v1087 = vsel %vm1080, %v1077, %v1079
        %v1096 = vmax.f32 %v1048, %v1081
        %v1097 = vmax.f32 %v1049, %v1082
        %v1098 = vmax.f32 %v1050, %v1083
        %v1099 = vmax.f32 %v1051, %v1084
        %v1100 = vmax.f32 %v1052, %v1085
        %v1101 = vmax.f32 %v1053, %v1086
        %v1102 = vmax.f32 %v1054, %v1087
        %v1103 = vmax.f32 %v1055, %v1079
        %v1104 = vlaneseq
        %v1105 = vshrl.u32 %v1104, 7
        %v1106 = vadd.s32 %v1105, 8
        %v1107 = vadd.s32 %v1105, 16
        %v1108 = vadd.s32 %v1105, 24
        %v1109 = vadd.s32 %v1105, 32
        %v1110 = vadd.s32 %v1105, 40
        %v1111 = vadd.s32 %v1105, 48
        %v1112 = vadd.s32 %v1105, 56
        %v1113 = vadd.s32 %v1105, 64
        %v1114 = vadd.s32 %v1105, 72
        %v1115 = vadd.s32 %v1105, 80
        %v1116 = vadd.s32 %v1105, 88
        %v1117 = vadd.s32 %v1105, 96
        %v1118 = vadd.s32 %v1105, 104
        %v1119 = vadd.s32 %v1105, 112
        %v1120 = vadd.s32 %v1105, 120
        %v1121 = vadd.s32 %v1105, 128
        %v1122 = vadd.s32 %v1105, 136
        %v1123 = vadd.s32 %v1105, 144
        %v1124 = vadd.s32 %v1105, 152
        %v1125 = vadd.s32 %v1105, 160
        %v1126 = vadd.s32 %v1105, 168
        %v1127 = vadd.s32 %v1105, 176
        %v1128 = vadd.s32 %v1105, 184
        %v1129 = vadd.s32 %v1105, 192
        %v1130 = vadd.s32 %v1105, 200
        %v1131 = vadd.s32 %v1105, 208
        %v1132 = vadd.s32 %v1105, 216
        %v1133 = vadd.s32 %v1105, 224
        %v1134 = vadd.s32 %v1105, 232
        %v1135 = vadd.s32 %v1105, 240
        %v1136 = vadd.s32 %v1105, 248
        %v1137 = vadd.s32 %v1105, 256
        %v1138 = vadd.s32 %v1105, 264
        %v1139 = vadd.s32 %v1105, 272
        %v1140 = vadd.s32 %v1105, 280
        %v1141 = vadd.s32 %v1105, 288
        %v1142 = vadd.s32 %v1105, 296
        %v1143 = vadd.s32 %v1105, 304
        %v1144 = vadd.s32 %v1105, 312
        %v1145 = vadd.s32 %v1105, 320
        %v1146 = vadd.s32 %v1105, 328
        %v1147 = vadd.s32 %v1105, 336
        %v1148 = vadd.s32 %v1105, 344
        %v1149 = vadd.s32 %v1105, 352
        %v1150 = vadd.s32 %v1105, 360
        %v1151 = vadd.s32 %v1105, 368
        %v1152 = vadd.s32 %v1105, 376
        %v1153 = vadd.s32 %v1105, 384
        %v1154 = vadd.s32 %v1105, 392
        %v1155 = vadd.s32 %v1105, 400
        %v1156 = vadd.s32 %v1105, 408
        %v1157 = vadd.s32 %v1105, 416
        %v1158 = vadd.s32 %v1105, 424
        %v1159 = vadd.s32 %v1105, 432
        %v1160 = vadd.s32 %v1105, 440
        %v1161 = vadd.s32 %v1105, 448
        %v1162 = vadd.s32 %v1105, 456
        %v1163 = vadd.s32 %v1105, 464
        %v1164 = vadd.s32 %v1105, 472
        %v1165 = vadd.s32 %v1105, 480
        %v1166 = vadd.s32 %v1105, 488
        %v1167 = vadd.s32 %v1105, 496
        %v1168 = vadd.s32 %v1105, 504
        %v1169 = vadd.s32 %v1105, 512
        %v1170 = vadd.s32 %v1105, 520
        %v1171 = vadd.s32 %v1105, 528
        %v1172 = vadd.s32 %v1105, 536
        %v1173 = vadd.s32 %v1105, 544
        %v1174 = vadd.s32 %v1105, 552
        %v1175 = vadd.s32 %v1105, 560
        %v1176 = vadd.s32 %v1105, 568
        %v1177 = vadd.s32 %v1105, 576
        %v1178 = vadd.s32 %v1105, 584
        %v1179 = vadd.s32 %v1105, 592
        %v1180 = vadd.s32 %v1105, 600
        %v1181 = vadd.s32 %v1105, 608
        %v1182 = vadd.s32 %v1105, 616
        %v1183 = vadd.s32 %v1105, 624
        %v1184 = vadd.s32 %v1105, 632
        %v1185 = vadd.s32 %v1105, 640
        %v1186 = vadd.s32 %v1105, 648
        %v1187 = vadd.s32 %v1105, 656
        %v1188 = vadd.s32 %v1105, 664
        %v1189 = vadd.s32 %v1105, 672
        %v1190 = vadd.s32 %v1105, 680
        %v1191 = vadd.s32 %v1105, 688
        %v1192 = vadd.s32 %v1105, 696
        %v1193 = vadd.s32 %v1105, 704
        %v1194 = vadd.s32 %v1105, 712
        %v1195 = vadd.s32 %v1105, 720
        %v1196 = vadd.s32 %v1105, 728
        %v1197 = vadd.s32 %v1105, 736
        %v1198 = vadd.s32 %v1105, 744
        %v1199 = vadd.s32 %v1105, 752
        %v1200 = vadd.s32 %v1105, 760
        %v1201 = vadd.s32 %v1105, 768
        %v1202 = vadd.s32 %v1105, 776
        %v1203 = vadd.s32 %v1105, 784
        %v1204 = vadd.s32 %v1105, 792
        %v1205 = vadd.s32 %v1105, 800
        %v1206 = vadd.s32 %v1105, 808
        %v1207 = vadd.s32 %v1105, 816
        %v1208 = vadd.s32 %v1105, 824
        %v1209 = vadd.s32 %v1105, 832
        %v1210 = vadd.s32 %v1105, 840
        %v1211 = vadd.s32 %v1105, 848
        %v1212 = vadd.s32 %v1105, 856
        %v1213 = vadd.s32 %v1105, 864
        %v1214 = vadd.s32 %v1105, 872
        %v1215 = vadd.s32 %v1105, 880
        %v1216 = vadd.s32 %v1105, 888
        %v1217 = vadd.s32 %v1105, 896
        %v1218 = vadd.s32 %v1105, 904
        %v1219 = vadd.s32 %v1105, 912
        %v1220 = vadd.s32 %v1105, 920
        %v1221 = vadd.s32 %v1105, 928
        %v1222 = vadd.s32 %v1105, 936
        %v1223 = vadd.s32 %v1105, 944
        %v1224 = vadd.s32 %v1105, 952
        %v1225 = vadd.s32 %v1105, 960
        %v1226 = vadd.s32 %v1105, 968
        %v1227 = vadd.s32 %v1105, 976
        %v1228 = vadd.s32 %v1105, 984
        %v1229 = vadd.s32 %v1105, 992
        %v1230 = vadd.s32 %v1105, 1000
        %v1231 = vadd.s32 %v1105, 1008
        %v1232 = vadd.s32 %v1105, 1016
        %v1233 = vlaneseq
        %v1234 = vand.u32 %v1233, 127
        %v1235 = vadd.s32 %v1234, 128
        %v1236 = vmul.u32 %v1234, 4
        %v1237 = vmul.u32 %v1235, 4
        %vm1238 = vcmp.eq.s32.totalorder %v1105, %v1236
        %vm1239 = vcmp.eq.s32.totalorder %v1105, %v1237
        %vm1240 = vcmp.eq.s32.totalorder %v1106, %v1236
        %vm1241 = vcmp.eq.s32.totalorder %v1106, %v1237
        %vm1242 = vcmp.eq.s32.totalorder %v1107, %v1236
        %vm1243 = vcmp.eq.s32.totalorder %v1107, %v1237
        %vm1244 = vcmp.eq.s32.totalorder %v1108, %v1236
        %vm1245 = vcmp.eq.s32.totalorder %v1108, %v1237
        %vm1246 = vcmp.eq.s32.totalorder %v1109, %v1236
        %vm1247 = vcmp.eq.s32.totalorder %v1109, %v1237
        %vm1248 = vcmp.eq.s32.totalorder %v1110, %v1236
        %vm1249 = vcmp.eq.s32.totalorder %v1110, %v1237
        %vm1250 = vcmp.eq.s32.totalorder %v1111, %v1236
        %vm1251 = vcmp.eq.s32.totalorder %v1111, %v1237
        %vm1252 = vcmp.eq.s32.totalorder %v1112, %v1236
        %vm1253 = vcmp.eq.s32.totalorder %v1112, %v1237
        %vm1254 = vcmp.eq.s32.totalorder %v1113, %v1236
        %vm1255 = vcmp.eq.s32.totalorder %v1113, %v1237
        %vm1256 = vcmp.eq.s32.totalorder %v1114, %v1236
        %vm1257 = vcmp.eq.s32.totalorder %v1114, %v1237
        %vm1258 = vcmp.eq.s32.totalorder %v1115, %v1236
        %vm1259 = vcmp.eq.s32.totalorder %v1115, %v1237
        %vm1260 = vcmp.eq.s32.totalorder %v1116, %v1236
        %vm1261 = vcmp.eq.s32.totalorder %v1116, %v1237
        %vm1262 = vcmp.eq.s32.totalorder %v1117, %v1236
        %vm1263 = vcmp.eq.s32.totalorder %v1117, %v1237
        %vm1264 = vcmp.eq.s32.totalorder %v1118, %v1236
        %vm1265 = vcmp.eq.s32.totalorder %v1118, %v1237
        %vm1266 = vcmp.eq.s32.totalorder %v1119, %v1236
        %vm1267 = vcmp.eq.s32.totalorder %v1119, %v1237
        %vm1268 = vcmp.eq.s32.totalorder %v1120, %v1236
        %vm1269 = vcmp.eq.s32.totalorder %v1120, %v1237
        %vm1270 = vcmp.eq.s32.totalorder %v1121, %v1236
        %vm1271 = vcmp.eq.s32.totalorder %v1121, %v1237
        %vm1272 = vcmp.eq.s32.totalorder %v1122, %v1236
        %vm1273 = vcmp.eq.s32.totalorder %v1122, %v1237
        %vm1274 = vcmp.eq.s32.totalorder %v1123, %v1236
        %vm1275 = vcmp.eq.s32.totalorder %v1123, %v1237
        %vm1276 = vcmp.eq.s32.totalorder %v1124, %v1236
        %vm1277 = vcmp.eq.s32.totalorder %v1124, %v1237
        %vm1278 = vcmp.eq.s32.totalorder %v1125, %v1236
        %vm1279 = vcmp.eq.s32.totalorder %v1125, %v1237
        %vm1280 = vcmp.eq.s32.totalorder %v1126, %v1236
        %vm1281 = vcmp.eq.s32.totalorder %v1126, %v1237
        %vm1282 = vcmp.eq.s32.totalorder %v1127, %v1236
        %vm1283 = vcmp.eq.s32.totalorder %v1127, %v1237
        %vm1284 = vcmp.eq.s32.totalorder %v1128, %v1236
        %vm1285 = vcmp.eq.s32.totalorder %v1128, %v1237
        %vm1286 = vcmp.eq.s32.totalorder %v1129, %v1236
        %vm1287 = vcmp.eq.s32.totalorder %v1129, %v1237
        %vm1288 = vcmp.eq.s32.totalorder %v1130, %v1236
        %vm1289 = vcmp.eq.s32.totalorder %v1130, %v1237
        %vm1290 = vcmp.eq.s32.totalorder %v1131, %v1236
        %vm1291 = vcmp.eq.s32.totalorder %v1131, %v1237
        %vm1292 = vcmp.eq.s32.totalorder %v1132, %v1236
        %vm1293 = vcmp.eq.s32.totalorder %v1132, %v1237
        %vm1294 = vcmp.eq.s32.totalorder %v1133, %v1236
        %vm1295 = vcmp.eq.s32.totalorder %v1133, %v1237
        %vm1296 = vcmp.eq.s32.totalorder %v1134, %v1236
        %vm1297 = vcmp.eq.s32.totalorder %v1134, %v1237
        %vm1298 = vcmp.eq.s32.totalorder %v1135, %v1236
        %vm1299 = vcmp.eq.s32.totalorder %v1135, %v1237
        %vm1300 = vcmp.eq.s32.totalorder %v1136, %v1236
        %vm1301 = vcmp.eq.s32.totalorder %v1136, %v1237
        %vm1302 = vcmp.eq.s32.totalorder %v1137, %v1236
        %vm1303 = vcmp.eq.s32.totalorder %v1137, %v1237
        %vm1304 = vcmp.eq.s32.totalorder %v1138, %v1236
        %vm1305 = vcmp.eq.s32.totalorder %v1138, %v1237
        %vm1306 = vcmp.eq.s32.totalorder %v1139, %v1236
        %vm1307 = vcmp.eq.s32.totalorder %v1139, %v1237
        %vm1308 = vcmp.eq.s32.totalorder %v1140, %v1236
        %vm1309 = vcmp.eq.s32.totalorder %v1140, %v1237
        %vm1310 = vcmp.eq.s32.totalorder %v1141, %v1236
        %vm1311 = vcmp.eq.s32.totalorder %v1141, %v1237
        %vm1312 = vcmp.eq.s32.totalorder %v1142, %v1236
        %vm1313 = vcmp.eq.s32.totalorder %v1142, %v1237
        %vm1314 = vcmp.eq.s32.totalorder %v1143, %v1236
        %vm1315 = vcmp.eq.s32.totalorder %v1143, %v1237
        %vm1316 = vcmp.eq.s32.totalorder %v1144, %v1236
        %vm1317 = vcmp.eq.s32.totalorder %v1144, %v1237
        %vm1318 = vcmp.eq.s32.totalorder %v1145, %v1236
        %vm1319 = vcmp.eq.s32.totalorder %v1145, %v1237
        %vm1320 = vcmp.eq.s32.totalorder %v1146, %v1236
        %vm1321 = vcmp.eq.s32.totalorder %v1146, %v1237
        %vm1322 = vcmp.eq.s32.totalorder %v1147, %v1236
        %vm1323 = vcmp.eq.s32.totalorder %v1147, %v1237
        %vm1324 = vcmp.eq.s32.totalorder %v1148, %v1236
        %vm1325 = vcmp.eq.s32.totalorder %v1148, %v1237
        %vm1326 = vcmp.eq.s32.totalorder %v1149, %v1236
        %vm1327 = vcmp.eq.s32.totalorder %v1149, %v1237
        %vm1328 = vcmp.eq.s32.totalorder %v1150, %v1236
        %vm1329 = vcmp.eq.s32.totalorder %v1150, %v1237
        %vm1330 = vcmp.eq.s32.totalorder %v1151, %v1236
        %vm1331 = vcmp.eq.s32.totalorder %v1151, %v1237
        %vm1332 = vcmp.eq.s32.totalorder %v1152, %v1236
        %vm1333 = vcmp.eq.s32.totalorder %v1152, %v1237
        %vm1334 = vcmp.eq.s32.totalorder %v1153, %v1236
        %vm1335 = vcmp.eq.s32.totalorder %v1153, %v1237
        %vm1336 = vcmp.eq.s32.totalorder %v1154, %v1236
        %vm1337 = vcmp.eq.s32.totalorder %v1154, %v1237
        %vm1338 = vcmp.eq.s32.totalorder %v1155, %v1236
        %vm1339 = vcmp.eq.s32.totalorder %v1155, %v1237
        %vm1340 = vcmp.eq.s32.totalorder %v1156, %v1236
        %vm1341 = vcmp.eq.s32.totalorder %v1156, %v1237
        %vm1342 = vcmp.eq.s32.totalorder %v1157, %v1236
        %vm1343 = vcmp.eq.s32.totalorder %v1157, %v1237
        %vm1344 = vcmp.eq.s32.totalorder %v1158, %v1236
        %vm1345 = vcmp.eq.s32.totalorder %v1158, %v1237
        %vm1346 = vcmp.eq.s32.totalorder %v1159, %v1236
        %vm1347 = vcmp.eq.s32.totalorder %v1159, %v1237
        %vm1348 = vcmp.eq.s32.totalorder %v1160, %v1236
        %vm1349 = vcmp.eq.s32.totalorder %v1160, %v1237
        %vm1350 = vcmp.eq.s32.totalorder %v1161, %v1236
        %vm1351 = vcmp.eq.s32.totalorder %v1161, %v1237
        %vm1352 = vcmp.eq.s32.totalorder %v1162, %v1236
        %vm1353 = vcmp.eq.s32.totalorder %v1162, %v1237
        %vm1354 = vcmp.eq.s32.totalorder %v1163, %v1236
        %vm1355 = vcmp.eq.s32.totalorder %v1163, %v1237
        %vm1356 = vcmp.eq.s32.totalorder %v1164, %v1236
        %vm1357 = vcmp.eq.s32.totalorder %v1164, %v1237
        %vm1358 = vcmp.eq.s32.totalorder %v1165, %v1236
        %vm1359 = vcmp.eq.s32.totalorder %v1165, %v1237
        %vm1360 = vcmp.eq.s32.totalorder %v1166, %v1236
        %vm1361 = vcmp.eq.s32.totalorder %v1166, %v1237
        %vm1362 = vcmp.eq.s32.totalorder %v1167, %v1236
        %vm1363 = vcmp.eq.s32.totalorder %v1167, %v1237
        %vm1364 = vcmp.eq.s32.totalorder %v1168, %v1236
        %vm1365 = vcmp.eq.s32.totalorder %v1168, %v1237
        %vm1366 = vcmp.eq.s32.totalorder %v1169, %v1236
        %vm1367 = vcmp.eq.s32.totalorder %v1169, %v1237
        %vm1368 = vcmp.eq.s32.totalorder %v1170, %v1236
        %vm1369 = vcmp.eq.s32.totalorder %v1170, %v1237
        %vm1370 = vcmp.eq.s32.totalorder %v1171, %v1236
        %vm1371 = vcmp.eq.s32.totalorder %v1171, %v1237
        %vm1372 = vcmp.eq.s32.totalorder %v1172, %v1236
        %vm1373 = vcmp.eq.s32.totalorder %v1172, %v1237
        %vm1374 = vcmp.eq.s32.totalorder %v1173, %v1236
        %vm1375 = vcmp.eq.s32.totalorder %v1173, %v1237
        %vm1376 = vcmp.eq.s32.totalorder %v1174, %v1236
        %vm1377 = vcmp.eq.s32.totalorder %v1174, %v1237
        %vm1378 = vcmp.eq.s32.totalorder %v1175, %v1236
        %vm1379 = vcmp.eq.s32.totalorder %v1175, %v1237
        %vm1380 = vcmp.eq.s32.totalorder %v1176, %v1236
        %vm1381 = vcmp.eq.s32.totalorder %v1176, %v1237
        %vm1382 = vcmp.eq.s32.totalorder %v1177, %v1236
        %vm1383 = vcmp.eq.s32.totalorder %v1177, %v1237
        %vm1384 = vcmp.eq.s32.totalorder %v1178, %v1236
        %vm1385 = vcmp.eq.s32.totalorder %v1178, %v1237
        %vm1386 = vcmp.eq.s32.totalorder %v1179, %v1236
        %vm1387 = vcmp.eq.s32.totalorder %v1179, %v1237
        %vm1388 = vcmp.eq.s32.totalorder %v1180, %v1236
        %vm1389 = vcmp.eq.s32.totalorder %v1180, %v1237
        %vm1390 = vcmp.eq.s32.totalorder %v1181, %v1236
        %vm1391 = vcmp.eq.s32.totalorder %v1181, %v1237
        %vm1392 = vcmp.eq.s32.totalorder %v1182, %v1236
        %vm1393 = vcmp.eq.s32.totalorder %v1182, %v1237
        %vm1394 = vcmp.eq.s32.totalorder %v1183, %v1236
        %vm1395 = vcmp.eq.s32.totalorder %v1183, %v1237
        %vm1396 = vcmp.eq.s32.totalorder %v1184, %v1236
        %vm1397 = vcmp.eq.s32.totalorder %v1184, %v1237
        %vm1398 = vcmp.eq.s32.totalorder %v1185, %v1236
        %vm1399 = vcmp.eq.s32.totalorder %v1185, %v1237
        %vm1400 = vcmp.eq.s32.totalorder %v1186, %v1236
        %vm1401 = vcmp.eq.s32.totalorder %v1186, %v1237
        %vm1402 = vcmp.eq.s32.totalorder %v1187, %v1236
        %vm1403 = vcmp.eq.s32.totalorder %v1187, %v1237
        %vm1404 = vcmp.eq.s32.totalorder %v1188, %v1236
        %vm1405 = vcmp.eq.s32.totalorder %v1188, %v1237
        %vm1406 = vcmp.eq.s32.totalorder %v1189, %v1236
        %vm1407 = vcmp.eq.s32.totalorder %v1189, %v1237
        %vm1408 = vcmp.eq.s32.totalorder %v1190, %v1236
        %vm1409 = vcmp.eq.s32.totalorder %v1190, %v1237
        %vm1410 = vcmp.eq.s32.totalorder %v1191, %v1236
        %vm1411 = vcmp.eq.s32.totalorder %v1191, %v1237
        %vm1412 = vcmp.eq.s32.totalorder %v1192, %v1236
        %vm1413 = vcmp.eq.s32.totalorder %v1192, %v1237
        %vm1414 = vcmp.eq.s32.totalorder %v1193, %v1236
        %vm1415 = vcmp.eq.s32.totalorder %v1193, %v1237
        %vm1416 = vcmp.eq.s32.totalorder %v1194, %v1236
        %vm1417 = vcmp.eq.s32.totalorder %v1194, %v1237
        %vm1418 = vcmp.eq.s32.totalorder %v1195, %v1236
        %vm1419 = vcmp.eq.s32.totalorder %v1195, %v1237
        %vm1420 = vcmp.eq.s32.totalorder %v1196, %v1236
        %vm1421 = vcmp.eq.s32.totalorder %v1196, %v1237
        %vm1422 = vcmp.eq.s32.totalorder %v1197, %v1236
        %vm1423 = vcmp.eq.s32.totalorder %v1197, %v1237
        %vm1424 = vcmp.eq.s32.totalorder %v1198, %v1236
        %vm1425 = vcmp.eq.s32.totalorder %v1198, %v1237
        %vm1426 = vcmp.eq.s32.totalorder %v1199, %v1236
        %vm1427 = vcmp.eq.s32.totalorder %v1199, %v1237
        %vm1428 = vcmp.eq.s32.totalorder %v1200, %v1236
        %vm1429 = vcmp.eq.s32.totalorder %v1200, %v1237
        %vm1430 = vcmp.eq.s32.totalorder %v1201, %v1236
        %vm1431 = vcmp.eq.s32.totalorder %v1201, %v1237
        %vm1432 = vcmp.eq.s32.totalorder %v1202, %v1236
        %vm1433 = vcmp.eq.s32.totalorder %v1202, %v1237
        %vm1434 = vcmp.eq.s32.totalorder %v1203, %v1236
        %vm1435 = vcmp.eq.s32.totalorder %v1203, %v1237
        %vm1436 = vcmp.eq.s32.totalorder %v1204, %v1236
        %vm1437 = vcmp.eq.s32.totalorder %v1204, %v1237
        %vm1438 = vcmp.eq.s32.totalorder %v1205, %v1236
        %vm1439 = vcmp.eq.s32.totalorder %v1205, %v1237
        %vm1440 = vcmp.eq.s32.totalorder %v1206, %v1236
        %vm1441 = vcmp.eq.s32.totalorder %v1206, %v1237
        %vm1442 = vcmp.eq.s32.totalorder %v1207, %v1236
        %vm1443 = vcmp.eq.s32.totalorder %v1207, %v1237
        %vm1444 = vcmp.eq.s32.totalorder %v1208, %v1236
        %vm1445 = vcmp.eq.s32.totalorder %v1208, %v1237
        %vm1446 = vcmp.eq.s32.totalorder %v1209, %v1236
        %vm1447 = vcmp.eq.s32.totalorder %v1209, %v1237
        %vm1448 = vcmp.eq.s32.totalorder %v1210, %v1236
        %vm1449 = vcmp.eq.s32.totalorder %v1210, %v1237
        %vm1450 = vcmp.eq.s32.totalorder %v1211, %v1236
        %vm1451 = vcmp.eq.s32.totalorder %v1211, %v1237
        %vm1452 = vcmp.eq.s32.totalorder %v1212, %v1236
        %vm1453 = vcmp.eq.s32.totalorder %v1212, %v1237
        %vm1454 = vcmp.eq.s32.totalorder %v1213, %v1236
        %vm1455 = vcmp.eq.s32.totalorder %v1213, %v1237
        %vm1456 = vcmp.eq.s32.totalorder %v1214, %v1236
        %vm1457 = vcmp.eq.s32.totalorder %v1214, %v1237
        %vm1458 = vcmp.eq.s32.totalorder %v1215, %v1236
        %vm1459 = vcmp.eq.s32.totalorder %v1215, %v1237
        %vm1460 = vcmp.eq.s32.totalorder %v1216, %v1236
        %vm1461 = vcmp.eq.s32.totalorder %v1216, %v1237
        %vm1462 = vcmp.eq.s32.totalorder %v1217, %v1236
        %vm1463 = vcmp.eq.s32.totalorder %v1217, %v1237
        %vm1464 = vcmp.eq.s32.totalorder %v1218, %v1236
        %vm1465 = vcmp.eq.s32.totalorder %v1218, %v1237
        %vm1466 = vcmp.eq.s32.totalorder %v1219, %v1236
        %vm1467 = vcmp.eq.s32.totalorder %v1219, %v1237
        %vm1468 = vcmp.eq.s32.totalorder %v1220, %v1236
        %vm1469 = vcmp.eq.s32.totalorder %v1220, %v1237
        %vm1470 = vcmp.eq.s32.totalorder %v1221, %v1236
        %vm1471 = vcmp.eq.s32.totalorder %v1221, %v1237
        %vm1472 = vcmp.eq.s32.totalorder %v1222, %v1236
        %vm1473 = vcmp.eq.s32.totalorder %v1222, %v1237
        %vm1474 = vcmp.eq.s32.totalorder %v1223, %v1236
        %vm1475 = vcmp.eq.s32.totalorder %v1223, %v1237
        %vm1476 = vcmp.eq.s32.totalorder %v1224, %v1236
        %vm1477 = vcmp.eq.s32.totalorder %v1224, %v1237
        %vm1478 = vcmp.eq.s32.totalorder %v1225, %v1236
        %vm1479 = vcmp.eq.s32.totalorder %v1225, %v1237
        %vm1480 = vcmp.eq.s32.totalorder %v1226, %v1236
        %vm1481 = vcmp.eq.s32.totalorder %v1226, %v1237
        %vm1482 = vcmp.eq.s32.totalorder %v1227, %v1236
        %vm1483 = vcmp.eq.s32.totalorder %v1227, %v1237
        %vm1484 = vcmp.eq.s32.totalorder %v1228, %v1236
        %vm1485 = vcmp.eq.s32.totalorder %v1228, %v1237
        %vm1486 = vcmp.eq.s32.totalorder %v1229, %v1236
        %vm1487 = vcmp.eq.s32.totalorder %v1229, %v1237
        %vm1488 = vcmp.eq.s32.totalorder %v1230, %v1236
        %vm1489 = vcmp.eq.s32.totalorder %v1230, %v1237
        %vm1490 = vcmp.eq.s32.totalorder %v1231, %v1236
        %vm1491 = vcmp.eq.s32.totalorder %v1231, %v1237
        %vm1492 = vcmp.eq.s32.totalorder %v1232, %v1236
        %vm1493 = vcmp.eq.s32.totalorder %v1232, %v1237
        %v1494 = vsel %vm1238, 1, 0
        %v1495 = vsel %vm1239, 1, 0
        %v1496 = vsel %vm1240, 1, 0
        %v1497 = vsel %vm1241, 1, 0
        %v1498 = vsel %vm1242, 1, 0
        %v1499 = vsel %vm1243, 1, 0
        %v1500 = vsel %vm1244, 1, 0
        %v1501 = vsel %vm1245, 1, 0
        %v1502 = vsel %vm1246, 1, 0
        %v1503 = vsel %vm1247, 1, 0
        %v1504 = vsel %vm1248, 1, 0
        %v1505 = vsel %vm1249, 1, 0
        %v1506 = vsel %vm1250, 1, 0
        %v1507 = vsel %vm1251, 1, 0
        %v1508 = vsel %vm1252, 1, 0
        %v1509 = vsel %vm1253, 1, 0
        %v1510 = vsel %vm1254, 1, 0
        %v1511 = vsel %vm1255, 1, 0
        %v1512 = vsel %vm1256, 1, 0
        %v1513 = vsel %vm1257, 1, 0
        %v1514 = vsel %vm1258, 1, 0
        %v1515 = vsel %vm1259, 1, 0
        %v1516 = vsel %vm1260, 1, 0
        %v1517 = vsel %vm1261, 1, 0
        %v1518 = vsel %vm1262, 1, 0
        %v1519 = vsel %vm1263, 1, 0
        %v1520 = vsel %vm1264, 1, 0
        %v1521 = vsel %vm1265, 1, 0
        %v1522 = vsel %vm1266, 1, 0
        %v1523 = vsel %vm1267, 1, 0
        %v1524 = vsel %vm1268, 1, 0
        %v1525 = vsel %vm1269, 1, 0
        %v1526 = vsel %vm1270, 1, 0
        %v1527 = vsel %vm1271, 1, 0
        %v1528 = vsel %vm1272, 1, 0
        %v1529 = vsel %vm1273, 1, 0
        %v1530 = vsel %vm1274, 1, 0
        %v1531 = vsel %vm1275, 1, 0
        %v1532 = vsel %vm1276, 1, 0
        %v1533 = vsel %vm1277, 1, 0
        %v1534 = vsel %vm1278, 1, 0
        %v1535 = vsel %vm1279, 1, 0
        %v1536 = vsel %vm1280, 1, 0
        %v1537 = vsel %vm1281, 1, 0
        %v1538 = vsel %vm1282, 1, 0
        %v1539 = vsel %vm1283, 1, 0
        %v1540 = vsel %vm1284, 1, 0
        %v1541 = vsel %vm1285, 1, 0
        %v1542 = vsel %vm1286, 1, 0
        %v1543 = vsel %vm1287, 1, 0
        %v1544 = vsel %vm1288, 1, 0
        %v1545 = vsel %vm1289, 1, 0
        %v1546 = vsel %vm1290, 1, 0
        %v1547 = vsel %vm1291, 1, 0
        %v1548 = vsel %vm1292, 1, 0
        %v1549 = vsel %vm1293, 1, 0
        %v1550 = vsel %vm1294, 1, 0
        %v1551 = vsel %vm1295, 1, 0
        %v1552 = vsel %vm1296, 1, 0
        %v1553 = vsel %vm1297, 1, 0
        %v1554 = vsel %vm1298, 1, 0
        %v1555 = vsel %vm1299, 1, 0
        %v1556 = vsel %vm1300, 1, 0
        %v1557 = vsel %vm1301, 1, 0
        %v1558 = vsel %vm1302, 1, 0
        %v1559 = vsel %vm1303, 1, 0
        %v1560 = vsel %vm1304, 1, 0
        %v1561 = vsel %vm1305, 1, 0
        %v1562 = vsel %vm1306, 1, 0
        %v1563 = vsel %vm1307, 1, 0
        %v1564 = vsel %vm1308, 1, 0
        %v1565 = vsel %vm1309, 1, 0
        %v1566 = vsel %vm1310, 1, 0
        %v1567 = vsel %vm1311, 1, 0
        %v1568 = vsel %vm1312, 1, 0
        %v1569 = vsel %vm1313, 1, 0
        %v1570 = vsel %vm1314, 1, 0
        %v1571 = vsel %vm1315, 1, 0
        %v1572 = vsel %vm1316, 1, 0
        %v1573 = vsel %vm1317, 1, 0
        %v1574 = vsel %vm1318, 1, 0
        %v1575 = vsel %vm1319, 1, 0
        %v1576 = vsel %vm1320, 1, 0
        %v1577 = vsel %vm1321, 1, 0
        %v1578 = vsel %vm1322, 1, 0
        %v1579 = vsel %vm1323, 1, 0
        %v1580 = vsel %vm1324, 1, 0
        %v1581 = vsel %vm1325, 1, 0
        %v1582 = vsel %vm1326, 1, 0
        %v1583 = vsel %vm1327, 1, 0
        %v1584 = vsel %vm1328, 1, 0
        %v1585 = vsel %vm1329, 1, 0
        %v1586 = vsel %vm1330, 1, 0
        %v1587 = vsel %vm1331, 1, 0
        %v1588 = vsel %vm1332, 1, 0
        %v1589 = vsel %vm1333, 1, 0
        %v1590 = vsel %vm1334, 1, 0
        %v1591 = vsel %vm1335, 1, 0
        %v1592 = vsel %vm1336, 1, 0
        %v1593 = vsel %vm1337, 1, 0
        %v1594 = vsel %vm1338, 1, 0
        %v1595 = vsel %vm1339, 1, 0
        %v1596 = vsel %vm1340, 1, 0
        %v1597 = vsel %vm1341, 1, 0
        %v1598 = vsel %vm1342, 1, 0
        %v1599 = vsel %vm1343, 1, 0
        %v1600 = vsel %vm1344, 1, 0
        %v1601 = vsel %vm1345, 1, 0
        %v1602 = vsel %vm1346, 1, 0
        %v1603 = vsel %vm1347, 1, 0
        %v1604 = vsel %vm1348, 1, 0
        %v1605 = vsel %vm1349, 1, 0
        %v1606 = vsel %vm1350, 1, 0
        %v1607 = vsel %vm1351, 1, 0
        %v1608 = vsel %vm1352, 1, 0
        %v1609 = vsel %vm1353, 1, 0
        %v1610 = vsel %vm1354, 1, 0
        %v1611 = vsel %vm1355, 1, 0
        %v1612 = vsel %vm1356, 1, 0
        %v1613 = vsel %vm1357, 1, 0
        %v1614 = vsel %vm1358, 1, 0
        %v1615 = vsel %vm1359, 1, 0
        %v1616 = vsel %vm1360, 1, 0
        %v1617 = vsel %vm1361, 1, 0
        %v1618 = vsel %vm1362, 1, 0
        %v1619 = vsel %vm1363, 1, 0
        %v1620 = vsel %vm1364, 1, 0
        %v1621 = vsel %vm1365, 1, 0
        %v1622 = vsel %vm1366, 1, 0
        %v1623 = vsel %vm1367, 1, 0
        %v1624 = vsel %vm1368, 1, 0
        %v1625 = vsel %vm1369, 1, 0
        %v1626 = vsel %vm1370, 1, 0
        %v1627 = vsel %vm1371, 1, 0
        %v1628 = vsel %vm1372, 1, 0
        %v1629 = vsel %vm1373, 1, 0
        %v1630 = vsel %vm1374, 1, 0
        %v1631 = vsel %vm1375, 1, 0
        %v1632 = vsel %vm1376, 1, 0
        %v1633 = vsel %vm1377, 1, 0
        %v1634 = vsel %vm1378, 1, 0
        %v1635 = vsel %vm1379, 1, 0
        %v1636 = vsel %vm1380, 1, 0
        %v1637 = vsel %vm1381, 1, 0
        %v1638 = vsel %vm1382, 1, 0
        %v1639 = vsel %vm1383, 1, 0
        %v1640 = vsel %vm1384, 1, 0
        %v1641 = vsel %vm1385, 1, 0
        %v1642 = vsel %vm1386, 1, 0
        %v1643 = vsel %vm1387, 1, 0
        %v1644 = vsel %vm1388, 1, 0
        %v1645 = vsel %vm1389, 1, 0
        %v1646 = vsel %vm1390, 1, 0
        %v1647 = vsel %vm1391, 1, 0
        %v1648 = vsel %vm1392, 1, 0
        %v1649 = vsel %vm1393, 1, 0
        %v1650 = vsel %vm1394, 1, 0
        %v1651 = vsel %vm1395, 1, 0
        %v1652 = vsel %vm1396, 1, 0
        %v1653 = vsel %vm1397, 1, 0
        %v1654 = vsel %vm1398, 1, 0
        %v1655 = vsel %vm1399, 1, 0
        %v1656 = vsel %vm1400, 1, 0
        %v1657 = vsel %vm1401, 1, 0
        %v1658 = vsel %vm1402, 1, 0
        %v1659 = vsel %vm1403, 1, 0
        %v1660 = vsel %vm1404, 1, 0
        %v1661 = vsel %vm1405, 1, 0
        %v1662 = vsel %vm1406, 1, 0
        %v1663 = vsel %vm1407, 1, 0
        %v1664 = vsel %vm1408, 1, 0
        %v1665 = vsel %vm1409, 1, 0
        %v1666 = vsel %vm1410, 1, 0
        %v1667 = vsel %vm1411, 1, 0
        %v1668 = vsel %vm1412, 1, 0
        %v1669 = vsel %vm1413, 1, 0
        %v1670 = vsel %vm1414, 1, 0
        %v1671 = vsel %vm1415, 1, 0
        %v1672 = vsel %vm1416, 1, 0
        %v1673 = vsel %vm1417, 1, 0
        %v1674 = vsel %vm1418, 1, 0
        %v1675 = vsel %vm1419, 1, 0
        %v1676 = vsel %vm1420, 1, 0
        %v1677 = vsel %vm1421, 1, 0
        %v1678 = vsel %vm1422, 1, 0
        %v1679 = vsel %vm1423, 1, 0
        %v1680 = vsel %vm1424, 1, 0
        %v1681 = vsel %vm1425, 1, 0
        %v1682 = vsel %vm1426, 1, 0
        %v1683 = vsel %vm1427, 1, 0
        %v1684 = vsel %vm1428, 1, 0
        %v1685 = vsel %vm1429, 1, 0
        %v1686 = vsel %vm1430, 1, 0
        %v1687 = vsel %vm1431, 1, 0
        %v1688 = vsel %vm1432, 1, 0
        %v1689 = vsel %vm1433, 1, 0
        %v1690 = vsel %vm1434, 1, 0
        %v1691 = vsel %vm1435, 1, 0
        %v1692 = vsel %vm1436, 1, 0
        %v1693 = vsel %vm1437, 1, 0
        %v1694 = vsel %vm1438, 1, 0
        %v1695 = vsel %vm1439, 1, 0
        %v1696 = vsel %vm1440, 1, 0
        %v1697 = vsel %vm1441, 1, 0
        %v1698 = vsel %vm1442, 1, 0
        %v1699 = vsel %vm1443, 1, 0
        %v1700 = vsel %vm1444, 1, 0
        %v1701 = vsel %vm1445, 1, 0
        %v1702 = vsel %vm1446, 1, 0
        %v1703 = vsel %vm1447, 1, 0
        %v1704 = vsel %vm1448, 1, 0
        %v1705 = vsel %vm1449, 1, 0
        %v1706 = vsel %vm1450, 1, 0
        %v1707 = vsel %vm1451, 1, 0
        %v1708 = vsel %vm1452, 1, 0
        %v1709 = vsel %vm1453, 1, 0
        %v1710 = vsel %vm1454, 1, 0
        %v1711 = vsel %vm1455, 1, 0
        %v1712 = vsel %vm1456, 1, 0
        %v1713 = vsel %vm1457, 1, 0
        %v1714 = vsel %vm1458, 1, 0
        %v1715 = vsel %vm1459, 1, 0
        %v1716 = vsel %vm1460, 1, 0
        %v1717 = vsel %vm1461, 1, 0
        %v1718 = vsel %vm1462, 1, 0
        %v1719 = vsel %vm1463, 1, 0
        %v1720 = vsel %vm1464, 1, 0
        %v1721 = vsel %vm1465, 1, 0
        %v1722 = vsel %vm1466, 1, 0
        %v1723 = vsel %vm1467, 1, 0
        %v1724 = vsel %vm1468, 1, 0
        %v1725 = vsel %vm1469, 1, 0
        %v1726 = vsel %vm1470, 1, 0
        %v1727 = vsel %vm1471, 1, 0
        %v1728 = vsel %vm1472, 1, 0
        %v1729 = vsel %vm1473, 1, 0
        %v1730 = vsel %vm1474, 1, 0
        %v1731 = vsel %vm1475, 1, 0
        %v1732 = vsel %vm1476, 1, 0
        %v1733 = vsel %vm1477, 1, 0
        %v1734 = vsel %vm1478, 1, 0
        %v1735 = vsel %vm1479, 1, 0
        %v1736 = vsel %vm1480, 1, 0
        %v1737 = vsel %vm1481, 1, 0
        %v1738 = vsel %vm1482, 1, 0
        %v1739 = vsel %vm1483, 1, 0
        %v1740 = vsel %vm1484, 1, 0
        %v1741 = vsel %vm1485, 1, 0
        %v1742 = vsel %vm1486, 1, 0
        %v1743 = vsel %vm1487, 1, 0
        %v1744 = vsel %vm1488, 1, 0
        %v1745 = vsel %vm1489, 1, 0
        %v1746 = vsel %vm1490, 1, 0
        %v1747 = vsel %vm1491, 1, 0
        %v1748 = vsel %vm1492, 1, 0
        %v1749 = vsel %vm1493, 1, 0
        %v1750 = vcvt.s32.f32 %v1494
        %v1751 = vcvt.s32.f32 %v1495
        %v1752 = vcvt.s32.f32 %v1496
        %v1753 = vcvt.s32.f32 %v1497
        %v1754 = vcvt.s32.f32 %v1498
        %v1755 = vcvt.s32.f32 %v1499
        %v1756 = vcvt.s32.f32 %v1500
        %v1757 = vcvt.s32.f32 %v1501
        %v1758 = vcvt.s32.f32 %v1502
        %v1759 = vcvt.s32.f32 %v1503
        %v1760 = vcvt.s32.f32 %v1504
        %v1761 = vcvt.s32.f32 %v1505
        %v1762 = vcvt.s32.f32 %v1506
        %v1763 = vcvt.s32.f32 %v1507
        %v1764 = vcvt.s32.f32 %v1508
        %v1765 = vcvt.s32.f32 %v1509
        %v1766 = vcvt.s32.f32 %v1510
        %v1767 = vcvt.s32.f32 %v1511
        %v1768 = vcvt.s32.f32 %v1512
        %v1769 = vcvt.s32.f32 %v1513
        %v1770 = vcvt.s32.f32 %v1514
        %v1771 = vcvt.s32.f32 %v1515
        %v1772 = vcvt.s32.f32 %v1516
        %v1773 = vcvt.s32.f32 %v1517
        %v1774 = vcvt.s32.f32 %v1518
        %v1775 = vcvt.s32.f32 %v1519
        %v1776 = vcvt.s32.f32 %v1520
        %v1777 = vcvt.s32.f32 %v1521
        %v1778 = vcvt.s32.f32 %v1522
        %v1779 = vcvt.s32.f32 %v1523
        %v1780 = vcvt.s32.f32 %v1524
        %v1781 = vcvt.s32.f32 %v1525
        %v1782 = vcvt.s32.f32 %v1526
        %v1783 = vcvt.s32.f32 %v1527
        %v1784 = vcvt.s32.f32 %v1528
        %v1785 = vcvt.s32.f32 %v1529
        %v1786 = vcvt.s32.f32 %v1530
        %v1787 = vcvt.s32.f32 %v1531
        %v1788 = vcvt.s32.f32 %v1532
        %v1789 = vcvt.s32.f32 %v1533
        %v1790 = vcvt.s32.f32 %v1534
        %v1791 = vcvt.s32.f32 %v1535
        %v1792 = vcvt.s32.f32 %v1536
        %v1793 = vcvt.s32.f32 %v1537
        %v1794 = vcvt.s32.f32 %v1538
        %v1795 = vcvt.s32.f32 %v1539
        %v1796 = vcvt.s32.f32 %v1540
        %v1797 = vcvt.s32.f32 %v1541
        %v1798 = vcvt.s32.f32 %v1542
        %v1799 = vcvt.s32.f32 %v1543
        %v1800 = vcvt.s32.f32 %v1544
        %v1801 = vcvt.s32.f32 %v1545
        %v1802 = vcvt.s32.f32 %v1546
        %v1803 = vcvt.s32.f32 %v1547
        %v1804 = vcvt.s32.f32 %v1548
        %v1805 = vcvt.s32.f32 %v1549
        %v1806 = vcvt.s32.f32 %v1550
        %v1807 = vcvt.s32.f32 %v1551
        %v1808 = vcvt.s32.f32 %v1552
        %v1809 = vcvt.s32.f32 %v1553
        %v1810 = vcvt.s32.f32 %v1554
        %v1811 = vcvt.s32.f32 %v1555
        %v1812 = vcvt.s32.f32 %v1556
        %v1813 = vcvt.s32.f32 %v1557
        %v1814 = vcvt.s32.f32 %v1558
        %v1815 = vcvt.s32.f32 %v1559
        %v1816 = vcvt.s32.f32 %v1560
        %v1817 = vcvt.s32.f32 %v1561
        %v1818 = vcvt.s32.f32 %v1562
        %v1819 = vcvt.s32.f32 %v1563
        %v1820 = vcvt.s32.f32 %v1564
        %v1821 = vcvt.s32.f32 %v1565
        %v1822 = vcvt.s32.f32 %v1566
        %v1823 = vcvt.s32.f32 %v1567
        %v1824 = vcvt.s32.f32 %v1568
        %v1825 = vcvt.s32.f32 %v1569
        %v1826 = vcvt.s32.f32 %v1570
        %v1827 = vcvt.s32.f32 %v1571
        %v1828 = vcvt.s32.f32 %v1572
        %v1829 = vcvt.s32.f32 %v1573
        %v1830 = vcvt.s32.f32 %v1574
        %v1831 = vcvt.s32.f32 %v1575
        %v1832 = vcvt.s32.f32 %v1576
        %v1833 = vcvt.s32.f32 %v1577
        %v1834 = vcvt.s32.f32 %v1578
        %v1835 = vcvt.s32.f32 %v1579
        %v1836 = vcvt.s32.f32 %v1580
        %v1837 = vcvt.s32.f32 %v1581
        %v1838 = vcvt.s32.f32 %v1582
        %v1839 = vcvt.s32.f32 %v1583
        %v1840 = vcvt.s32.f32 %v1584
        %v1841 = vcvt.s32.f32 %v1585
        %v1842 = vcvt.s32.f32 %v1586
        %v1843 = vcvt.s32.f32 %v1587
        %v1844 = vcvt.s32.f32 %v1588
        %v1845 = vcvt.s32.f32 %v1589
        %v1846 = vcvt.s32.f32 %v1590
        %v1847 = vcvt.s32.f32 %v1591
        %v1848 = vcvt.s32.f32 %v1592
        %v1849 = vcvt.s32.f32 %v1593
        %v1850 = vcvt.s32.f32 %v1594
        %v1851 = vcvt.s32.f32 %v1595
        %v1852 = vcvt.s32.f32 %v1596
        %v1853 = vcvt.s32.f32 %v1597
        %v1854 = vcvt.s32.f32 %v1598
        %v1855 = vcvt.s32.f32 %v1599
        %v1856 = vcvt.s32.f32 %v1600
        %v1857 = vcvt.s32.f32 %v1601
        %v1858 = vcvt.s32.f32 %v1602
        %v1859 = vcvt.s32.f32 %v1603
        %v1860 = vcvt.s32.f32 %v1604
        %v1861 = vcvt.s32.f32 %v1605
        %v1862 = vcvt.s32.f32 %v1606
        %v1863 = vcvt.s32.f32 %v1607
        %v1864 = vcvt.s32.f32 %v1608
        %v1865 = vcvt.s32.f32 %v1609
        %v1866 = vcvt.s32.f32 %v1610
        %v1867 = vcvt.s32.f32 %v1611
        %v1868 = vcvt.s32.f32 %v1612
        %v1869 = vcvt.s32.f32 %v1613
        %v1870 = vcvt.s32.f32 %v1614
        %v1871 = vcvt.s32.f32 %v1615
        %v1872 = vcvt.s32.f32 %v1616
        %v1873 = vcvt.s32.f32 %v1617
        %v1874 = vcvt.s32.f32 %v1618
        %v1875 = vcvt.s32.f32 %v1619
        %v1876 = vcvt.s32.f32 %v1620
        %v1877 = vcvt.s32.f32 %v1621
        %v1878 = vcvt.s32.f32 %v1622
        %v1879 = vcvt.s32.f32 %v1623
        %v1880 = vcvt.s32.f32 %v1624
        %v1881 = vcvt.s32.f32 %v1625
        %v1882 = vcvt.s32.f32 %v1626
        %v1883 = vcvt.s32.f32 %v1627
        %v1884 = vcvt.s32.f32 %v1628
        %v1885 = vcvt.s32.f32 %v1629
        %v1886 = vcvt.s32.f32 %v1630
        %v1887 = vcvt.s32.f32 %v1631
        %v1888 = vcvt.s32.f32 %v1632
        %v1889 = vcvt.s32.f32 %v1633
        %v1890 = vcvt.s32.f32 %v1634
        %v1891 = vcvt.s32.f32 %v1635
        %v1892 = vcvt.s32.f32 %v1636
        %v1893 = vcvt.s32.f32 %v1637
        %v1894 = vcvt.s32.f32 %v1638
        %v1895 = vcvt.s32.f32 %v1639
        %v1896 = vcvt.s32.f32 %v1640
        %v1897 = vcvt.s32.f32 %v1641
        %v1898 = vcvt.s32.f32 %v1642
        %v1899 = vcvt.s32.f32 %v1643
        %v1900 = vcvt.s32.f32 %v1644
        %v1901 = vcvt.s32.f32 %v1645
        %v1902 = vcvt.s32.f32 %v1646
        %v1903 = vcvt.s32.f32 %v1647
        %v1904 = vcvt.s32.f32 %v1648
        %v1905 = vcvt.s32.f32 %v1649
        %v1906 = vcvt.s32.f32 %v1650
        %v1907 = vcvt.s32.f32 %v1651
        %v1908 = vcvt.s32.f32 %v1652
        %v1909 = vcvt.s32.f32 %v1653
        %v1910 = vcvt.s32.f32 %v1654
        %v1911 = vcvt.s32.f32 %v1655
        %v1912 = vcvt.s32.f32 %v1656
        %v1913 = vcvt.s32.f32 %v1657
        %v1914 = vcvt.s32.f32 %v1658
        %v1915 = vcvt.s32.f32 %v1659
        %v1916 = vcvt.s32.f32 %v1660
        %v1917 = vcvt.s32.f32 %v1661
        %v1918 = vcvt.s32.f32 %v1662
        %v1919 = vcvt.s32.f32 %v1663
        %v1920 = vcvt.s32.f32 %v1664
        %v1921 = vcvt.s32.f32 %v1665
        %v1922 = vcvt.s32.f32 %v1666
        %v1923 = vcvt.s32.f32 %v1667
        %v1924 = vcvt.s32.f32 %v1668
        %v1925 = vcvt.s32.f32 %v1669
        %v1926 = vcvt.s32.f32 %v1670
        %v1927 = vcvt.s32.f32 %v1671
        %v1928 = vcvt.s32.f32 %v1672
        %v1929 = vcvt.s32.f32 %v1673
        %v1930 = vcvt.s32.f32 %v1674
        %v1931 = vcvt.s32.f32 %v1675
        %v1932 = vcvt.s32.f32 %v1676
        %v1933 = vcvt.s32.f32 %v1677
        %v1934 = vcvt.s32.f32 %v1678
        %v1935 = vcvt.s32.f32 %v1679
        %v1936 = vcvt.s32.f32 %v1680
        %v1937 = vcvt.s32.f32 %v1681
        %v1938 = vcvt.s32.f32 %v1682
        %v1939 = vcvt.s32.f32 %v1683
        %v1940 = vcvt.s32.f32 %v1684
        %v1941 = vcvt.s32.f32 %v1685
        %v1942 = vcvt.s32.f32 %v1686
        %v1943 = vcvt.s32.f32 %v1687
        %v1944 = vcvt.s32.f32 %v1688
        %v1945 = vcvt.s32.f32 %v1689
        %v1946 = vcvt.s32.f32 %v1690
        %v1947 = vcvt.s32.f32 %v1691
        %v1948 = vcvt.s32.f32 %v1692
        %v1949 = vcvt.s32.f32 %v1693
        %v1950 = vcvt.s32.f32 %v1694
        %v1951 = vcvt.s32.f32 %v1695
        %v1952 = vcvt.s32.f32 %v1696
        %v1953 = vcvt.s32.f32 %v1697
        %v1954 = vcvt.s32.f32 %v1698
        %v1955 = vcvt.s32.f32 %v1699
        %v1956 = vcvt.s32.f32 %v1700
        %v1957 = vcvt.s32.f32 %v1701
        %v1958 = vcvt.s32.f32 %v1702
        %v1959 = vcvt.s32.f32 %v1703
        %v1960 = vcvt.s32.f32 %v1704
        %v1961 = vcvt.s32.f32 %v1705
        %v1962 = vcvt.s32.f32 %v1706
        %v1963 = vcvt.s32.f32 %v1707
        %v1964 = vcvt.s32.f32 %v1708
        %v1965 = vcvt.s32.f32 %v1709
        %v1966 = vcvt.s32.f32 %v1710
        %v1967 = vcvt.s32.f32 %v1711
        %v1968 = vcvt.s32.f32 %v1712
        %v1969 = vcvt.s32.f32 %v1713
        %v1970 = vcvt.s32.f32 %v1714
        %v1971 = vcvt.s32.f32 %v1715
        %v1972 = vcvt.s32.f32 %v1716
        %v1973 = vcvt.s32.f32 %v1717
        %v1974 = vcvt.s32.f32 %v1718
        %v1975 = vcvt.s32.f32 %v1719
        %v1976 = vcvt.s32.f32 %v1720
        %v1977 = vcvt.s32.f32 %v1721
        %v1978 = vcvt.s32.f32 %v1722
        %v1979 = vcvt.s32.f32 %v1723
        %v1980 = vcvt.s32.f32 %v1724
        %v1981 = vcvt.s32.f32 %v1725
        %v1982 = vcvt.s32.f32 %v1726
        %v1983 = vcvt.s32.f32 %v1727
        %v1984 = vcvt.s32.f32 %v1728
        %v1985 = vcvt.s32.f32 %v1729
        %v1986 = vcvt.s32.f32 %v1730
        %v1987 = vcvt.s32.f32 %v1731
        %v1988 = vcvt.s32.f32 %v1732
        %v1989 = vcvt.s32.f32 %v1733
        %v1990 = vcvt.s32.f32 %v1734
        %v1991 = vcvt.s32.f32 %v1735
        %v1992 = vcvt.s32.f32 %v1736
        %v1993 = vcvt.s32.f32 %v1737
        %v1994 = vcvt.s32.f32 %v1738
        %v1995 = vcvt.s32.f32 %v1739
        %v1996 = vcvt.s32.f32 %v1740
        %v1997 = vcvt.s32.f32 %v1741
        %v1998 = vcvt.s32.f32 %v1742
        %v1999 = vcvt.s32.f32 %v1743
        %v2000 = vcvt.s32.f32 %v1744
        %v2001 = vcvt.s32.f32 %v1745
        %v2002 = vcvt.s32.f32 %v1746
        %v2003 = vcvt.s32.f32 %v1747
        %v2004 = vcvt.s32.f32 %v1748
        %v2005 = vcvt.s32.f32 %v1749
        %vm2006 = vcmask 1022976
        %v2008 = vsel %vm2006, %v1103, 0
        %vm2010 = vcmask 1044480
        %v2012 = vsel %vm2010, %v2004, 0
        %v2015 = vsel %vm2010, %v2005, 0
        %2017 = vmatprep.subr.mxu0 %v1781
        %2018 = vmatpush1.msra.mxu0 %v1780
        %2019 = vmatprep.subr.mxu0 %v1779
        %2020 = vmatpush1.msra.mxu0 %v1778
        %2021 = vmatprep.subr.mxu0 %v1777
        %2022 = vmatpush1.msra.mxu0 %v1776
        %2023 = vmatprep.subr.mxu0 %v1775
        %2024 = vmatpush1.msra.mxu0 %v1774
        %2025 = vmatprep.subr.mxu0 %v1773
        %2026 = vmatpush1.msra.mxu0 %v1772
        %2027 = vmatprep.subr.mxu0 %v1771
        %2028 = vmatpush1.msra.mxu0 %v1770
        %2029 = vmatprep.subr.mxu0 %v1769
        %2030 = vmatpush1.msra.mxu0 %v1768
        %2031 = vmatprep.subr.mxu0 %v1767
        %2032 = vmatpush1.msra.mxu0 %v1766
        %2033 = vmatprep.subr.mxu0 %v1765
        %2034 = vmatpush1.msra.mxu0 %v1764
        %2035 = vmatprep.subr.mxu0 %v1763
        %2036 = vmatpush1.msra.mxu0 %v1762
        %2037 = vmatprep.subr.mxu0 %v1761
        %2038 = vmatpush1.msra.mxu0 %v1760
        %2039 = vmatprep.subr.mxu0 %v1759
        %2040 = vmatpush1.msra.mxu0 %v1758
        %2041 = vmatprep.subr.mxu0 %v1757
        %2042 = vmatpush1.msra.mxu0 %v1756
        %2043 = vmatprep.subr.mxu0 %v1755
        %2044 = vmatpush1.msra.mxu0 %v1754
        %2045 = vmatprep.subr.mxu0 %v1753
        %2046 = vmatpush1.msra.mxu0 %v1752
        %2047 = vmatprep.subr.mxu0 %v1751
        %2048 = vmatpush1.msra.mxu0 %v1750
        %2049 = vmatprep.subr.mxu0 %v1813
        %2050 = vmatpush2.msra.mxu0 %v1812
        %2051 = vmatprep.subr.mxu0 %v1811
        %2052 = vmatpush2.msra.mxu0 %v1810
        %2053 = vmatprep.subr.mxu0 %v1809
        %2054 = vmatpush2.msra.mxu0 %v1808
        %2055 = vmatprep.subr.mxu0 %v1807
        %2056 = vmatpush2.msra.mxu0 %v1806
        %2057 = vmatprep.subr.mxu0 %v1805
        %2058 = vmatpush2.msra.mxu0 %v1804
        %2059 = vmatprep.subr.mxu0 %v1803
        %2060 = vmatpush2.msra.mxu0 %v1802
        %2061 = vmatprep.subr.mxu0 %v1801
        %2062 = vmatpush2.msra.mxu0 %v1800
        %2063 = vmatprep.subr.mxu0 %v1799
        %2064 = vmatpush2.msra.mxu0 %v1798
        %2065 = vmatprep.subr.mxu0 %v1797
        %2066 = vmatpush2.msra.mxu0 %v1796
        %2067 = vmatprep.subr.mxu0 %v1795
        %2068 = vmatpush2.msra.mxu0 %v1794
        %2069 = vmatprep.subr.mxu0 %v1793
        %2070 = vmatpush2.msra.mxu0 %v1792
        %2071 = vmatprep.subr.mxu0 %v1791
        %2072 = vmatpush2.msra.mxu0 %v1790
        %2073 = vmatprep.subr.mxu0 %v1789
        %2074 = vmatpush2.msra.mxu0 %v1788
        %2075 = vmatprep.subr.mxu0 %v1787
        %2076 = vmatpush2.msra.mxu0 %v1786
        %2077 = vmatprep.subr.mxu0 %v1785
        %2078 = vmatpush2.msra.mxu0 %v1784
        %2079 = vmatprep.subr.mxu0 %v1783
        %2080 = vmatpush2.msra.mxu0 %v1782
        %2081 = vmatprep.mubr.f32.mxu0 %v1097
        %2082 = vmatmul.mubr.f32.gmra.mxu0 %v1096
        %v2083 = vpop.f32.mrf.mxu0
        %v2084 = vadd.f32 0.0, %v2083
        %v2085 = vpop.f32.mrf.mxu0
        %v2086 = vadd.f32 0.0, %v2085
        %2087 = vdwg.mxu0
        %2088 = vmatprep.subr.mxu0 %v1845
        %2089 = vmatpush1.msra.mxu0 %v1844
        %2090 = vmatprep.subr.mxu0 %v1843
        %2091 = vmatpush1.msra.mxu0 %v1842
        %2092 = vmatprep.subr.mxu0 %v1841
        %2093 = vmatpush1.msra.mxu0 %v1840
        %2094 = vmatprep.subr.mxu0 %v1839
        %2095 = vmatpush1.msra.mxu0 %v1838
        %2096 = vmatprep.subr.mxu0 %v1837
        %2097 = vmatpush1.msra.mxu0 %v1836
        %2098 = vmatprep.subr.mxu0 %v1835
        %2099 = vmatpush1.msra.mxu0 %v1834
        %2100 = vmatprep.subr.mxu0 %v1833
        %2101 = vmatpush1.msra.mxu0 %v1832
        %2102 = vmatprep.subr.mxu0 %v1831
        %2103 = vmatpush1.msra.mxu0 %v1830
        %2104 = vmatprep.subr.mxu0 %v1829
        %2105 = vmatpush1.msra.mxu0 %v1828
        %2106 = vmatprep.subr.mxu0 %v1827
        %2107 = vmatpush1.msra.mxu0 %v1826
        %2108 = vmatprep.subr.mxu0 %v1825
        %2109 = vmatpush1.msra.mxu0 %v1824
        %2110 = vmatprep.subr.mxu0 %v1823
        %2111 = vmatpush1.msra.mxu0 %v1822
        %2112 = vmatprep.subr.mxu0 %v1821
        %2113 = vmatpush1.msra.mxu0 %v1820
        %2114 = vmatprep.subr.mxu0 %v1819
        %2115 = vmatpush1.msra.mxu0 %v1818
        %2116 = vmatprep.subr.mxu0 %v1817
        %2117 = vmatpush1.msra.mxu0 %v1816
        %2118 = vmatprep.subr.mxu0 %v1815
        %2119 = vmatpush1.msra.mxu0 %v1814
        %2120 = vmatprep.subr.mxu0 %v1877
        %2121 = vmatpush2.msra.mxu0 %v1876
        %2122 = vmatprep.subr.mxu0 %v1875
        %2123 = vmatpush2.msra.mxu0 %v1874
        %2124 = vmatprep.subr.mxu0 %v1873
        %2125 = vmatpush2.msra.mxu0 %v1872
        %2126 = vmatprep.subr.mxu0 %v1871
        %2127 = vmatpush2.msra.mxu0 %v1870
        %2128 = vmatprep.subr.mxu0 %v1869
        %2129 = vmatpush2.msra.mxu0 %v1868
        %2130 = vmatprep.subr.mxu0 %v1867
        %2131 = vmatpush2.msra.mxu0 %v1866
        %2132 = vmatprep.subr.mxu0 %v1865
        %2133 = vmatpush2.msra.mxu0 %v1864
        %2134 = vmatprep.subr.mxu0 %v1863
        %2135 = vmatpush2.msra.mxu0 %v1862
        %2136 = vmatprep.subr.mxu0 %v1861
        %2137 = vmatpush2.msra.mxu0 %v1860
        %2138 = vmatprep.subr.mxu0 %v1859
        %2139 = vmatpush2.msra.mxu0 %v1858
        %2140 = vmatprep.subr.mxu0 %v1857
        %2141 = vmatpush2.msra.mxu0 %v1856
        %2142 = vmatprep.subr.mxu0 %v1855
        %2143 = vmatpush2.msra.mxu0 %v1854
        %2144 = vmatprep.subr.mxu0 %v1853
        %2145 = vmatpush2.msra.mxu0 %v1852
        %2146 = vmatprep.subr.mxu0 %v1851
        %2147 = vmatpush2.msra.mxu0 %v1850
        %2148 = vmatprep.subr.mxu0 %v1849
        %2149 = vmatpush2.msra.mxu0 %v1848
        %2150 = vmatprep.subr.mxu0 %v1847
        %2151 = vmatpush2.msra.mxu0 %v1846
        %2152 = vmatprep.mubr.f32.mxu0 %v1099
        %2153 = vmatmul.mubr.f32.gmra.mxu0 %v1098
        %v2154 = vpop.f32.mrf.mxu0
        %v2155 = vadd.f32 %v2084, %v2154
        %v2156 = vpop.f32.mrf.mxu0
        %v2157 = vadd.f32 %v2086, %v2156
        %2158 = vdwg.mxu0
        %2159 = vmatprep.subr.mxu0 %v1909
        %2160 = vmatpush1.msra.mxu0 %v1908
        %2161 = vmatprep.subr.mxu0 %v1907
        %2162 = vmatpush1.msra.mxu0 %v1906
        %2163 = vmatprep.subr.mxu0 %v1905
        %2164 = vmatpush1.msra.mxu0 %v1904
        %2165 = vmatprep.subr.mxu0 %v1903
        %2166 = vmatpush1.msra.mxu0 %v1902
        %2167 = vmatprep.subr.mxu0 %v1901
        %2168 = vmatpush1.msra.mxu0 %v1900
        %2169 = vmatprep.subr.mxu0 %v1899
        %2170 = vmatpush1.msra.mxu0 %v1898
        %2171 = vmatprep.subr.mxu0 %v1897
        %2172 = vmatpush1.msra.mxu0 %v1896
        %2173 = vmatprep.subr.mxu0 %v1895
        %2174 = vmatpush1.msra.mxu0 %v1894
        %2175 = vmatprep.subr.mxu0 %v1893
        %2176 = vmatpush1.msra.mxu0 %v1892
        %2177 = vmatprep.subr.mxu0 %v1891
        %2178 = vmatpush1.msra.mxu0 %v1890
        %2179 = vmatprep.subr.mxu0 %v1889
        %2180 = vmatpush1.msra.mxu0 %v1888
        %2181 = vmatprep.subr.mxu0 %v1887
        %2182 = vmatpush1.msra.mxu0 %v1886
        %2183 = vmatprep.subr.mxu0 %v1885
        %2184 = vmatpush1.msra.mxu0 %v1884
        %2185 = vmatprep.subr.mxu0 %v1883
        %2186 = vmatpush1.msra.mxu0 %v1882
        %2187 = vmatprep.subr.mxu0 %v1881
        %2188 = vmatpush1.msra.mxu0 %v1880
        %2189 = vmatprep.subr.mxu0 %v1879
        %2190 = vmatpush1.msra.mxu0 %v1878
        %2191 = vmatprep.subr.mxu0 %v1941
        %2192 = vmatpush2.msra.mxu0 %v1940
        %2193 = vmatprep.subr.mxu0 %v1939
        %2194 = vmatpush2.msra.mxu0 %v1938
        %2195 = vmatprep.subr.mxu0 %v1937
        %2196 = vmatpush2.msra.mxu0 %v1936
        %2197 = vmatprep.subr.mxu0 %v1935
        %2198 = vmatpush2.msra.mxu0 %v1934
        %2199 = vmatprep.subr.mxu0 %v1933
        %2200 = vmatpush2.msra.mxu0 %v1932
        %2201 = vmatprep.subr.mxu0 %v1931
        %2202 = vmatpush2.msra.mxu0 %v1930
        %2203 = vmatprep.subr.mxu0 %v1929
        %2204 = vmatpush2.msra.mxu0 %v1928
        %2205 = vmatprep.subr.mxu0 %v1927
        %2206 = vmatpush2.msra.mxu0 %v1926
        %2207 = vmatprep.subr.mxu0 %v1925
        %2208 = vmatpush2.msra.mxu0 %v1924
        %2209 = vmatprep.subr.mxu0 %v1923
        %2210 = vmatpush2.msra.mxu0 %v1922
        %2211 = vmatprep.subr.mxu0 %v1921
        %2212 = vmatpush2.msra.mxu0 %v1920
        %2213 = vmatprep.subr.mxu0 %v1919
        %2214 = vmatpush2.msra.mxu0 %v1918
        %2215 = vmatprep.subr.mxu0 %v1917
        %2216 = vmatpush2.msra.mxu0 %v1916
        %2217 = vmatprep.subr.mxu0 %v1915
        %2218 = vmatpush2.msra.mxu0 %v1914
        %2219 = vmatprep.subr.mxu0 %v1913
        %2220 = vmatpush2.msra.mxu0 %v1912
        %2221 = vmatprep.subr.mxu0 %v1911
        %2222 = vmatpush2.msra.mxu0 %v1910
        %2223 = vmatprep.mubr.f32.mxu0 %v1101
        %2224 = vmatmul.mubr.f32.gmra.mxu0 %v1100
        %v2225 = vpop.f32.mrf.mxu0
        %v2226 = vadd.f32 %v2155, %v2225
        %v2227 = vpop.f32.mrf.mxu0
        %v2228 = vadd.f32 %v2157, %v2227
        %2229 = vdwg.mxu0
        %2230 = vmatprep.subr.mxu0 %v1973
        %2231 = vmatpush1.msra.mxu0 %v1972
        %2232 = vmatprep.subr.mxu0 %v1971
        %2233 = vmatpush1.msra.mxu0 %v1970
        %2234 = vmatprep.subr.mxu0 %v1969
        %2235 = vmatpush1.msra.mxu0 %v1968
        %2236 = vmatprep.subr.mxu0 %v1967
        %2237 = vmatpush1.msra.mxu0 %v1966
        %2238 = vmatprep.subr.mxu0 %v1965
        %2239 = vmatpush1.msra.mxu0 %v1964
        %2240 = vmatprep.subr.mxu0 %v1963
        %2241 = vmatpush1.msra.mxu0 %v1962
        %2242 = vmatprep.subr.mxu0 %v1961
        %2243 = vmatpush1.msra.mxu0 %v1960
        %2244 = vmatprep.subr.mxu0 %v1959
        %2245 = vmatpush1.msra.mxu0 %v1958
        %2246 = vmatprep.subr.mxu0 %v1957
        %2247 = vmatpush1.msra.mxu0 %v1956
        %2248 = vmatprep.subr.mxu0 %v1955
        %2249 = vmatpush1.msra.mxu0 %v1954
        %2250 = vmatprep.subr.mxu0 %v1953
        %2251 = vmatpush1.msra.mxu0 %v1952
        %2252 = vmatprep.subr.mxu0 %v1951
        %2253 = vmatpush1.msra.mxu0 %v1950
        %2254 = vmatprep.subr.mxu0 %v1949
        %2255 = vmatpush1.msra.mxu0 %v1948
        %2256 = vmatprep.subr.mxu0 %v1947
        %2257 = vmatpush1.msra.mxu0 %v1946
        %2258 = vmatprep.subr.mxu0 %v1945
        %2259 = vmatpush1.msra.mxu0 %v1944
        %2260 = vmatprep.subr.mxu0 %v1943
        %2261 = vmatpush1.msra.mxu0 %v1942
        %2262 = vmatprep.subr.mxu0 %v2015
        %2263 = vmatpush2.msra.mxu0 %v2012
        %2264 = vmatprep.subr.mxu0 %v2003
        %2265 = vmatpush2.msra.mxu0 %v2002
        %2266 = vmatprep.subr.mxu0 %v2001
        %2267 = vmatpush2.msra.mxu0 %v2000
        %2268 = vmatprep.subr.mxu0 %v1999
        %2269 = vmatpush2.msra.mxu0 %v1998
        %2270 = vmatprep.subr.mxu0 %v1997
        %2271 = vmatpush2.msra.mxu0 %v1996
        %2272 = vmatprep.subr.mxu0 %v1995
        %2273 = vmatpush2.msra.mxu0 %v1994
        %2274 = vmatprep.subr.mxu0 %v1993
        %2275 = vmatpush2.msra.mxu0 %v1992
        %2276 = vmatprep.subr.mxu0 %v1991
        %2277 = vmatpush2.msra.mxu0 %v1990
        %2278 = vmatprep.subr.mxu0 %v1989
        %2279 = vmatpush2.msra.mxu0 %v1988
        %2280 = vmatprep.subr.mxu0 %v1987
        %2281 = vmatpush2.msra.mxu0 %v1986
        %2282 = vmatprep.subr.mxu0 %v1985
        %2283 = vmatpush2.msra.mxu0 %v1984
        %2284 = vmatprep.subr.mxu0 %v1983
        %2285 = vmatpush2.msra.mxu0 %v1982
        %2286 = vmatprep.subr.mxu0 %v1981
        %2287 = vmatpush2.msra.mxu0 %v1980
        %2288 = vmatprep.subr.mxu0 %v1979
        %2289 = vmatpush2.msra.mxu0 %v1978
        %2290 = vmatprep.subr.mxu0 %v1977
        %2291 = vmatpush2.msra.mxu0 %v1976
        %2292 = vmatprep.subr.mxu0 %v1975
        %2293 = vmatpush2.msra.mxu0 %v1974
        %2294 = vmatprep.mubr.f32.mxu0 %v2008
        %2295 = vmatmul.mubr.f32.gmra.mxu0 %v1102
        %v2296 = vpop.f32.mrf.mxu0
        %v2297 = vadd.f32 %v2226, %v2296
        %v2298 = vpop.f32.mrf.mxu0
        %v2299 = vadd.f32 %v2228, %v2298
        %2300 = vdwg.mxu0
        %v2301 = vld [vmem:[#allocation6] sm:$0xff]
        %2303 = vrot.lane.b32.xlu0 %v2301, 120
        %v2304 = vpop.permute.xlu0 %2303
        %2307 = vrot.lane.b32.xlu0 %v2297, 127
        %v2308 = vpop.permute.xlu0 %2307
        %2309 = vrot.lane.b32.xlu0 %v2299, 127
        %v2310 = vpop.permute.xlu0 %2309
        %v2311 = vsel %vm374, %v2308, %v2310
        %v2312 = vsel %vm374, %v2310, %v373
        %vm2315 = vcmask 64512
        %v2316 = vsel %vm2315, %v2304, 0
        %2318 = vmatprep.subr.mxu0 0.0
        %2319 = vmatpush1.msra.mxu0 0.0
        %2320 = vmatprep.subr.mxu0 0.0
        %2321 = vmatpush1.msra.mxu0 0.0
        %2322 = vmatprep.subr.mxu0 0.0
        %2323 = vmatpush1.msra.mxu0 0.0
        %2324 = vmatprep.subr.mxu0 0.0
        %2325 = vmatpush1.msra.mxu0 0.0
        %2326 = vmatprep.subr.mxu0 0.0
        %2327 = vmatpush1.msra.mxu0 0.0
        %2328 = vmatprep.subr.mxu0 0.0
        %2329 = vmatpush1.msra.mxu0 0.0
        %2330 = vmatprep.subr.mxu0 0.0
        %2331 = vmatpush1.msra.mxu0 0.0
        %2332 = vmatprep.subr.mxu0 0.0
        %2333 = vmatpush1.msra.mxu0 0.0
        %2334 = vmatprep.subr.mxu0 0.0
        %2335 = vmatpush1.msra.mxu0 0.0
        %2336 = vmatprep.subr.mxu0 0.0
        %2337 = vmatpush1.msra.mxu0 0.0
        %2338 = vmatprep.subr.mxu0 0.0
        %2339 = vmatpush1.msra.mxu0 0.0
        %2340 = vmatprep.subr.mxu0 0.0
        %2341 = vmatpush1.msra.mxu0 0.0
        %2342 = vmatprep.subr.mxu0 0.0
        %2343 = vmatpush1.msra.mxu0 0.0
        %2344 = vmatprep.subr.mxu0 0.0
        %2345 = vmatpush1.msra.mxu0 0.0
        %2346 = vmatprep.subr.mxu0 0.0
        %2347 = vmatpush1.msra.mxu0 0.0
        %2348 = vmatprep.subr.mxu0 %v2312
        %2349 = vmatpush1.msra.mxu0 %v2311
        %2350 = vmatprep.subr.mxu0 0.0
        %2351 = vmatpush2.msra.mxu0 0.0
        %2352 = vmatprep.subr.mxu0 0.0
        %2353 = vmatpush2.msra.mxu0 0.0
        %2354 = vmatprep.subr.mxu0 0.0
        %2355 = vmatpush2.msra.mxu0 0.0
        %2356 = vmatprep.subr.mxu0 0.0
        %2357 = vmatpush2.msra.mxu0 0.0
        %2358 = vmatprep.subr.mxu0 0.0
        %2359 = vmatpush2.msra.mxu0 0.0
        %2360 = vmatprep.subr.mxu0 0.0
        %2361 = vmatpush2.msra.mxu0 0.0
        %2362 = vmatprep.subr.mxu0 0.0
        %2363 = vmatpush2.msra.mxu0 0.0
        %2364 = vmatprep.subr.mxu0 0.0
        %2365 = vmatpush2.msra.mxu0 0.0
        %2366 = vmatprep.subr.mxu0 0.0
        %2367 = vmatpush2.msra.mxu0 0.0
        %2368 = vmatprep.subr.mxu0 0.0
        %2369 = vmatpush2.msra.mxu0 0.0
        %2370 = vmatprep.subr.mxu0 0.0
        %2371 = vmatpush2.msra.mxu0 0.0
        %2372 = vmatprep.subr.mxu0 0.0
        %2373 = vmatpush2.msra.mxu0 0.0
        %2374 = vmatprep.subr.mxu0 0.0
        %2375 = vmatpush2.msra.mxu0 0.0
        %2376 = vmatprep.subr.mxu0 0.0
        %2377 = vmatpush2.msra.mxu0 0.0
        %2378 = vmatprep.subr.mxu0 0.0
        %2379 = vmatpush2.msra.mxu0 0.0
        %2380 = vmatprep.subr.mxu0 0.0
        %2381 = vmatpush2.msra.mxu0 0.0
        %2382 = vmatprep.mubr.f32.mxu0 0.0
        %2383 = vmatmul.mubr.f32.gmra.mxu0 %v2316
        %v2384 = vpop.f32.mrf.mxu0
        %v2385 = vadd.f32 0.0, %v2384
        %v2386 = vpop.f32.mrf.mxu0
        %v2387 = vadd.f32 0.0, %v2386
        %2388 = vdwg.mxu0
        %v2389 = vsel %vm2315, %v2301, 0
        %2391 = vmatprep.subr.mxu0 0.0
        %2392 = vmatpush1.msra.mxu0 0.0
        %2393 = vmatprep.subr.mxu0 0.0
        %2394 = vmatpush1.msra.mxu0 0.0
        %2395 = vmatprep.subr.mxu0 0.0
        %2396 = vmatpush1.msra.mxu0 0.0
        %2397 = vmatprep.subr.mxu0 0.0
        %2398 = vmatpush1.msra.mxu0 0.0
        %2399 = vmatprep.subr.mxu0 0.0
        %2400 = vmatpush1.msra.mxu0 0.0
        %2401 = vmatprep.subr.mxu0 0.0
        %2402 = vmatpush1.msra.mxu0 0.0
        %2403 = vmatprep.subr.mxu0 0.0
        %2404 = vmatpush1.msra.mxu0 0.0
        %2405 = vmatprep.subr.mxu0 0.0
        %2406 = vmatpush1.msra.mxu0 0.0
        %2407 = vmatprep.subr.mxu0 0.0
        %2408 = vmatpush1.msra.mxu0 0.0
        %2409 = vmatprep.subr.mxu0 0.0
        %2410 = vmatpush1.msra.mxu0 0.0
        %2411 = vmatprep.subr.mxu0 0.0
        %2412 = vmatpush1.msra.mxu0 0.0
        %2413 = vmatprep.subr.mxu0 0.0
        %2414 = vmatpush1.msra.mxu0 0.0
        %2415 = vmatprep.subr.mxu0 0.0
        %2416 = vmatpush1.msra.mxu0 0.0
        %2417 = vmatprep.subr.mxu0 0.0
        %2418 = vmatpush1.msra.mxu0 0.0
        %2419 = vmatprep.subr.mxu0 0.0
        %2420 = vmatpush1.msra.mxu0 0.0
        %2421 = vmatprep.subr.mxu0 %v2299
        %2422 = vmatpush1.msra.mxu0 %v2297
        %2423 = vmatprep.subr.mxu0 0.0
        %2424 = vmatpush2.msra.mxu0 0.0
        %2425 = vmatprep.subr.mxu0 0.0
        %2426 = vmatpush2.msra.mxu0 0.0
        %2427 = vmatprep.subr.mxu0 0.0
        %2428 = vmatpush2.msra.mxu0 0.0
        %2429 = vmatprep.subr.mxu0 0.0
        %2430 = vmatpush2.msra.mxu0 0.0
        %2431 = vmatprep.subr.mxu0 0.0
        %2432 = vmatpush2.msra.mxu0 0.0
        %2433 = vmatprep.subr.mxu0 0.0
        %2434 = vmatpush2.msra.mxu0 0.0
        %2435 = vmatprep.subr.mxu0 0.0
        %2436 = vmatpush2.msra.mxu0 0.0
        %2437 = vmatprep.subr.mxu0 0.0
        %2438 = vmatpush2.msra.mxu0 0.0
        %2439 = vmatprep.subr.mxu0 0.0
        %2440 = vmatpush2.msra.mxu0 0.0
        %2441 = vmatprep.subr.mxu0 0.0
        %2442 = vmatpush2.msra.mxu0 0.0
        %2443 = vmatprep.subr.mxu0 0.0
        %2444 = vmatpush2.msra.mxu0 0.0
        %2445 = vmatprep.subr.mxu0 0.0
        %2446 = vmatpush2.msra.mxu0 0.0
        %2447 = vmatprep.subr.mxu0 0.0
        %2448 = vmatpush2.msra.mxu0 0.0
        %2449 = vmatprep.subr.mxu0 0.0
        %2450 = vmatpush2.msra.mxu0 0.0
        %2451 = vmatprep.subr.mxu0 0.0
        %2452 = vmatpush2.msra.mxu0 0.0
        %2453 = vmatprep.subr.mxu0 0.0
        %2454 = vmatpush2.msra.mxu0 0.0
        %2455 = vmatprep.mubr.f32.mxu0 0.0
        %2456 = vmatmul.mubr.f32.gmra.mxu0 %v2389
        %v2457 = vpop.f32.mrf.mxu0
        %v2458 = vadd.f32 %v2385, %v2457
        %v2459 = vpop.f32.mrf.mxu0
        %v2460 = vadd.f32 %v2387, %v2459
        %2461 = vdwg.mxu0
        %2462 = vrot.lane.b32.xlu0 %v2301, 112
        %v2463 = vpop.permute.xlu0 %2462
        %2464 = vrot.lane.b32.xlu0 %v2297, 126
        %v2465 = vpop.permute.xlu0 %2464
        %2466 = vrot.lane.b32.xlu0 %v2299, 126
        %v2467 = vpop.permute.xlu0 %2466
        %2468 = vrot.lane.b32.xlu0 0.0, 126
        %v2469 = vpop.permute.xlu0 %2468
        %v2470 = vsel %vm1080, %v2465, %v2467
        %v2471 = vsel %vm1080, %v2467, %v2469
        %v2474 = vsel %vm2315, %v2463, 0
        %2476 = vmatprep.subr.mxu0 0.0
        %2477 = vmatpush1.msra.mxu0 0.0
        %2478 = vmatprep.subr.mxu0 0.0
        %2479 = vmatpush1.msra.mxu0 0.0
        %2480 = vmatprep.subr.mxu0 0.0
        %2481 = vmatpush1.msra.mxu0 0.0
        %2482 = vmatprep.subr.mxu0 0.0
        %2483 = vmatpush1.msra.mxu0 0.0
        %2484 = vmatprep.subr.mxu0 0.0
        %2485 = vmatpush1.msra.mxu0 0.0
        %2486 = vmatprep.subr.mxu0 0.0
        %2487 = vmatpush1.msra.mxu0 0.0
        %2488 = vmatprep.subr.mxu0 0.0
        %2489 = vmatpush1.msra.mxu0 0.0
        %2490 = vmatprep.subr.mxu0 0.0
        %2491 = vmatpush1.msra.mxu0 0.0
        %2492 = vmatprep.subr.mxu0 0.0
        %2493 = vmatpush1.msra.mxu0 0.0
        %2494 = vmatprep.subr.mxu0 0.0
        %2495 = vmatpush1.msra.mxu0 0.0
        %2496 = vmatprep.subr.mxu0 0.0
        %2497 = vmatpush1.msra.mxu0 0.0
        %2498 = vmatprep.subr.mxu0 0.0
        %2499 = vmatpush1.msra.mxu0 0.0
        %2500 = vmatprep.subr.mxu0 0.0
        %2501 = vmatpush1.msra.mxu0 0.0
        %2502 = vmatprep.subr.mxu0 0.0
        %2503 = vmatpush1.msra.mxu0 0.0
        %2504 = vmatprep.subr.mxu0 0.0
        %2505 = vmatpush1.msra.mxu0 0.0
        %2506 = vmatprep.subr.mxu0 %v2471
        %2507 = vmatpush1.msra.mxu0 %v2470
        %2508 = vmatprep.subr.mxu0 0.0
        %2509 = vmatpush2.msra.mxu0 0.0
        %2510 = vmatprep.subr.mxu0 0.0
        %2511 = vmatpush2.msra.mxu0 0.0
        %2512 = vmatprep.subr.mxu0 0.0
        %2513 = vmatpush2.msra.mxu0 0.0
        %2514 = vmatprep.subr.mxu0 0.0
        %2515 = vmatpush2.msra.mxu0 0.0
        %2516 = vmatprep.subr.mxu0 0.0
        %2517 = vmatpush2.msra.mxu0 0.0
        %2518 = vmatprep.subr.mxu0 0.0
        %2519 = vmatpush2.msra.mxu0 0.0
        %2520 = vmatprep.subr.mxu0 0.0
        %2521 = vmatpush2.msra.mxu0 0.0
        %2522 = vmatprep.subr.mxu0 0.0
        %2523 = vmatpush2.msra.mxu0 0.0
        %2524 = vmatprep.subr.mxu0 0.0
        %2525 = vmatpush2.msra.mxu0 0.0
        %2526 = vmatprep.subr.mxu0 0.0
        %2527 = vmatpush2.msra.mxu0 0.0
        %2528 = vmatprep.subr.mxu0 0.0
        %2529 = vmatpush2.msra.mxu0 0.0
        %2530 = vmatprep.subr.mxu0 0.0
        %2531 = vmatpush2.msra.mxu0 0.0
        %2532 = vmatprep.subr.mxu0 0.0
        %2533 = vmatpush2.msra.mxu0 0.0
        %2534 = vmatprep.subr.mxu0 0.0
        %2535 = vmatpush2.msra.mxu0 0.0
        %2536 = vmatprep.subr.mxu0 0.0
        %2537 = vmatpush2.msra.mxu0 0.0
        %2538 = vmatprep.subr.mxu0 0.0
        %2539 = vmatpush2.msra.mxu0 0.0
        %2540 = vmatprep.mubr.f32.mxu0 0.0
        %2541 = vmatmul.mubr.f32.gmra.mxu0 %v2474
        %v2542 = vpop.f32.mrf.mxu0
        %v2543 = vadd.f32 0.0, %v2542
        %v2544 = vpop.f32.mrf.mxu0
        %v2545 = vadd.f32 0.0, %v2544
        %2546 = vdwg.mxu0
        %v2547 = vadd.f32 %v2458, %v2543
        %v2548 = vadd.f32 %v2460, %v2545
        %2549 = vset.pattern.permute.xlu0 24
        %2550 = vperm.xlu0 %2549, %v2301
        %v2551 = vpop.permute.xlu0 %2550
        %v2553 = vadd.f32 %v2547, %v2551
        %v2554 = vadd.f32 %v2548, %v2551
        %v2555 = vmax.f32 %v2553, 0.0
        %v2556 = vmax.f32 %v2554, 0.0
        %2559 = vrot.lane.b32.xlu0 %v2555, 127
        %v2560 = vpop.permute.xlu0 %2559
        %2561 = vrot.lane.b32.xlu0 %v2556, 127
        %v2562 = vpop.permute.xlu0 %2561
        %v2563 = vsel %vm374, %v2560, %v2562
        %v2566 = vmax.f32 %v2555, %v2563
        %v2567 = vmax.f32 %v2556, %v2562
        %2570 = vrot.lane.b32.xlu0 %v2566, 126
        %v2571 = vpop.permute.xlu0 %2570
        %2572 = vrot.lane.b32.xlu0 %v2567, 126
        %v2573 = vpop.permute.xlu0 %2572
        %v2574 = vsel %vm1080, %v2571, %v2573
        %v2577 = vmax.f32 %v2566, %v2574
        %v2578 = vmax.f32 %v2567, %v2573
        %v2580 = vsel %vm2006, %v2578, 0
        %v2583 = vsel %vm2010, %v1812, 0
        %2585 = vmatprep.subr.mxu0 0.0
        %2586 = vmatpush1.msra.mxu0 %v1780
        %2587 = vmatprep.subr.mxu0 0.0
        %2588 = vmatpush1.msra.mxu0 %v1778
        %2589 = vmatprep.subr.mxu0 0.0
        %2590 = vmatpush1.msra.mxu0 %v1776
        %2591 = vmatprep.subr.mxu0 0.0
        %2592 = vmatpush1.msra.mxu0 %v1774
        %2593 = vmatprep.subr.mxu0 0.0
        %2594 = vmatpush1.msra.mxu0 %v1772
        %2595 = vmatprep.subr.mxu0 0.0
        %2596 = vmatpush1.msra.mxu0 %v1770
        %2597 = vmatprep.subr.mxu0 0.0
        %2598 = vmatpush1.msra.mxu0 %v1768
        %2599 = vmatprep.subr.mxu0 0.0
        %2600 = vmatpush1.msra.mxu0 %v1766
        %2601 = vmatprep.subr.mxu0 0.0
        %2602 = vmatpush1.msra.mxu0 %v1764
        %2603 = vmatprep.subr.mxu0 0.0
        %2604 = vmatpush1.msra.mxu0 %v1762
        %2605 = vmatprep.subr.mxu0 0.0
        %2606 = vmatpush1.msra.mxu0 %v1760
        %2607 = vmatprep.subr.mxu0 0.0
        %2608 = vmatpush1.msra.mxu0 %v1758
        %2609 = vmatprep.subr.mxu0 0.0
        %2610 = vmatpush1.msra.mxu0 %v1756
        %2611 = vmatprep.subr.mxu0 0.0
        %2612 = vmatpush1.msra.mxu0 %v1754
        %2613 = vmatprep.subr.mxu0 0.0
        %2614 = vmatpush1.msra.mxu0 %v1752
        %2615 = vmatprep.subr.mxu0 0.0
        %2616 = vmatpush1.msra.mxu0 %v1750
        %2617 = vmatprep.subr.mxu0 0.0
        %2618 = vmatpush2.msra.mxu0 %v2583
        %2619 = vmatprep.subr.mxu0 0.0
        %2620 = vmatpush2.msra.mxu0 %v1810
        %2621 = vmatprep.subr.mxu0 0.0
        %2622 = vmatpush2.msra.mxu0 %v1808
        %2623 = vmatprep.subr.mxu0 0.0
        %2624 = vmatpush2.msra.mxu0 %v1806
        %2625 = vmatprep.subr.mxu0 0.0
        %2626 = vmatpush2.msra.mxu0 %v1804
        %2627 = vmatprep.subr.mxu0 0.0
        %2628 = vmatpush2.msra.mxu0 %v1802
        %2629 = vmatprep.subr.mxu0 0.0
        %2630 = vmatpush2.msra.mxu0 %v1800
        %2631 = vmatprep.subr.mxu0 0.0
        %2632 = vmatpush2.msra.mxu0 %v1798
        %2633 = vmatprep.subr.mxu0 0.0
        %2634 = vmatpush2.msra.mxu0 %v1796
        %2635 = vmatprep.subr.mxu0 0.0
        %2636 = vmatpush2.msra.mxu0 %v1794
        %2637 = vmatprep.subr.mxu0 0.0
        %2638 = vmatpush2.msra.mxu0 %v1792
        %2639 = vmatprep.subr.mxu0 0.0
        %2640 = vmatpush2.msra.mxu0 %v1790
        %2641 = vmatprep.subr.mxu0 0.0
        %2642 = vmatpush2.msra.mxu0 %v1788
        %2643 = vmatprep.subr.mxu0 0.0
        %2644 = vmatpush2.msra.mxu0 %v1786
        %2645 = vmatprep.subr.mxu0 0.0
        %2646 = vmatpush2.msra.mxu0 %v1784
        %2647 = vmatprep.subr.mxu0 0.0
        %2648 = vmatpush2.msra.mxu0 %v1782
        %2649 = vmatprep.mubr.f32.mxu0 %v2580
        %2650 = vmatmul.mubr.f32.gmra.mxu0 %v2577
        %v2651 = vpop.f32.mrf.mxu0
        %v2652 = vadd.f32 0.0, %v2651
        %v2653 = vpop.f32.mrf.mxu0
        %2654 = vdwg.mxu0
        %v2655 = vld [vmem:[#allocation7] sm:$0xff]
        %v2656 = vld [vmem:[#allocation7 + $0x8] sm:$0xff]
        %vm2657 = vcmask 523264
        %v2658 = vsel %vm2657, %v2652, 0.0
        %2661 = vrot.lane.b32.xlu0 %v2655, 120
        %v2662 = vpop.permute.xlu0 %2661
        %2663 = vrot.lane.b32.xlu0 %v2656, 120
        %v2664 = vpop.permute.xlu0 %2663
        %2666 = vrot.lane.b32.xlu0 %v2658, 127
        %v2667 = vpop.permute.xlu0 %2666
        %v2669 = vsel %vm2315, %v2662, 0
        %v2671 = vsel %vm2315, %v2664, 0
        %2673 = vmatprep.subr.mxu0 0.0
        %2674 = vmatpush1.msra.mxu0 0.0
        %2675 = vmatprep.subr.mxu0 0.0
        %2676 = vmatpush1.msra.mxu0 0.0
        %2677 = vmatprep.subr.mxu0 0.0
        %2678 = vmatpush1.msra.mxu0 0.0
        %2679 = vmatprep.subr.mxu0 0.0
        %2680 = vmatpush1.msra.mxu0 0.0
        %2681 = vmatprep.subr.mxu0 0.0
        %2682 = vmatpush1.msra.mxu0 0.0
        %2683 = vmatprep.subr.mxu0 0.0
        %2684 = vmatpush1.msra.mxu0 0.0
        %2685 = vmatprep.subr.mxu0 0.0
        %2686 = vmatpush1.msra.mxu0 0.0
        %2687 = vmatprep.subr.mxu0 0.0
        %2688 = vmatpush1.msra.mxu0 0.0
        %2689 = vmatprep.subr.mxu0 0.0
        %2690 = vmatpush1.msra.mxu0 0.0
        %2691 = vmatprep.subr.mxu0 0.0
        %2692 = vmatpush1.msra.mxu0 0.0
        %2693 = vmatprep.subr.mxu0 0.0
        %2694 = vmatpush1.msra.mxu0 0.0
        %2695 = vmatprep.subr.mxu0 0.0
        %2696 = vmatpush1.msra.mxu0 0.0
        %2697 = vmatprep.subr.mxu0 0.0
        %2698 = vmatpush1.msra.mxu0 0.0
        %2699 = vmatprep.subr.mxu0 0.0
        %2700 = vmatpush1.msra.mxu0 0.0
        %2701 = vmatprep.subr.mxu0 0.0
        %2702 = vmatpush1.msra.mxu0 0.0
        %2703 = vmatprep.subr.mxu0 0.0
        %2704 = vmatpush1.msra.mxu0 %v2667
        %2705 = vmatprep.subr.mxu0 0.0
        %2706 = vmatpush2.msra.mxu0 0.0
        %2707 = vmatprep.subr.mxu0 0.0
        %2708 = vmatpush2.msra.mxu0 0.0
        %2709 = vmatprep.subr.mxu0 0.0
        %2710 = vmatpush2.msra.mxu0 0.0
        %2711 = vmatprep.subr.mxu0 0.0
        %2712 = vmatpush2.msra.mxu0 0.0
        %2713 = vmatprep.subr.mxu0 0.0
        %2714 = vmatpush2.msra.mxu0 0.0
        %2715 = vmatprep.subr.mxu0 0.0
        %2716 = vmatpush2.msra.mxu0 0.0
        %2717 = vmatprep.subr.mxu0 0.0
        %2718 = vmatpush2.msra.mxu0 0.0
        %2719 = vmatprep.subr.mxu0 0.0
        %2720 = vmatpush2.msra.mxu0 0.0
        %2721 = vmatprep.subr.mxu0 0.0
        %2722 = vmatpush2.msra.mxu0 0.0
        %2723 = vmatprep.subr.mxu0 0.0
        %2724 = vmatpush2.msra.mxu0 0.0
        %2725 = vmatprep.subr.mxu0 0.0
        %2726 = vmatpush2.msra.mxu0 0.0
        %2727 = vmatprep.subr.mxu0 0.0
        %2728 = vmatpush2.msra.mxu0 0.0
        %2729 = vmatprep.subr.mxu0 0.0
        %2730 = vmatpush2.msra.mxu0 0.0
        %2731 = vmatprep.subr.mxu0 0.0
        %2732 = vmatpush2.msra.mxu0 0.0
        %2733 = vmatprep.subr.mxu0 0.0
        %2734 = vmatpush2.msra.mxu0 0.0
        %2735 = vmatprep.subr.mxu0 0.0
        %2736 = vmatpush2.msra.mxu0 0.0
        %2737 = vmatprep.mubr.f32.mxu0 0.0
        %2738 = vmatmul.mubr.f32.gmra.mxu0 %v2669
        %v2739 = vpop.f32.mrf.mxu0
        %v2740 = vadd.f32 0.0, %v2739
        %v2741 = vpop.f32.mrf.mxu0
        %2742 = vmatprep.mubr.f32.mxu0 0.0
        %2743 = vmatmul.mubr.f32.gmra.mxu0 %v2671
        %v2744 = vpop.f32.mrf.mxu0
        %v2745 = vadd.f32 0.0, %v2744
        %v2746 = vpop.f32.mrf.mxu0
        %2747 = vdwg.mxu0
        %v2748 = vsel %vm2315, %v2655, 0
        %v2750 = vsel %vm2315, %v2656, 0
        %2752 = vmatprep.subr.mxu0 0.0
        %2753 = vmatpush1.msra.mxu0 0.0
        %2754 = vmatprep.subr.mxu0 0.0
        %2755 = vmatpush1.msra.mxu0 0.0
        %2756 = vmatprep.subr.mxu0 0.0
        %2757 = vmatpush1.msra.mxu0 0.0
        %2758 = vmatprep.subr.mxu0 0.0
        %2759 = vmatpush1.msra.mxu0 0.0
        %2760 = vmatprep.subr.mxu0 0.0
        %2761 = vmatpush1.msra.mxu0 0.0
        %2762 = vmatprep.subr.mxu0 0.0
        %2763 = vmatpush1.msra.mxu0 0.0
        %2764 = vmatprep.subr.mxu0 0.0
        %2765 = vmatpush1.msra.mxu0 0.0
        %2766 = vmatprep.subr.mxu0 0.0
        %2767 = vmatpush1.msra.mxu0 0.0
        %2768 = vmatprep.subr.mxu0 0.0
        %2769 = vmatpush1.msra.mxu0 0.0
        %2770 = vmatprep.subr.mxu0 0.0
        %2771 = vmatpush1.msra.mxu0 0.0
        %2772 = vmatprep.subr.mxu0 0.0
        %2773 = vmatpush1.msra.mxu0 0.0
        %2774 = vmatprep.subr.mxu0 0.0
        %2775 = vmatpush1.msra.mxu0 0.0
        %2776 = vmatprep.subr.mxu0 0.0
        %2777 = vmatpush1.msra.mxu0 0.0
        %2778 = vmatprep.subr.mxu0 0.0
        %2779 = vmatpush1.msra.mxu0 0.0
        %2780 = vmatprep.subr.mxu0 0.0
        %2781 = vmatpush1.msra.mxu0 0.0
        %2782 = vmatprep.subr.mxu0 0.0
        %2783 = vmatpush1.msra.mxu0 %v2658
        %2784 = vmatprep.subr.mxu0 0.0
        %2785 = vmatpush2.msra.mxu0 0.0
        %2786 = vmatprep.subr.mxu0 0.0
        %2787 = vmatpush2.msra.mxu0 0.0
        %2788 = vmatprep.subr.mxu0 0.0
        %2789 = vmatpush2.msra.mxu0 0.0
        %2790 = vmatprep.subr.mxu0 0.0
        %2791 = vmatpush2.msra.mxu0 0.0
        %2792 = vmatprep.subr.mxu0 0.0
        %2793 = vmatpush2.msra.mxu0 0.0
        %2794 = vmatprep.subr.mxu0 0.0
        %2795 = vmatpush2.msra.mxu0 0.0
        %2796 = vmatprep.subr.mxu0 0.0
        %2797 = vmatpush2.msra.mxu0 0.0
        %2798 = vmatprep.subr.mxu0 0.0
        %2799 = vmatpush2.msra.mxu0 0.0
        %2800 = vmatprep.subr.mxu0 0.0
        %2801 = vmatpush2.msra.mxu0 0.0
        %2802 = vmatprep.subr.mxu0 0.0
        %2803 = vmatpush2.msra.mxu0 0.0
        %2804 = vmatprep.subr.mxu0 0.0
        %2805 = vmatpush2.msra.mxu0 0.0
        %2806 = vmatprep.subr.mxu0 0.0
        %2807 = vmatpush2.msra.mxu0 0.0
        %2808 = vmatprep.subr.mxu0 0.0
        %2809 = vmatpush2.msra.mxu0 0.0
        %2810 = vmatprep.subr.mxu0 0.0
        %2811 = vmatpush2.msra.mxu0 0.0
        %2812 = vmatprep.subr.mxu0 0.0
        %2813 = vmatpush2.msra.mxu0 0.0
        %2814 = vmatprep.subr.mxu0 0.0
        %2815 = vmatpush2.msra.mxu0 0.0
        %2816 = vmatprep.mubr.f32.mxu0 0.0
        %2817 = vmatmul.mubr.f32.gmra.mxu0 %v2748
        %v2818 = vpop.f32.mrf.mxu0
        %v2819 = vadd.f32 %v2740, %v2818
        %v2820 = vpop.f32.mrf.mxu0
        %2821 = vmatprep.mubr.f32.mxu0 0.0
        %2822 = vmatmul.mubr.f32.gmra.mxu0 %v2750
        %v2823 = vpop.f32.mrf.mxu0
        %v2824 = vadd.f32 %v2745, %v2823
        %v2825 = vpop.f32.mrf.mxu0
        %2826 = vdwg.mxu0
        %2827 = vrot.lane.b32.xlu0 %v2655, 112
        %v2828 = vpop.permute.xlu0 %2827
        %2829 = vrot.lane.b32.xlu0 %v2656, 112
        %v2830 = vpop.permute.xlu0 %2829
        %2831 = vrot.lane.b32.xlu0 %v2658, 126
        %v2832 = vpop.permute.xlu0 %2831
        %v2834 = vsel %vm2315, %v2828, 0
        %v2836 = vsel %vm2315, %v2830, 0
        %2838 = vmatprep.subr.mxu0 0.0
        %2839 = vmatpush1.msra.mxu0 0.0
        %2840 = vmatprep.subr.mxu0 0.0
        %2841 = vmatpush1.msra.mxu0 0.0
        %2842 = vmatprep.subr.mxu0 0.0
        %2843 = vmatpush1.msra.mxu0 0.0
        %2844 = vmatprep.subr.mxu0 0.0
        %2845 = vmatpush1.msra.mxu0 0.0
        %2846 = vmatprep.subr.mxu0 0.0
        %2847 = vmatpush1.msra.mxu0 0.0
        %2848 = vmatprep.subr.mxu0 0.0
        %2849 = vmatpush1.msra.mxu0 0.0
        %2850 = vmatprep.subr.mxu0 0.0
        %2851 = vmatpush1.msra.mxu0 0.0
        %2852 = vmatprep.subr.mxu0 0.0
        %2853 = vmatpush1.msra.mxu0 0.0
        %2854 = vmatprep.subr.mxu0 0.0
        %2855 = vmatpush1.msra.mxu0 0.0
        %2856 = vmatprep.subr.mxu0 0.0
        %2857 = vmatpush1.msra.mxu0 0.0
        %2858 = vmatprep.subr.mxu0 0.0
        %2859 = vmatpush1.msra.mxu0 0.0
        %2860 = vmatprep.subr.mxu0 0.0
        %2861 = vmatpush1.msra.mxu0 0.0
        %2862 = vmatprep.subr.mxu0 0.0
        %2863 = vmatpush1.msra.mxu0 0.0
        %2864 = vmatprep.subr.mxu0 0.0
        %2865 = vmatpush1.msra.mxu0 0.0
        %2866 = vmatprep.subr.mxu0 0.0
        %2867 = vmatpush1.msra.mxu0 0.0
        %2868 = vmatprep.subr.mxu0 0.0
        %2869 = vmatpush1.msra.mxu0 %v2832
        %2870 = vmatprep.subr.mxu0 0.0
        %2871 = vmatpush2.msra.mxu0 0.0
        %2872 = vmatprep.subr.mxu0 0.0
        %2873 = vmatpush2.msra.mxu0 0.0
        %2874 = vmatprep.subr.mxu0 0.0
        %2875 = vmatpush2.msra.mxu0 0.0
        %2876 = vmatprep.subr.mxu0 0.0
        %2877 = vmatpush2.msra.mxu0 0.0
        %2878 = vmatprep.subr.mxu0 0.0
        %2879 = vmatpush2.msra.mxu0 0.0
        %2880 = vmatprep.subr.mxu0 0.0
        %2881 = vmatpush2.msra.mxu0 0.0
        %2882 = vmatprep.subr.mxu0 0.0
        %2883 = vmatpush2.msra.mxu0 0.0
        %2884 = vmatprep.subr.mxu0 0.0
        %2885 = vmatpush2.msra.mxu0 0.0
        %2886 = vmatprep.subr.mxu0 0.0
        %2887 = vmatpush2.msra.mxu0 0.0
        %2888 = vmatprep.subr.mxu0 0.0
        %2889 = vmatpush2.msra.mxu0 0.0
        %2890 = vmatprep.subr.mxu0 0.0
        %2891 = vmatpush2.msra.mxu0 0.0
        %2892 = vmatprep.subr.mxu0 0.0
        %2893 = vmatpush2.msra.mxu0 0.0
        %2894 = vmatprep.subr.mxu0 0.0
        %2895 = vmatpush2.msra.mxu0 0.0
        %2896 = vmatprep.subr.mxu0 0.0
        %2897 = vmatpush2.msra.mxu0 0.0
        %2898 = vmatprep.subr.mxu0 0.0
        %2899 = vmatpush2.msra.mxu0 0.0
        %2900 = vmatprep.subr.mxu0 0.0
        %2901 = vmatpush2.msra.mxu0 0.0
        %2902 = vmatprep.mubr.f32.mxu0 0.0
        %2903 = vmatmul.mubr.f32.gmra.mxu0 %v2834
        %v2904 = vpop.f32.mrf.mxu0
        %v2905 = vadd.f32 0.0, %v2904
        %v2906 = vpop.f32.mrf.mxu0
        %2907 = vmatprep.mubr.f32.mxu0 0.0
        %2908 = vmatmul.mubr.f32.gmra.mxu0 %v2836
        %v2909 = vpop.f32.mrf.mxu0
        %v2910 = vadd.f32 0.0, %v2909
        %v2911 = vpop.f32.mrf.mxu0
        %2912 = vdwg.mxu0
        %v2913 = vadd.f32 %v2819, %v2905
        %v2914 = vadd.f32 %v2824, %v2910
        %2915 = vset.pattern.permute.xlu0 24
        %2916 = vperm.xlu0 %2915, %v2655
        %v2917 = vpop.permute.xlu0 %2916
        %2919 = vset.pattern.permute.xlu0 24
        %2920 = vperm.xlu0 %2919, %v2656
        %v2921 = vpop.permute.xlu0 %2920
        %v2923 = vadd.f32 %v2913, %v2917
        %v2924 = vadd.f32 %v2914, %v2921
        %v2925 = vmax.f32 %v2923, 0.0
        %v2926 = vmax.f32 %v2924, 0.0
        %2929 = vrot.lane.b32.xlu0 %v2925, 127
        %v2930 = vpop.permute.xlu0 %2929
        %2931 = vrot.lane.b32.xlu0 %v2926, 127
        %v2932 = vpop.permute.xlu0 %2931
        %v2935 = vmax.f32 %v2925, %v2930
        %v2936 = vmax.f32 %v2926, %v2932
        %2939 = vrot.lane.b32.xlu0 %v2935, 126
        %v2940 = vpop.permute.xlu0 %2939
        %2941 = vrot.lane.b32.xlu0 %v2936, 126
        %v2942 = vpop.permute.xlu0 %2941
        %v2945 = vmax.f32 %v2935, %v2940
        %v2946 = vmax.f32 %v2936, %v2942
        %vm2947 = vcmask 498688
        %v2949 = vsel %vm2947, %v2945, 0
        %v2952 = vsel %vm2947, %v2946, 0
        %v2955 = vsel %vm2010, %v1764, 0
        %2957 = vmatprep.subr.mxu0 0.0
        %2958 = vmatpush1.msra.mxu0 0.0
        %2959 = vmatprep.subr.mxu0 0.0
        %2960 = vmatpush1.msra.mxu0 0.0
        %2961 = vmatprep.subr.mxu0 0.0
        %2962 = vmatpush1.msra.mxu0 0.0
        %2963 = vmatprep.subr.mxu0 0.0
        %2964 = vmatpush1.msra.mxu0 0.0
        %2965 = vmatprep.subr.mxu0 0.0
        %2966 = vmatpush1.msra.mxu0 0.0
        %2967 = vmatprep.subr.mxu0 0.0
        %2968 = vmatpush1.msra.mxu0 0.0
        %2969 = vmatprep.subr.mxu0 0.0
        %2970 = vmatpush1.msra.mxu0 0.0
        %2971 = vmatprep.subr.mxu0 0.0
        %2972 = vmatpush1.msra.mxu0 0.0
        %2973 = vmatprep.subr.mxu0 0.0
        %2974 = vmatpush1.msra.mxu0 %v2955
        %2975 = vmatprep.subr.mxu0 0.0
        %2976 = vmatpush1.msra.mxu0 %v1762
        %2977 = vmatprep.subr.mxu0 0.0
        %2978 = vmatpush1.msra.mxu0 %v1760
        %2979 = vmatprep.subr.mxu0 0.0
        %2980 = vmatpush1.msra.mxu0 %v1758
        %2981 = vmatprep.subr.mxu0 0.0
        %2982 = vmatpush1.msra.mxu0 %v1756
        %2983 = vmatprep.subr.mxu0 0.0
        %2984 = vmatpush1.msra.mxu0 %v1754
        %2985 = vmatprep.subr.mxu0 0.0
        %2986 = vmatpush1.msra.mxu0 %v1752
        %2987 = vmatprep.subr.mxu0 0.0
        %2988 = vmatpush1.msra.mxu0 %v1750
        %2989 = vmatprep.subr.mxu0 0.0
        %2990 = vmatpush2.msra.mxu0 0.0
        %2991 = vmatprep.subr.mxu0 0.0
        %2992 = vmatpush2.msra.mxu0 0.0
        %2993 = vmatprep.subr.mxu0 0.0
        %2994 = vmatpush2.msra.mxu0 0.0
        %2995 = vmatprep.subr.mxu0 0.0
        %2996 = vmatpush2.msra.mxu0 0.0
        %2997 = vmatprep.subr.mxu0 0.0
        %2998 = vmatpush2.msra.mxu0 0.0
        %2999 = vmatprep.subr.mxu0 0.0
        %3000 = vmatpush2.msra.mxu0 0.0
        %3001 = vmatprep.subr.mxu0 0.0
        %3002 = vmatpush2.msra.mxu0 0.0
        %3003 = vmatprep.subr.mxu0 0.0
        %3004 = vmatpush2.msra.mxu0 0.0
        %3005 = vmatprep.subr.mxu0 0.0
        %3006 = vmatpush2.msra.mxu0 0.0
        %3007 = vmatprep.subr.mxu0 0.0
        %3008 = vmatpush2.msra.mxu0 0.0
        %3009 = vmatprep.subr.mxu0 0.0
        %3010 = vmatpush2.msra.mxu0 0.0
        %3011 = vmatprep.subr.mxu0 0.0
        %3012 = vmatpush2.msra.mxu0 0.0
        %3013 = vmatprep.subr.mxu0 0.0
        %3014 = vmatpush2.msra.mxu0 0.0
        %3015 = vmatprep.subr.mxu0 0.0
        %3016 = vmatpush2.msra.mxu0 0.0
        %3017 = vmatprep.subr.mxu0 0.0
        %3018 = vmatpush2.msra.mxu0 0.0
        %3019 = vmatprep.subr.mxu0 0.0
        %3020 = vmatpush2.msra.mxu0 0.0
        %3021 = vmatprep.mubr.f32.mxu0 0.0
        %3022 = vmatmul.mubr.f32.gmra.mxu0 %v2949
        %v3023 = vpop.f32.mrf.mxu0
        %v3024 = vadd.f32 0.0, %v3023
        %v3025 = vpop.f32.mrf.mxu0
        %3026 = vmatprep.mubr.f32.mxu0 0.0
        %3027 = vmatmul.mubr.f32.gmra.mxu0 %v2952
        %v3028 = vpop.f32.mrf.mxu0
        %v3029 = vadd.f32 0.0, %v3028
        %v3030 = vpop.f32.mrf.mxu0
        %3031 = vdwg.mxu0
        %v3032 = vld [vmem:[#allocation9] sm:$0xff]
        %v3033 = vld [vmem:[#allocation9 + $0x8] sm:$0xff]
        %vm3034 = vcmask 130048
        %v3035 = vsel %vm3034, %v3024, 0.0
        %v3036 = vsel %vm3034, %v3029, 0.0
        %3039 = vrot.lane.b32.xlu0 %v3032, 112
        %v3040 = vpop.permute.xlu0 %3039
        %3041 = vrot.lane.b32.xlu0 %v3033, 112
        %v3042 = vpop.permute.xlu0 %3041
        %3045 = vrot.lane.b32.xlu0 %v3035, 127
        %v3046 = vpop.permute.xlu0 %3045
        %3047 = vrot.lane.b32.xlu0 %v3036, 127
        %v3048 = vpop.permute.xlu0 %3047
        %v3051 = vsel %vm3034, %v3040, 0
        %v3053 = vsel %vm3034, %v3042, 0
        %3055 = vmatprep.subr.mxu0 0.0
        %3056 = vmatpush1.msra.mxu0 0.0
        %3057 = vmatprep.subr.mxu0 0.0
        %3058 = vmatpush1.msra.mxu0 0.0
        %3059 = vmatprep.subr.mxu0 0.0
        %3060 = vmatpush1.msra.mxu0 0.0
        %3061 = vmatprep.subr.mxu0 0.0
        %3062 = vmatpush1.msra.mxu0 0.0
        %3063 = vmatprep.subr.mxu0 0.0
        %3064 = vmatpush1.msra.mxu0 0.0
        %3065 = vmatprep.subr.mxu0 0.0
        %3066 = vmatpush1.msra.mxu0 0.0
        %3067 = vmatprep.subr.mxu0 0.0
        %3068 = vmatpush1.msra.mxu0 0.0
        %3069 = vmatprep.subr.mxu0 0.0
        %3070 = vmatpush1.msra.mxu0 0.0
        %3071 = vmatprep.subr.mxu0 0.0
        %3072 = vmatpush1.msra.mxu0 0.0
        %3073 = vmatprep.subr.mxu0 0.0
        %3074 = vmatpush1.msra.mxu0 0.0
        %3075 = vmatprep.subr.mxu0 0.0
        %3076 = vmatpush1.msra.mxu0 0.0
        %3077 = vmatprep.subr.mxu0 0.0
        %3078 = vmatpush1.msra.mxu0 0.0
        %3079 = vmatprep.subr.mxu0 0.0
        %3080 = vmatpush1.msra.mxu0 0.0
        %3081 = vmatprep.subr.mxu0 0.0
        %3082 = vmatpush1.msra.mxu0 0.0
        %3083 = vmatprep.subr.mxu0 0.0
        %3084 = vmatpush1.msra.mxu0 %v3048
        %3085 = vmatprep.subr.mxu0 0.0
        %3086 = vmatpush1.msra.mxu0 %v3046
        %3087 = vmatprep.subr.mxu0 0.0
        %3088 = vmatpush2.msra.mxu0 0.0
        %3089 = vmatprep.subr.mxu0 0.0
        %3090 = vmatpush2.msra.mxu0 0.0
        %3091 = vmatprep.subr.mxu0 0.0
        %3092 = vmatpush2.msra.mxu0 0.0
        %3093 = vmatprep.subr.mxu0 0.0
        %3094 = vmatpush2.msra.mxu0 0.0
        %3095 = vmatprep.subr.mxu0 0.0
        %3096 = vmatpush2.msra.mxu0 0.0
        %3097 = vmatprep.subr.mxu0 0.0
        %3098 = vmatpush2.msra.mxu0 0.0
        %3099 = vmatprep.subr.mxu0 0.0
        %3100 = vmatpush2.msra.mxu0 0.0
        %3101 = vmatprep.subr.mxu0 0.0
        %3102 = vmatpush2.msra.mxu0 0.0
        %3103 = vmatprep.subr.mxu0 0.0
        %3104 = vmatpush2.msra.mxu0 0.0
        %3105 = vmatprep.subr.mxu0 0.0
        %3106 = vmatpush2.msra.mxu0 0.0
        %3107 = vmatprep.subr.mxu0 0.0
        %3108 = vmatpush2.msra.mxu0 0.0
        %3109 = vmatprep.subr.mxu0 0.0
        %3110 = vmatpush2.msra.mxu0 0.0
        %3111 = vmatprep.subr.mxu0 0.0
        %3112 = vmatpush2.msra.mxu0 0.0
        %3113 = vmatprep.subr.mxu0 0.0
        %3114 = vmatpush2.msra.mxu0 0.0
        %3115 = vmatprep.subr.mxu0 0.0
        %3116 = vmatpush2.msra.mxu0 0.0
        %3117 = vmatprep.subr.mxu0 0.0
        %3118 = vmatpush2.msra.mxu0 0.0
        %3119 = vmatprep.mubr.f32.mxu0 0.0
        %3120 = vmatmul.mubr.f32.gmra.mxu0 %v3051
        %v3121 = vpop.f32.mrf.mxu0
        %v3122 = vadd.f32 0.0, %v3121
        %v3123 = vpop.f32.mrf.mxu0
        %3124 = vmatprep.mubr.f32.mxu0 0.0
        %3125 = vmatmul.mubr.f32.gmra.mxu0 %v3053
        %v3126 = vpop.f32.mrf.mxu0
        %v3127 = vadd.f32 0.0, %v3126
        %v3128 = vpop.f32.mrf.mxu0
        %3129 = vdwg.mxu0
        %v3130 = vsel %vm3034, %v3032, 0
        %v3132 = vsel %vm3034, %v3033, 0
        %3134 = vmatprep.subr.mxu0 0.0
        %3135 = vmatpush1.msra.mxu0 0.0
        %3136 = vmatprep.subr.mxu0 0.0
        %3137 = vmatpush1.msra.mxu0 0.0
        %3138 = vmatprep.subr.mxu0 0.0
        %3139 = vmatpush1.msra.mxu0 0.0
        %3140 = vmatprep.subr.mxu0 0.0
        %3141 = vmatpush1.msra.mxu0 0.0
        %3142 = vmatprep.subr.mxu0 0.0
        %3143 = vmatpush1.msra.mxu0 0.0
        %3144 = vmatprep.subr.mxu0 0.0
        %3145 = vmatpush1.msra.mxu0 0.0
        %3146 = vmatprep.subr.mxu0 0.0
        %3147 = vmatpush1.msra.mxu0 0.0
        %3148 = vmatprep.subr.mxu0 0.0
        %3149 = vmatpush1.msra.mxu0 0.0
        %3150 = vmatprep.subr.mxu0 0.0
        %3151 = vmatpush1.msra.mxu0 0.0
        %3152 = vmatprep.subr.mxu0 0.0
        %3153 = vmatpush1.msra.mxu0 0.0
        %3154 = vmatprep.subr.mxu0 0.0
        %3155 = vmatpush1.msra.mxu0 0.0
        %3156 = vmatprep.subr.mxu0 0.0
        %3157 = vmatpush1.msra.mxu0 0.0
        %3158 = vmatprep.subr.mxu0 0.0
        %3159 = vmatpush1.msra.mxu0 0.0
        %3160 = vmatprep.subr.mxu0 0.0
        %3161 = vmatpush1.msra.mxu0 0.0
        %3162 = vmatprep.subr.mxu0 0.0
        %3163 = vmatpush1.msra.mxu0 %v3036
        %3164 = vmatprep.subr.mxu0 0.0
        %3165 = vmatpush1.msra.mxu0 %v3035
        %3166 = vmatprep.subr.mxu0 0.0
        %3167 = vmatpush2.msra.mxu0 0.0
        %3168 = vmatprep.subr.mxu0 0.0
        %3169 = vmatpush2.msra.mxu0 0.0
        %3170 = vmatprep.subr.mxu0 0.0
        %3171 = vmatpush2.msra.mxu0 0.0
        %3172 = vmatprep.subr.mxu0 0.0
        %3173 = vmatpush2.msra.mxu0 0.0
        %3174 = vmatprep.subr.mxu0 0.0
        %3175 = vmatpush2.msra.mxu0 0.0
        %3176 = vmatprep.subr.mxu0 0.0
        %3177 = vmatpush2.msra.mxu0 0.0
        %3178 = vmatprep.subr.mxu0 0.0
        %3179 = vmatpush2.msra.mxu0 0.0
        %3180 = vmatprep.subr.mxu0 0.0
        %3181 = vmatpush2.msra.mxu0 0.0
        %3182 = vmatprep.subr.mxu0 0.0
        %3183 = vmatpush2.msra.mxu0 0.0
        %3184 = vmatprep.subr.mxu0 0.0
        %3185 = vmatpush2.msra.mxu0 0.0
        %3186 = vmatprep.subr.mxu0 0.0
        %3187 = vmatpush2.msra.mxu0 0.0
        %3188 = vmatprep.subr.mxu0 0.0
        %3189 = vmatpush2.msra.mxu0 0.0
        %3190 = vmatprep.subr.mxu0 0.0
        %3191 = vmatpush2.msra.mxu0 0.0
        %3192 = vmatprep.subr.mxu0 0.0
        %3193 = vmatpush2.msra.mxu0 0.0
        %3194 = vmatprep.subr.mxu0 0.0
        %3195 = vmatpush2.msra.mxu0 0.0
        %3196 = vmatprep.subr.mxu0 0.0
        %3197 = vmatpush2.msra.mxu0 0.0
        %3198 = vmatprep.mubr.f32.mxu0 0.0
        %3199 = vmatmul.mubr.f32.gmra.mxu0 %v3130
        %v3200 = vpop.f32.mrf.mxu0
        %v3201 = vadd.f32 %v3122, %v3200
        %v3202 = vpop.f32.mrf.mxu0
        %3203 = vmatprep.mubr.f32.mxu0 0.0
        %3204 = vmatmul.mubr.f32.gmra.mxu0 %v3132
        %v3205 = vpop.f32.mrf.mxu0
        %v3206 = vadd.f32 %v3127, %v3205
        %v3207 = vpop.f32.mrf.mxu0
        %3208 = vdwg.mxu0
        %3209 = vrot.lane.b32.xlu0 %v3032, 96
        %v3210 = vpop.permute.xlu0 %3209
        %3211 = vrot.lane.b32.xlu0 %v3033, 96
        %v3212 = vpop.permute.xlu0 %3211
        %3213 = vrot.lane.b32.xlu0 %v3035, 126
        %v3214 = vpop.permute.xlu0 %3213
        %3215 = vrot.lane.b32.xlu0 %v3036, 126
        %v3216 = vpop.permute.xlu0 %3215
        %v3219 = vsel %vm3034, %v3210, 0
        %v3221 = vsel %vm3034, %v3212, 0
        %3223 = vmatprep.subr.mxu0 0.0
        %3224 = vmatpush1.msra.mxu0 0.0
        %3225 = vmatprep.subr.mxu0 0.0
        %3226 = vmatpush1.msra.mxu0 0.0
        %3227 = vmatprep.subr.mxu0 0.0
        %3228 = vmatpush1.msra.mxu0 0.0
        %3229 = vmatprep.subr.mxu0 0.0
        %3230 = vmatpush1.msra.mxu0 0.0
        %3231 = vmatprep.subr.mxu0 0.0
        %3232 = vmatpush1.msra.mxu0 0.0
        %3233 = vmatprep.subr.mxu0 0.0
        %3234 = vmatpush1.msra.mxu0 0.0
        %3235 = vmatprep.subr.mxu0 0.0
        %3236 = vmatpush1.msra.mxu0 0.0
        %3237 = vmatprep.subr.mxu0 0.0
        %3238 = vmatpush1.msra.mxu0 0.0
        %3239 = vmatprep.subr.mxu0 0.0
        %3240 = vmatpush1.msra.mxu0 0.0
        %3241 = vmatprep.subr.mxu0 0.0
        %3242 = vmatpush1.msra.mxu0 0.0
        %3243 = vmatprep.subr.mxu0 0.0
        %3244 = vmatpush1.msra.mxu0 0.0
        %3245 = vmatprep.subr.mxu0 0.0
        %3246 = vmatpush1.msra.mxu0 0.0
        %3247 = vmatprep.subr.mxu0 0.0
        %3248 = vmatpush1.msra.mxu0 0.0
        %3249 = vmatprep.subr.mxu0 0.0
        %3250 = vmatpush1.msra.mxu0 0.0
        %3251 = vmatprep.subr.mxu0 0.0
        %3252 = vmatpush1.msra.mxu0 %v3216
        %3253 = vmatprep.subr.mxu0 0.0
        %3254 = vmatpush1.msra.mxu0 %v3214
        %3255 = vmatprep.subr.mxu0 0.0
        %3256 = vmatpush2.msra.mxu0 0.0
        %3257 = vmatprep.subr.mxu0 0.0
        %3258 = vmatpush2.msra.mxu0 0.0
        %3259 = vmatprep.subr.mxu0 0.0
        %3260 = vmatpush2.msra.mxu0 0.0
        %3261 = vmatprep.subr.mxu0 0.0
        %3262 = vmatpush2.msra.mxu0 0.0
        %3263 = vmatprep.subr.mxu0 0.0
        %3264 = vmatpush2.msra.mxu0 0.0
        %3265 = vmatprep.subr.mxu0 0.0
        %3266 = vmatpush2.msra.mxu0 0.0
        %3267 = vmatprep.subr.mxu0 0.0
        %3268 = vmatpush2.msra.mxu0 0.0
        %3269 = vmatprep.subr.mxu0 0.0
        %3270 = vmatpush2.msra.mxu0 0.0
        %3271 = vmatprep.subr.mxu0 0.0
        %3272 = vmatpush2.msra.mxu0 0.0
        %3273 = vmatprep.subr.mxu0 0.0
        %3274 = vmatpush2.msra.mxu0 0.0
        %3275 = vmatprep.subr.mxu0 0.0
        %3276 = vmatpush2.msra.mxu0 0.0
        %3277 = vmatprep.subr.mxu0 0.0
        %3278 = vmatpush2.msra.mxu0 0.0
        %3279 = vmatprep.subr.mxu0 0.0
        %3280 = vmatpush2.msra.mxu0 0.0
        %3281 = vmatprep.subr.mxu0 0.0
        %3282 = vmatpush2.msra.mxu0 0.0
        %3283 = vmatprep.subr.mxu0 0.0
        %3284 = vmatpush2.msra.mxu0 0.0
        %3285 = vmatprep.subr.mxu0 0.0
        %3286 = vmatpush2.msra.mxu0 0.0
        %3287 = vmatprep.mubr.f32.mxu0 0.0
        %3288 = vmatmul.mubr.f32.gmra.mxu0 %v3219
        %v3289 = vpop.f32.mrf.mxu0
        %v3290 = vadd.f32 0.0, %v3289
        %v3291 = vpop.f32.mrf.mxu0
        %3292 = vmatprep.mubr.f32.mxu0 0.0
        %3293 = vmatmul.mubr.f32.gmra.mxu0 %v3221
        %v3294 = vpop.f32.mrf.mxu0
        %v3295 = vadd.f32 0.0, %v3294
        %v3296 = vpop.f32.mrf.mxu0
        %3297 = vdwg.mxu0
        %v3298 = vadd.f32 %v3201, %v3290
        %v3299 = vadd.f32 %v3206, %v3295
        %3300 = vset.pattern.permute.xlu0 48
        %3301 = vperm.xlu0 %3300, %v3032
        %v3302 = vpop.permute.xlu0 %3301
        %3304 = vset.pattern.permute.xlu0 48
        %3305 = vperm.xlu0 %3304, %v3033
        %v3306 = vpop.permute.xlu0 %3305
        %v3308 = vadd.f32 %v3298, %v3302
        %v3309 = vadd.f32 %v3299, %v3306
        %v3310 = vmax.f32 %v3308, 0.0
        %v3311 = vmax.f32 %v3309, 0.0
        %3314 = vrot.lane.b32.xlu0 %v3310, 127
        %v3315 = vpop.permute.xlu0 %3314
        %3316 = vrot.lane.b32.xlu0 %v3311, 127
        %v3317 = vpop.permute.xlu0 %3316
        %v3320 = vmax.f32 %v3310, %v3315
        %v3321 = vmax.f32 %v3311, %v3317
        %3324 = vrot.lane.b32.xlu0 %v3320, 126
        %v3325 = vpop.permute.xlu0 %3324
        %3326 = vrot.lane.b32.xlu0 %v3321, 126
        %v3327 = vpop.permute.xlu0 %3326
        %v3330 = vmax.f32 %v3320, %v3325
        %v3331 = vmax.f32 %v3321, %v3327
        %vm3332 = vcmask 105472
        %v3334 = vsel %vm3332, %v3330, 0
        %v3337 = vsel %vm3332, %v3331, 0
        %v3340 = vsel %vm2010, %v1752, 0
        %3342 = vmatprep.subr.mxu0 0.0
        %3343 = vmatpush1.msra.mxu0 0.0
        %3344 = vmatprep.subr.mxu0 0.0
        %3345 = vmatpush1.msra.mxu0 0.0
        %3346 = vmatprep.subr.mxu0 0.0
        %3347 = vmatpush1.msra.mxu0 0.0
        %3348 = vmatprep.subr.mxu0 0.0
        %3349 = vmatpush1.msra.mxu0 0.0
        %3350 = vmatprep.subr.mxu0 0.0
        %3351 = vmatpush1.msra.mxu0 0.0
        %3352 = vmatprep.subr.mxu0 0.0
        %3353 = vmatpush1.msra.mxu0 0.0
        %3354 = vmatprep.subr.mxu0 0.0
        %3355 = vmatpush1.msra.mxu0 0.0
        %3356 = vmatprep.subr.mxu0 0.0
        %3357 = vmatpush1.msra.mxu0 0.0
        %3358 = vmatprep.subr.mxu0 0.0
        %3359 = vmatpush1.msra.mxu0 0.0
        %3360 = vmatprep.subr.mxu0 0.0
        %3361 = vmatpush1.msra.mxu0 0.0
        %3362 = vmatprep.subr.mxu0 0.0
        %3363 = vmatpush1.msra.mxu0 0.0
        %3364 = vmatprep.subr.mxu0 0.0
        %3365 = vmatpush1.msra.mxu0 0.0
        %3366 = vmatprep.subr.mxu0 0.0
        %3367 = vmatpush1.msra.mxu0 0.0
        %3368 = vmatprep.subr.mxu0 0.0
        %3369 = vmatpush1.msra.mxu0 0.0
        %3370 = vmatprep.subr.mxu0 0.0
        %3371 = vmatpush1.msra.mxu0 %v3340
        %3372 = vmatprep.subr.mxu0 0.0
        %3373 = vmatpush1.msra.mxu0 %v1750
        %3374 = vmatprep.subr.mxu0 0.0
        %3375 = vmatpush2.msra.mxu0 0.0
        %3376 = vmatprep.subr.mxu0 0.0
        %3377 = vmatpush2.msra.mxu0 0.0
        %3378 = vmatprep.subr.mxu0 0.0
        %3379 = vmatpush2.msra.mxu0 0.0
        %3380 = vmatprep.subr.mxu0 0.0
        %3381 = vmatpush2.msra.mxu0 0.0
        %3382 = vmatprep.subr.mxu0 0.0
        %3383 = vmatpush2.msra.mxu0 0.0
        %3384 = vmatprep.subr.mxu0 0.0
        %3385 = vmatpush2.msra.mxu0 0.0
        %3386 = vmatprep.subr.mxu0 0.0
        %3387 = vmatpush2.msra.mxu0 0.0
        %3388 = vmatprep.subr.mxu0 0.0
        %3389 = vmatpush2.msra.mxu0 0.0
        %3390 = vmatprep.subr.mxu0 0.0
        %3391 = vmatpush2.msra.mxu0 0.0
        %3392 = vmatprep.subr.mxu0 0.0
        %3393 = vmatpush2.msra.mxu0 0.0
        %3394 = vmatprep.subr.mxu0 0.0
        %3395 = vmatpush2.msra.mxu0 0.0
        %3396 = vmatprep.subr.mxu0 0.0
        %3397 = vmatpush2.msra.mxu0 0.0
        %3398 = vmatprep.subr.mxu0 0.0
        %3399 = vmatpush2.msra.mxu0 0.0
        %3400 = vmatprep.subr.mxu0 0.0
        %3401 = vmatpush2.msra.mxu0 0.0
        %3402 = vmatprep.subr.mxu0 0.0
        %3403 = vmatpush2.msra.mxu0 0.0
        %3404 = vmatprep.subr.mxu0 0.0
        %3405 = vmatpush2.msra.mxu0 0.0
        %3406 = vmatprep.mubr.f32.mxu0 0.0
        %3407 = vmatmul.mubr.f32.gmra.mxu0 %v3334
        %v3408 = vpop.f32.mrf.mxu0
        %v3409 = vadd.f32 0.0, %v3408
        %v3410 = vpop.f32.mrf.mxu0
        %3411 = vmatprep.mubr.f32.mxu0 0.0
        %3412 = vmatmul.mubr.f32.gmra.mxu0 %v3337
        %v3413 = vpop.f32.mrf.mxu0
        %v3414 = vadd.f32 0.0, %v3413
        %v3415 = vpop.f32.mrf.mxu0
        %3416 = vdwg.mxu0
        %3419 = vrot.lane.b32.xlu0 %v3409, 127
        %v3420 = vpop.permute.xlu0 %3419
        %3421 = vrot.lane.b32.xlu0 %v3414, 127
        %v3422 = vpop.permute.xlu0 %3421
        %v3425 = vadd.f32 %v3409, %v3420
        %v3426 = vadd.f32 %v3414, %v3422
        %3427 = vrot.lane.b32.xlu0 %v3409, 126
        %v3428 = vpop.permute.xlu0 %3427
        %3429 = vrot.lane.b32.xlu0 %v3414, 126
        %v3430 = vpop.permute.xlu0 %3429
        %v3433 = vadd.f32 %v3425, %v3428
        %v3434 = vadd.f32 %v3426, %v3430
        %vm3435 = vcmask 7168
        %v3437 = vsel %vm3435, %v3433, 0
        %v3440 = vsel %vm3435, %v3434, 0
        %vm3442 = vcmask 1040384
        %v3444 = vsel %vm3442, %v1750, 0
        %3446 = vmatprep.subr.mxu0 0.0
        %3447 = vmatpush1.msra.mxu0 0.0
        %3448 = vmatprep.subr.mxu0 0.0
        %3449 = vmatpush1.msra.mxu0 0.0
        %3450 = vmatprep.subr.mxu0 0.0
        %3451 = vmatpush1.msra.mxu0 0.0
        %3452 = vmatprep.subr.mxu0 0.0
        %3453 = vmatpush1.msra.mxu0 0.0
        %3454 = vmatprep.subr.mxu0 0.0
        %3455 = vmatpush1.msra.mxu0 0.0
        %3456 = vmatprep.subr.mxu0 0.0
        %3457 = vmatpush1.msra.mxu0 0.0
        %3458 = vmatprep.subr.mxu0 0.0
        %3459 = vmatpush1.msra.mxu0 0.0
        %3460 = vmatprep.subr.mxu0 0.0
        %3461 = vmatpush1.msra.mxu0 0.0
        %3462 = vmatprep.subr.mxu0 0.0
        %3463 = vmatpush1.msra.mxu0 0.0
        %3464 = vmatprep.subr.mxu0 0.0
        %3465 = vmatpush1.msra.mxu0 0.0
        %3466 = vmatprep.subr.mxu0 0.0
        %3467 = vmatpush1.msra.mxu0 0.0
        %3468 = vmatprep.subr.mxu0 0.0
        %3469 = vmatpush1.msra.mxu0 0.0
        %3470 = vmatprep.subr.mxu0 0.0
        %3471 = vmatpush1.msra.mxu0 0.0
        %3472 = vmatprep.subr.mxu0 0.0
        %3473 = vmatpush1.msra.mxu0 0.0
        %3474 = vmatprep.subr.mxu0 0.0
        %3475 = vmatpush1.msra.mxu0 0.0
        %3476 = vmatprep.subr.mxu0 0.0
        %3477 = vmatpush1.msra.mxu0 %v3444
        %3478 = vmatprep.subr.mxu0 0.0
        %3479 = vmatpush2.msra.mxu0 0.0
        %3480 = vmatprep.subr.mxu0 0.0
        %3481 = vmatpush2.msra.mxu0 0.0
        %3482 = vmatprep.subr.mxu0 0.0
        %3483 = vmatpush2.msra.mxu0 0.0
        %3484 = vmatprep.subr.mxu0 0.0
        %3485 = vmatpush2.msra.mxu0 0.0
        %3486 = vmatprep.subr.mxu0 0.0
        %3487 = vmatpush2.msra.mxu0 0.0
        %3488 = vmatprep.subr.mxu0 0.0
        %3489 = vmatpush2.msra.mxu0 0.0
        %3490 = vmatprep.subr.mxu0 0.0
        %3491 = vmatpush2.msra.mxu0 0.0
        %3492 = vmatprep.subr.mxu0 0.0
        %3493 = vmatpush2.msra.mxu0 0.0
        %3494 = vmatprep.subr.mxu0 0.0
        %3495 = vmatpush2.msra.mxu0 0.0
        %3496 = vmatprep.subr.mxu0 0.0
        %3497 = vmatpush2.msra.mxu0 0.0
        %3498 = vmatprep.subr.mxu0 0.0
        %3499 = vmatpush2.msra.mxu0 0.0
        %3500 = vmatprep.subr.mxu0 0.0
        %3501 = vmatpush2.msra.mxu0 0.0
        %3502 = vmatprep.subr.mxu0 0.0
        %3503 = vmatpush2.msra.mxu0 0.0
        %3504 = vmatprep.subr.mxu0 0.0
        %3505 = vmatpush2.msra.mxu0 0.0
        %3506 = vmatprep.subr.mxu0 0.0
        %3507 = vmatpush2.msra.mxu0 0.0
        %3508 = vmatprep.subr.mxu0 0.0
        %3509 = vmatpush2.msra.mxu0 0.0
        %3510 = vmatprep.mubr.f32.mxu0 0.0
        %3511 = vmatmul.mubr.f32.gmra.mxu0 %v3437
        %v3512 = vpop.f32.mrf.mxu0
        %v3513 = vadd.f32 0.0, %v3512
        %v3514 = vpop.f32.mrf.mxu0
        %3515 = vmatprep.mubr.f32.mxu0 0.0
        %3516 = vmatmul.mubr.f32.gmra.mxu0 %v3440
        %v3517 = vpop.f32.mrf.mxu0
        %v3518 = vadd.f32 0.0, %v3517
        %v3519 = vpop.f32.mrf.mxu0
        %3520 = vdwg.mxu0
        %v3521 = vmul.f32 %v3513, 0.33333334
        %v3522 = vmul.f32 %v3518, 0.33333334
        %v3523 = vld [vmem:[#allocation10] sm:$0xff]
        %v3524 = vld [vmem:[#allocation10 + $0x8] sm:$0x3]
        %3527 = vrot.lane.b32.xlu0 %v3523, 112
        %v3528 = vpop.permute.xlu0 %3527
        %3529 = vrot.lane.b32.xlu0 %v3524, 112
        %v3530 = vpop.permute.xlu0 %3529
        %v3533 = vsel %vm3034, %v3523, 0
        %v3535 = vsel %vm3034, %v3524, 0
        %3537 = vmatprep.subr.mxu0 0.0
        %3538 = vmatpush1.msra.mxu0 0.0
        %3539 = vmatprep.subr.mxu0 0.0
        %3540 = vmatpush1.msra.mxu0 0.0
        %3541 = vmatprep.subr.mxu0 0.0
        %3542 = vmatpush1.msra.mxu0 0.0
        %3543 = vmatprep.subr.mxu0 0.0
        %3544 = vmatpush1.msra.mxu0 0.0
        %3545 = vmatprep.subr.mxu0 0.0
        %3546 = vmatpush1.msra.mxu0 0.0
        %3547 = vmatprep.subr.mxu0 0.0
        %3548 = vmatpush1.msra.mxu0 0.0
        %3549 = vmatprep.subr.mxu0 0.0
        %3550 = vmatpush1.msra.mxu0 0.0
        %3551 = vmatprep.subr.mxu0 0.0
        %3552 = vmatpush1.msra.mxu0 0.0
        %3553 = vmatprep.subr.mxu0 0.0
        %3554 = vmatpush1.msra.mxu0 0.0
        %3555 = vmatprep.subr.mxu0 0.0
        %3556 = vmatpush1.msra.mxu0 0.0
        %3557 = vmatprep.subr.mxu0 0.0
        %3558 = vmatpush1.msra.mxu0 0.0
        %3559 = vmatprep.subr.mxu0 0.0
        %3560 = vmatpush1.msra.mxu0 0.0
        %3561 = vmatprep.subr.mxu0 0.0
        %3562 = vmatpush1.msra.mxu0 0.0
        %3563 = vmatprep.subr.mxu0 0.0
        %3564 = vmatpush1.msra.mxu0 0.0
        %3565 = vmatprep.subr.mxu0 0.0
        %3566 = vmatpush1.msra.mxu0 %v3522
        %3567 = vmatprep.subr.mxu0 0.0
        %3568 = vmatpush1.msra.mxu0 %v3521
        %3569 = vmatprep.subr.mxu0 0.0
        %3570 = vmatpush2.msra.mxu0 0.0
        %3571 = vmatprep.subr.mxu0 0.0
        %3572 = vmatpush2.msra.mxu0 0.0
        %3573 = vmatprep.subr.mxu0 0.0
        %3574 = vmatpush2.msra.mxu0 0.0
        %3575 = vmatprep.subr.mxu0 0.0
        %3576 = vmatpush2.msra.mxu0 0.0
        %3577 = vmatprep.subr.mxu0 0.0
        %3578 = vmatpush2.msra.mxu0 0.0
        %3579 = vmatprep.subr.mxu0 0.0
        %3580 = vmatpush2.msra.mxu0 0.0
        %3581 = vmatprep.subr.mxu0 0.0
        %3582 = vmatpush2.msra.mxu0 0.0
        %3583 = vmatprep.subr.mxu0 0.0
        %3584 = vmatpush2.msra.mxu0 0.0
        %3585 = vmatprep.subr.mxu0 0.0
        %3586 = vmatpush2.msra.mxu0 0.0
        %3587 = vmatprep.subr.mxu0 0.0
        %3588 = vmatpush2.msra.mxu0 0.0
        %3589 = vmatprep.subr.mxu0 0.0
        %3590 = vmatpush2.msra.mxu0 0.0
        %3591 = vmatprep.subr.mxu0 0.0
        %3592 = vmatpush2.msra.mxu0 0.0
        %3593 = vmatprep.subr.mxu0 0.0
        %3594 = vmatpush2.msra.mxu0 0.0
        %3595 = vmatprep.subr.mxu0 0.0
        %3596 = vmatpush2.msra.mxu0 0.0
        %3597 = vmatprep.subr.mxu0 0.0
        %3598 = vmatpush2.msra.mxu0 0.0
        %3599 = vmatprep.subr.mxu0 0.0
        %3600 = vmatpush2.msra.mxu0 0.0
        %3601 = vmatprep.mubr.f32.mxu0 0.0
        %3602 = vmatmul.mubr.f32.gmra.mxu0 %v3533
        %v3603 = vpop.f32.mrf.mxu0
        %v3604 = vadd.f32 %v3528, %v3603
        %v3605 = vpop.f32.mrf.mxu0
        %3606 = vmatprep.mubr.f32.mxu0 0.0
        %3607 = vmatmul.mubr.f32.gmra.mxu0 %v3535
        %v3608 = vpop.f32.mrf.mxu0
        %v3609 = vadd.f32 %v3530, %v3608
        %v3610 = vpop.f32.mrf.mxu0
        %3611 = vdwg.mxu0
        %v3612 = vsel %vm3435, %v3604, -inf
        %vm3613 = vcmask 1024
        %v3614 = vsel %vm3613, %v3609, -inf
        %v3615 = vmax.f32 %v3612, %v3614
        %v3616 = vrot.slane %v3615, 4
        %v3617 = vmax.f32 %v3615, %v3616
        %v3618 = vrot.slane %v3617, 2
        %v3619 = vmax.f32 %v3617, %v3618
        %v3620 = vrot.slane %v3619, 1
        %v3621 = vmax.f32 %v3619, %v3620
        %v3622 = vsub.f32 %v3604, %v3621
        %v3623 = vsub.f32 %v3609, %v3621
        %v3624 = vmul.f32 %v3622, 1.442695
        %v3625 = vpow.pop %v3624
        %v3626 = vmul.f32 %v3623, 1.442695
        %v3627 = vpow.pop %v3626
        %v3628 = vsel %vm3435, %v3625, 0.0
        %v3629 = vsel %vm3613, %v3627, 0.0
        %v3630 = vadd.f32 %v3628, %v3629
        %v3631 = vrot.slane %v3630, 4
        %v3632 = vadd.f32 %v3630, %v3631
        %v3633 = vrot.slane %v3632, 2
        %v3634 = vadd.f32 %v3632, %v3633
        %v3635 = vrot.slane %v3634, 1
        %v3636 = vadd.f32 %v3634, %v3635
        %v3637 = vlog2.pop %v3636
        %v3638 = vmul.f32 %v3637, 0.6931472
        %v3639 = vsub.f32 %v3622, %v3638
        %v3640 = vsub.f32 %v3623, %v3638
        %3641 = vst.msk [vmem:[%s338] sm:$0xff] %vm3435, %v3639
        %3642 = vst.msk [vmem:[%s338 + $0x8] sm:$0x3] %vm3613, %v3640
        %p3643 = scmp.lt.s32.totalorder %s23, 7
        %s3644 = scalar_select %p3643, %s23, 7
        %s3645 = smul.addr %s3644, 2
        %s3646 = smul.addr %s3645, 8
        %s3647 = scalar_lea.vmem %s6, %s3646
        // Predicated region
        $region69: #{tpu_custom_call.1} parent=43 // pred_check
          %p3648 = pneg %p172
        $region70: #{tpu_custom_call.1} parent=43 // pred_check_branch
          %3650 = sbr.rel (%p3648) target = $region72
        $region71: #{tpu_custom_call.1} parent=43 // pred_region
          _
        $region72: #{tpu_custom_call.1} parent=43 // pred_fallthru
          _
      $region44: #{tpu_custom_call.1} parent=5 // pred_fallthru
        _
      %p3651 = scmp.le.s32.totalorder 2, %s18
      // Predicated region
      $region73: #{tpu_custom_call.1} parent=5 // pred_check
        %p3652 = pneg %p3651
      $region74: #{tpu_custom_call.1} parent=5 // pred_check_branch
        %3654 = sbr.rel (%p3652) target = $region76
      $region75: #{tpu_custom_call.1} parent=5 // pred_region
        %s3655 = ssub.s32 %s18, 2
        // Predicated region
        $region77: #{tpu_custom_call.1} parent=75 // pred_check
          %p3656 = pneg %p178
        $region78: #{tpu_custom_call.1} parent=75 // pred_check_branch
          %3658 = sbr.rel (%p3656) target = $region80
        $region79: #{tpu_custom_call.1} parent=75 // pred_region
          %p3659 = scmp.lt.s32.totalorder %s24, 7
          %s3660 = scalar_select %p3659, %s24, 7
          %s3661 = smul.addr %s3660, 2
          %s3662 = smul.addr %s3661, 8
          %s3663 = scalar_lea.vmem %s6, %s3662
        $region80: #{tpu_custom_call.1} parent=75 // pred_fallthru
          _
      $region76: #{tpu_custom_call.1} parent=5 // pred_fallthru
        _
    $region6: #{tpu_custom_call.1} parent=1 // loop_footer
      %s22 = sadd.s32 1, %s18
    $region7: #{tpu_custom_call.1} parent=1 // loop_footer_branch
      %17 = sbr.rel target = $region3
    $region8: #{tpu_custom_call.1} parent=1 // loop_exit
      _
    %3664 = vsyncpa [#allocation3], 1
    %s3665 = scalar_lea.sflag [#allocation3], 1
    %3666 = vsyncpa %s3665, 1
    %3667 = vsyncpa [#allocation5], 1
    %3668 = vsyncpa [#allocation8], 1
    %3669 = vsyncpa [#allocation11], 1

</llo_original>
